<compile_context>
chip_gen: v6e
topology: v6e:2x2x1
jax: 0.10.0
libtpu: 0.0.40
codegen_flags: <defaults>
</compile_context>

<pallas_src>
import functools
import math

import numpy as np
import jax
import jax.numpy as jnp
from jax import lax
from jax.experimental import pallas as pl
from jax.experimental.pallas import tpu as pltpu

LN_EPS = 1e-5
_INV_SQRT2 = 1.0 / math.sqrt(2.0)
VMEM_LIMIT = 48 * 1024 * 1024


def _round_up(x, m):
    return -(-x // m) * m


def _gelu_exact(x):
    # nn.GELU() default is the exact (erf-based) GELU.
    return 0.5 * x * (1.0 + lax.erf(x * _INV_SQRT2))


# ----------------------------------------------------------------------------
# Window helpers (pure layout; work on both numpy and jax arrays)
# ----------------------------------------------------------------------------
def get_window_size(x_size, window_size, shift_size=None):
    use_window_size = list(window_size)
    use_shift_size = list(shift_size) if shift_size is not None else None
    for i in range(len(x_size)):
        if x_size[i] <= window_size[i]:
            use_window_size[i] = x_size[i]
            if shift_size is not None:
                use_shift_size[i] = 0
    if shift_size is None:
        return tuple(use_window_size)
    return tuple(use_window_size), tuple(use_shift_size)


def window_partition(x, ws):
    b, d, h, w, c = x.shape
    x = x.reshape(b, d // ws[0], ws[0], h // ws[1], ws[1], w // ws[2], ws[2], c)
    x = x.transpose((0, 1, 3, 5, 2, 4, 6, 7))
    return x.reshape(-1, ws[0] * ws[1] * ws[2], c)


def window_reverse(windows, ws, b, d, h, w):
    c = windows.shape[-1]
    x = windows.reshape(b, d // ws[0], h // ws[1], w // ws[2],
                        ws[0], ws[1], ws[2], c)
    x = x.transpose((0, 1, 4, 2, 5, 3, 6, 7))
    return x.reshape(b, d, h, w, c)


def compute_attn_mask(dp, hp, wp, ws, ss):
    """Shifted-window attention mask: (nW, N, N) float32 with 0 / -100."""
    img_mask = np.zeros((1, dp, hp, wp, 1), np.float32)
    cnt = 0
    for d in (slice(-ws[0]), slice(-ws[0], -ss[0]), slice(-ss[0], None)):
        for h in (slice(-ws[1]), slice(-ws[1], -ss[1]), slice(-ss[1], None)):
            for w in (slice(-ws[2]), slice(-ws[2], -ss[2]), slice(-ss[2], None)):
                img_mask[:, d, h, w, :] = cnt
                cnt += 1
    mask_windows = np.asarray(window_partition(img_mask, ws)).squeeze(-1)  # (nW, N)
    attn_mask = mask_windows[:, None, :] - mask_windows[:, :, None]
    return np.where(attn_mask != 0, -100.0, 0.0).astype(np.float32)


def relative_position_index(ws):
    wd, wh, ww = ws
    coords = np.stack(np.meshgrid(np.arange(wd), np.arange(wh), np.arange(ww),
                                  indexing="ij"))
    coords_flat = coords.reshape(3, -1)
    rel = coords_flat[:, :, None] - coords_flat[:, None, :]
    rel = rel.transpose((1, 2, 0)).astype(np.int64)
    rel[:, :, 0] += wd - 1
    rel[:, :, 1] += wh - 1
    rel[:, :, 2] += ww - 1
    rel[:, :, 0] *= (2 * wh - 1) * (2 * ww - 1)
    rel[:, :, 1] *= 2 * ww - 1
    return rel.sum(-1)  # (N, N)


# ----------------------------------------------------------------------------
# Pallas kernel 1: fused LayerNorm1 + window multi-head attention + projection
# ----------------------------------------------------------------------------
def window_attention_kernel(*refs, num_heads, c_true, scale, use_mask, use_valid):
    o_scratch = refs[-1]
    o_ref = refs[-2]
    it = iter(refs[:-2])
    x_ref = next(it)
    valid_ref = next(it) if use_valid else None
    mask_ref = next(it) if use_mask else None
    (rpb_ref, g1_ref, b1_ref, wqkv_ref, bqkv_ref,
     wproj_ref, bproj_ref) = list(it)

    wb, n, c_pad = x_ref.shape
    hd_pad = c_pad // num_heads

    # LayerNorm1 over the TRUE channels (padded lanes are zero so the sums are
    # unaffected; gamma/beta are zero-padded so padded lanes stay zero).
    x = x_ref[...].astype(jnp.float32)
    inv_c = 1.0 / c_true
    mu = jnp.sum(x, axis=-1, keepdims=True) * inv_c
    var = jnp.sum(x * x, axis=-1, keepdims=True) * inv_c - mu * mu
    xn = (x - mu) * lax.rsqrt(var + LN_EPS)
    xn = xn * g1_ref[...] + b1_ref[...]
    if use_valid:
        # torch pads AFTER norm1 -> padded tokens are exactly zero.
        xn = xn * valid_ref[...]

    # QKV: one (wb*N, C_pad) x (C_pad, 3*C_pad) bf16 MXU matmul, f32 accumulate.
    xf = xn.reshape(wb * n, c_pad).astype(jnp.bfloat16)
    qkv = jnp.dot(xf, wqkv_ref[...],
                  preferred_element_type=jnp.float32) + bqkv_ref[...]
    q3 = (qkv[:, 0 * c_pad:1 * c_pad] * scale).reshape(wb, n, c_pad).astype(jnp.bfloat16)
    k3 = qkv[:, 1 * c_pad:2 * c_pad].reshape(wb, n, c_pad).astype(jnp.bfloat16)
    v3 = qkv[:, 2 * c_pad:3 * c_pad].reshape(wb, n, c_pad).astype(jnp.bfloat16)

    rpb = rpb_ref[...]                       # (H, N, N) f32
    mask = mask_ref[...] if use_mask else None   # (wb, N, N) f32

    # TODO(synk): for large num_heads / N replace this small static head loop
    # with a batched-head einsum or lax.fori_loop + scratch accumulator.
    for h in range(num_heads):
        lo = h * hd_pad
        qh = q3[:, :, lo:lo + hd_pad]
        kh = k3[:, :, lo:lo + hd_pad]
        vh = v3[:, :, lo:lo + hd_pad]
        logits = jnp.einsum("wnd,wmd->wnm", qh, kh,
                            preferred_element_type=jnp.float32)
        logits = logits + rpb[h]
        if use_mask:
            logits = logits + mask
        mx = jnp.max(logits, axis=-1, keepdims=True)
        p = jnp.exp(logits - mx)
        p = p * pl.reciprocal(jnp.sum(p, axis=-1, keepdims=True), approx=True)
        oh = jnp.einsum("wnm,wmd->wnd", p.astype(jnp.bfloat16), vh,
                        preferred_element_type=jnp.float32)
        # Write head output at its static lane offset; single projection below.
        o_scratch[:, :, lo:lo + hd_pad] = oh

    of = o_scratch[...].reshape(wb * n, c_pad).astype(jnp.bfloat16)
    out = jnp.dot(of, wproj_ref[...],
                  preferred_element_type=jnp.float32) + bproj_ref[...]
    o_ref[...] = out.reshape(wb, n, c_pad).astype(o_ref.dtype)


def _choose_wb(nw, b, cap=16, min_steps=8):
    """Largest divisor of nw (<= cap) giving at least `min_steps` grid steps."""
    first = None
    for wb in range(min(nw, cap), 0, -1):
        if nw % wb == 0:
            if first is None:
                first = wb
            if b * (nw // wb) >= min_steps:
                return wb
    return first or 1


def window_attention_pallas(x_windows, valid_w, attn_mask, rpb, p, *,
                            num_heads, nw, c_true):
    bnw, n, c_pad = x_windows.shape
    b = bnw // nw
    head_dim = c_true // num_heads
    scale = head_dim ** (-0.5)
    use_mask = attn_mask is not None
    use_valid = valid_w is not None

    wb = _choose_wb(nw, b)
    nj = nw // wb
    grid = (b, nj)

    in_specs = [pl.BlockSpec((wb, n, c_pad), lambda i, j: (i * nj + j, 0, 0))]
    args = [x_windows]
    if use_valid:
        in_specs.append(pl.BlockSpec((wb, n, 1), lambda i, j: (i * nj + j, 0, 0)))
        args.append(valid_w)
    if use_mask:
        in_specs.append(pl.BlockSpec((wb, n, n), lambda i, j: (j, 0, 0)))
        args.append(attn_mask)
    in_specs += [
        pl.BlockSpec((num_heads, n, n), lambda i, j: (0, 0, 0)),        # rpb
        pl.BlockSpec((1, c_pad), lambda i, j: (0, 0)),                  # gamma1
        pl.BlockSpec((1, c_pad), lambda i, j: (0, 0)),                  # beta1
        pl.BlockSpec((c_pad, 3 * c_pad), lambda i, j: (0, 0)),          # Wqkv^T
        pl.BlockSpec((1, 3 * c_pad), lambda i, j: (0, 0)),              # bqkv
        pl.BlockSpec((c_pad, c_pad), lambda i, j: (0, 0)),              # Wproj^T
        pl.BlockSpec((1, c_pad), lambda i, j: (0, 0)),                  # bproj
    ]
    args += [rpb, p["g1"], p["b1"], p["wqkv_t"], p["bqkv"],
             p["wproj_t"], p["bproj"]]

    kernel = functools.partial(window_attention_kernel, num_heads=num_heads,
                               c_true=c_true, scale=scale,
                               use_mask=use_mask, use_valid=use_valid)
    return pl.pallas_call(
        kernel,
        out_shape=jax.ShapeDtypeStruct((bnw, n, c_pad), x_windows.dtype),
        grid_spec=pltpu.PrefetchScalarGridSpec(
            num_scalar_prefetch=0,
            grid=grid,
            in_specs=in_specs,
            out_specs=pl.BlockSpec((wb, n, c_pad), lambda i, j: (i * nj + j, 0, 0)),
            scratch_shapes=[pltpu.VMEM((wb, n, c_pad), jnp.float32)],
        ),
        compiler_params=pltpu.CompilerParams(
            dimension_semantics=("parallel", "parallel"),
            vmem_limit_bytes=VMEM_LIMIT),
    )(*args)


# ----------------------------------------------------------------------------
# Pallas kernel 2: fused residual + LayerNorm2 + MLP + residual
# ----------------------------------------------------------------------------
def fused_mlp_block_kernel(sc_ref, at_ref, g2_ref, b2_ref,
                           w1_ref, bb1_ref, w2_ref, bb2_ref, o_ref, *, c_true):
    # x1 = shortcut + drop_path(attention branch)   (drop_path = identity)
    x1 = sc_ref[...].astype(jnp.float32) + at_ref[...].astype(jnp.float32)
    inv_c = 1.0 / c_true
    mu = jnp.sum(x1, axis=-1, keepdims=True) * inv_c
    var = jnp.sum(x1 * x1, axis=-1, keepdims=True) * inv_c - mu * mu
    xn = (x1 - mu) * lax.rsqrt(var + LN_EPS) * g2_ref[...] + b2_ref[...]
    h = jnp.dot(xn.astype(jnp.bfloat16), w1_ref[...],
                preferred_element_type=jnp.float32) + bb1_ref[...]
    h = _gelu_exact(h)
    y = jnp.dot(h.astype(jnp.bfloat16), w2_ref[...],
                preferred_element_type=jnp.float32) + bb2_ref[...]
    o_ref[...] = (x1 + y).astype(o_ref.dtype)


def _choose_tm(m, tm_max=512, min_steps=4):
    """Token tile: multiple of 128 that divides m, preferring >= min_steps steps."""
    best = None
    t = (tm_max // 128) * 128
    while t >= 128:
        if m % t == 0:
            if m // t >= min_steps:
                return t, m
            if best is None:
                best = t
        t -= 128
    if best is not None:
        return best, m
    # TODO(synk): handle the ragged tail with pl.when instead of padding.
    tm = 128
    return tm, _round_up(m, tm)


def fused_mlp_block_pallas(shortcut2d, attn2d, p, *, c_true):
    m, c_pad = shortcut2d.shape
    hid_pad = p["w1_t"].shape[1]
    tm, m_pad = _choose_tm(m)
    if m_pad != m:
        pad = m_pad - m
        shortcut2d = jnp.pad(shortcut2d, ((0, pad), (0, 0)))
        attn2d = jnp.pad(attn2d, ((0, pad), (0, 0)))

    kernel = functools.partial(fused_mlp_block_kernel, c_true=c_true)
    out = pl.pallas_call(
        kernel,
        out_shape=jax.ShapeDtypeStruct((m_pad, c_pad), shortcut2d.dtype),
        grid_spec=pltpu.PrefetchScalarGridSpec(
            num_scalar_prefetch=0,
            grid=(m_pad // tm,),
            in_specs=[
                pl.BlockSpec((tm, c_pad), lambda i: (i, 0)),
                pl.BlockSpec((tm, c_pad), lambda i: (i, 0)),
                pl.BlockSpec((1, c_pad), lambda i: (0, 0)),
                pl.BlockSpec((1, c_pad), lambda i: (0, 0)),
                pl.BlockSpec((c_pad, hid_pad), lambda i: (0, 0)),
                pl.BlockSpec((1, hid_pad), lambda i: (0, 0)),
                pl.BlockSpec((hid_pad, c_pad), lambda i: (0, 0)),
                pl.BlockSpec((1, c_pad), lambda i: (0, 0)),
            ],
            out_specs=pl.BlockSpec((tm, c_pad), lambda i: (i, 0)),
        ),
        compiler_params=pltpu.CompilerParams(
            dimension_semantics=("parallel",),
            vmem_limit_bytes=VMEM_LIMIT),
    )(shortcut2d, attn2d, p["g2"], p["b2"], p["w1_t"], p["bb1"],
      p["w2_t"], p["bb2"])
    return out[:m]


# ----------------------------------------------------------------------------
# Full block forward
# ----------------------------------------------------------------------------
def swin_block_forward(x, params, *, window_size, shift_size, num_heads):
    """x: (B, D, H, W, C) -> (B, D, H, W, C)."""
    b, d, h, w, c = x.shape
    c_pad = params["g1"].shape[1]
    ws, ss = get_window_size((d, h, w), window_size, shift_size)

    pad_d = (-d) % ws[0]
    pad_h = (-h) % ws[1]
    pad_w = (-w) % ws[2]
    has_spatial_pad = (pad_d + pad_h + pad_w) > 0
    shifted = any(s > 0 for s in ss)

    # Pad channels to the lane-dense width once, reuse for shortcut.
    x_c = jnp.pad(x, ((0, 0), (0, 0), (0, 0), (0, 0), (0, c_pad - c)))
    xp = jnp.pad(x_c, ((0, 0), (0, pad_d), (0, pad_h), (0, pad_w), (0, 0)))
    dp, hp, wp = d + pad_d, h + pad_h, w + pad_w

    n = ws[0] * ws[1] * ws[2]
    nw = (dp // ws[0]) * (hp // ws[1]) * (wp // ws[2])

    if shifted:
        xp = jnp.roll(xp, shift=(-ss[0], -ss[1], -ss[2]), axis=(1, 2, 3))
        attn_mask = jnp.asarray(compute_attn_mask(dp, hp, wp, ws, ss))
    else:
        attn_mask = None

    if has_spatial_pad:
        valid = jnp.pad(jnp.ones((b, d, h, w, 1), jnp.float32),
                        ((0, 0), (0, pad_d), (0, pad_h), (0, pad_w), (0, 0)))
        if shifted:
            valid = jnp.roll(valid, shift=(-ss[0], -ss[1], -ss[2]), axis=(1, 2, 3))
        valid_w = window_partition(valid, ws)          # (B*nW, N, 1)
    else:
        valid_w = None

    x_windows = window_partition(xp, ws)               # (B*nW, N, C_pad)
    rpb = params["rpb"][:, :n, :n]                     # (H, N, N)

    attn_windows = window_attention_pallas(x_windows, valid_w, attn_mask, rpb,
                                           params, num_heads=num_heads,
                                           nw=nw, c_true=c)

    shifted_x = window_reverse(attn_windows, ws, b, dp, hp, wp)
    if shifted:
        shifted_x = jnp.roll(shifted_x, shift=(ss[0], ss[1], ss[2]), axis=(1, 2, 3))
    attn_out = shifted_x[:, :d, :h, :w, :]             # (B,D,H,W,C_pad)

    # Fused: (shortcut + attn branch) -> LN2 -> MLP -> + residual.
    m = b * d * h * w
    out = fused_mlp_block_pallas(x_c.reshape(m, c_pad),
                                 attn_out.reshape(m, c_pad), params, c_true=c)
    return out.reshape(b, d, h, w, c_pad)[..., :c]


# ----------------------------------------------------------------------------
# Parameters (torch layouts) + one-time packing into kernel layouts
# ----------------------------------------------------------------------------
def init_params(key, dim, num_heads, window_size, mlp_ratio=4.0,
                dtype=jnp.float32):
    hidden = int(dim * mlp_ratio)
    wd, wh, ww = window_size
    n_rel = (2 * wd - 1) * (2 * wh - 1) * (2 * ww - 1)
    ks = jax.random.split(key, 13)
    s = 0.05
    return {
        "g1": 1.0 + 0.1 * jax.random.normal(ks[0], (dim,), dtype),
        "b1": 0.1 * jax.random.normal(ks[1], (dim,), dtype),
        "g2": 1.0 + 0.1 * jax.random.normal(ks[2], (dim,), dtype),
        "b2": 0.1 * jax.random.normal(ks[3], (dim,), dtype),
        "w_qkv": jax.random.normal(ks[4], (3 * dim, dim), dtype) * s,
        "b_qkv": jax.random.normal(ks[5], (3 * dim,), dtype) * s,
        "w_proj": jax.random.normal(ks[6], (dim, dim), dtype) * s,
        "b_proj": jax.random.normal(ks[7], (dim,), dtype) * s,
        "w_fc1": jax.random.normal(ks[8], (hidden, dim), dtype) * s,
        "b_fc1": jax.random.normal(ks[9], (hidden,), dtype) * s,
        "w_fc2": jax.random.normal(ks[10], (dim, hidden), dtype) * s,
        "b_fc2": jax.random.normal(ks[11], (dim,), dtype) * s,
        "rpb_table": jax.random.normal(ks[12], (n_rel, num_heads), dtype) * 0.02,
    }


def pack_kernel_params(raw, window_size, num_heads, dim, hidden,
                       compute_dtype=jnp.bfloat16):
    """One-time packing: channel padding to 128, bf16 weights, RPB gather."""
    c_pad = _round_up(dim, 128)
    hid_pad = _round_up(hidden, 128)
    # TODO(synk): support head counts that do not divide the padded channel dim.
    assert c_pad % num_heads == 0, "num_heads must divide the padded channel dim"
    hd = dim // num_heads
    hd_pad = c_pad // num_heads

    n = window_size[0] * window_size[1] * window_size[2]
    idx = relative_position_index(window_size)                      # (N, N) numpy
    rpb = raw["rpb_table"][idx.reshape(-1)].reshape(n, n, num_heads)
    rpb = jnp.transpose(rpb, (2, 0, 1)).astype(jnp.float32)         # (H, N, N)

    def pad_vec(v, size):
        out = jnp.zeros((1, size), jnp.float32)
        return out.at[0, :v.shape[0]].set(v.astype(jnp.float32))

    # QKV weight: torch (3*dim, dim), output-row order = (which, head, d).
    wqkv = raw["w_qkv"].reshape(3, num_heads, hd, dim).astype(jnp.float32)
    wqkv_p = jnp.zeros((3, num_heads, hd_pad, c_pad), jnp.float32)
    wqkv_p = wqkv_p.at[:, :, :hd, :dim].set(wqkv)
    wqkv_t = jnp.transpose(wqkv_p.reshape(3 * c_pad, c_pad)).astype(compute_dtype)

    bqkv = raw["b_qkv"].reshape(3, num_heads, hd).astype(jnp.float32)
    bqkv_p = jnp.zeros((3, num_heads, hd_pad), jnp.float32)
    bqkv_p = bqkv_p.at[:, :, :hd].set(bqkv).reshape(1, 3 * c_pad)

    # Output projection: y = o @ W^T; pad input rows (head, d) and output cols.
    wproj_t = jnp.transpose(raw["w_proj"]).astype(jnp.float32)      # (in, out)
    wproj_t = wproj_t.reshape(num_heads, hd, dim)
    wproj_p = jnp.zeros((num_heads, hd_pad, c_pad), jnp.float32)
    wproj_p = wproj_p.at[:, :hd, :dim].set(wproj_t).reshape(c_pad, c_pad)

    # MLP weights.
    w1_t = jnp.zeros((c_pad, hid_pad), jnp.float32)
    w1_t = w1_t.at[:dim, :hidden].set(jnp.transpose(raw["w_fc1"]).astype(jnp.float32))
    w2_t = jnp.zeros((hid_pad, c_pad), jnp.float32)
    w2_t = w2_t.at[:hidden, :dim].set(jnp.transpose(raw["w_fc2"]).astype(jnp.float32))

    return {
        "rpb": rpb,
        "g1": pad_vec(raw["g1"], c_pad), "b1": pad_vec(raw["b1"], c_pad),
        "g2": pad_vec(raw["g2"], c_pad), "b2": pad_vec(raw["b2"], c_pad),
        "wqkv_t": wqkv_t,
        "bqkv": bqkv_p,
        "wproj_t": wproj_p.astype(compute_dtype),
        "bproj": pad_vec(raw["b_proj"], c_pad),
        "w1_t": w1_t.astype(compute_dtype),
        "bb1": pad_vec(raw["b_fc1"], hid_pad),
        "w2_t": w2_t.astype(compute_dtype),
        "bb2": pad_vec(raw["b_fc2"], c_pad),
    }


# ----------------------------------------------------------------------------
# Pure-JAX reference mirroring the PyTorch module (f32, HIGHEST precision)
# ----------------------------------------------------------------------------
def _layer_norm_ref(x, g, b):
    mu = jnp.mean(x, -1, keepdims=True)
    var = jnp.mean(jnp.square(x - mu), -1, keepdims=True)
    return (x - mu) / jnp.sqrt(var + LN_EPS) * g + b


def swin_block_reference(x, raw, kp, *, window_size, shift_size, num_heads):
    hp_prec = lax.Precision.HIGHEST
    b, d, h, w, c = x.shape
    ws, ss = get_window_size((d, h, w), window_size, shift_size)
    head_dim = c // num_heads
    scale = head_dim ** (-0.5)
    shortcut = x

    xn = _layer_norm_ref(x, raw["g1"], raw["b1"])
    pad_d = (-d) % ws[0]; pad_h = (-h) % ws[1]; pad_w = (-w) % ws[2]
    xp = jnp.pad(xn, ((0, 0), (0, pad_d), (0, pad_h), (0, pad_w), (0, 0)))
    dp, hpp, wp = d + pad_d, h + pad_h, w + pad_w
    nw = (dp // ws[0]) * (hpp // ws[1]) * (wp // ws[2])
    n = ws[0] * ws[1] * ws[2]
    if any(s > 0 for s in ss):
        xp = jnp.roll(xp, (-ss[0], -ss[1], -ss[2]), (1, 2, 3))
        mask = jnp.asarray(compute_attn_mask(dp, hpp, wp, ws, ss))
    else:
        mask = None
    xw = window_partition(xp, ws)
    b_ = xw.shape[0]
    qkv = jnp.einsum("bnc,oc->bno", xw, raw["w_qkv"],
                     precision=hp_prec) + raw["b_qkv"]
    qkv = qkv.reshape(b_, n, 3, num_heads, head_dim).transpose((2, 0, 3, 1, 4))
    q, k, v = qkv[0] * scale, qkv[1], qkv[2]
    attn = jnp.einsum("bhnd,bhmd->bhnm", q, k, precision=hp_prec)
    attn = attn + kp["rpb"][:, :n, :n][None]
    if mask is not None:
        attn = attn.reshape(b_ // nw, nw, num_heads, n, n) + mask[None, :, None]
        attn = attn.reshape(b_, num_heads, n, n)
    attn = jax.nn.softmax(attn, axis=-1)
    o = jnp.einsum("bhnm,bhmd->bhnd", attn, v, precision=hp_prec)
    o = o.transpose((0, 2, 1, 3)).reshape(b_, n, c)
    o = jnp.einsum("bnc,oc->bno", o, raw["w_proj"],
                   precision=hp_prec) + raw["b_proj"]
    shifted = window_reverse(o, ws, b, dp, hpp, wp)
    if any(s > 0 for s in ss):
        shifted = jnp.roll(shifted, (ss[0], ss[1], ss[2]), (1, 2, 3))
    part1 = shifted[:, :d, :h, :w, :]

    x1 = shortcut + part1
    xn2 = _layer_norm_ref(x1, raw["g2"], raw["b2"])
    hid = jnp.einsum("bdhwc,oc->bdhwo", xn2, raw["w_fc1"],
                     precision=hp_prec) + raw["b_fc1"]
    hid = _gelu_exact(hid)
    y = jnp.einsum("bdhwc,oc->bdhwo", hid, raw["w_fc2"],
                   precision=hp_prec) + raw["b_fc2"]
    return x1 + y


# ----------------------------------------------------------------------------
def _run_case(key, shape, dim, num_heads, window_size, shift_size,
              mlp_ratio, tol):
    b, d, h, w = shape
    k_x, k_p = jax.random.split(key)
    x = jax.random.normal(k_x, (b, d, h, w, dim), jnp.float32)
    raw = init_params(k_p, dim, num_heads, window_size, mlp_ratio)
    kp = pack_kernel_params(raw, window_size, num_heads, dim,
                            int(dim * mlp_ratio))            # one-time packing
    fwd = jax.jit(functools.partial(swin_block_forward,
                                    window_size=window_size,
                                    shift_size=shift_size,
                                    num_heads=num_heads))
    y = fwd(x, kp)
    jax.block_until_ready(y)
    assert y.shape == x.shape
    y_ref = swin_block_reference(x, raw, kp, window_size=window_size,
                                 shift_size=shift_size, num_heads=num_heads)
    max_err = float(jnp.max(jnp.abs(y - y_ref)))
    assert max_err < tol, f"mismatch vs reference, max abs err={max_err}"


if __name__ == "__main__":
    key = jax.random.PRNGKey(0)
    dim = 32
    num_heads = 4
    window_size = (2, 4, 4)
    mlp_ratio = 4.0
    tol = 4e-2  # bf16 MXU operands vs f32 HIGHEST-precision reference

    k1, k2, k3 = jax.random.split(key, 3)
    # Shifted window (mask path, no spatial padding).
    _run_case(k1, (2, 4, 8, 8), dim, num_heads, window_size, (1, 2, 2),
              mlp_ratio, tol)
    # No shift, no padding (mask-free / valid-free fast path).
    _run_case(k2, (2, 4, 8, 8), dim, num_heads, window_size, (0, 0, 0),
              mlp_ratio, tol)
    # Shifted + non-divisible spatial dims (mask + padded-token validity path).
    _run_case(k3, (1, 3, 6, 6), dim, num_heads, window_size, (1, 2, 2),
              mlp_ratio, tol)

    print("KERNEL_OK")
</pallas_src>

<mosaic_0001>
module attributes {stable_mosaic.version = 11 : i64} {
  func.func @window_attention_kernel(%arg0: i32, %arg1: i32, %arg2: memref<2x32x128xf32, #tpu.memory_space<vmem>>, %arg3: memref<2x32x32xf32, #tpu.memory_space<vmem>>, %arg4: memref<4x32x32xf32, #tpu.memory_space<vmem>>, %arg5: memref<1x128xf32, #tpu.memory_space<vmem>>, %arg6: memref<1x128xf32, #tpu.memory_space<vmem>>, %arg7: memref<128x384xbf16, #tpu.memory_space<vmem>>, %arg8: memref<1x384xf32, #tpu.memory_space<vmem>>, %arg9: memref<128x128xbf16, #tpu.memory_space<vmem>>, %arg10: memref<1x128xf32, #tpu.memory_space<vmem>>, %arg11: memref<2x32x128xf32, #tpu.memory_space<vmem>>, %arg12: memref<2x32x128xf32, #tpu.memory_space<vmem>>) attributes {dimension_semantics = [#tpu.dimension_semantics<parallel>, #tpu.dimension_semantics<parallel>], iteration_bounds = array<i64: 2, 4>, scalar_prefetch = 0 : i64, scratch_operands = 1 : i64, tpu.core_type = #tpu.core_type<tc>, window_params = [{transform_indices = @transform_0, window_bounds = array<i64: 2, 32, 128>}, {transform_indices = @transform_1, window_bounds = array<i64: 2, 32, 32>}, {pipeline_mode = #tpu.pipeline_mode<synchronous>, transform_indices = @transform_2, window_bounds = array<i64: 4, 32, 32>}, {pipeline_mode = #tpu.pipeline_mode<synchronous>, transform_indices = @transform_3, window_bounds = array<i64: 1, 128>}, {pipeline_mode = #tpu.pipeline_mode<synchronous>, transform_indices = @transform_4, window_bounds = array<i64: 1, 128>}, {pipeline_mode = #tpu.pipeline_mode<synchronous>, transform_indices = @transform_5, window_bounds = array<i64: 128, 384>}, {pipeline_mode = #tpu.pipeline_mode<synchronous>, transform_indices = @transform_6, window_bounds = array<i64: 1, 384>}, {pipeline_mode = #tpu.pipeline_mode<synchronous>, transform_indices = @transform_7, window_bounds = array<i64: 128, 128>}, {pipeline_mode = #tpu.pipeline_mode<synchronous>, transform_indices = @transform_8, window_bounds = array<i64: 1, 128>}, {transform_indices = @transform_9, window_bounds = array<i64: 2, 32, 128>}]} {
    %c0 = arith.constant 0 : index
    %c0_0 = arith.constant 0 : index
    %c0_1 = arith.constant 0 : index
    %0 = vector.load %arg2[%c0, %c0_0, %c0_1] : memref<2x32x128xf32, #tpu.memory_space<vmem>>, vector<2x32x128xf32>
    %cst = arith.constant dense<0.000000e+00> : vector<2x32xf32>
    %1 = vector.multi_reduction <add>, %0, %cst [2] : vector<2x32x128xf32> to vector<2x32xf32>
    %2 = vector.shape_cast %1 : vector<2x32xf32> to vector<2x32x1xf32>
    %cst_2 = arith.constant 3.125000e-02 : f32
    %3 = vector.broadcast %cst_2 : f32 to vector<2x32x1xf32>
    %4 = arith.mulf %2, %3 : vector<2x32x1xf32>
    %5 = arith.mulf %0, %0 : vector<2x32x128xf32>
    %cst_3 = arith.constant dense<0.000000e+00> : vector<2x32xf32>
    %6 = vector.multi_reduction <add>, %5, %cst_3 [2] : vector<2x32x128xf32> to vector<2x32xf32>
    %7 = vector.shape_cast %6 : vector<2x32xf32> to vector<2x32x1xf32>
    %cst_4 = arith.constant 3.125000e-02 : f32
    %8 = vector.broadcast %cst_4 : f32 to vector<2x32x1xf32>
    %9 = arith.mulf %7, %8 : vector<2x32x1xf32>
    %10 = arith.mulf %4, %4 : vector<2x32x1xf32>
    %11 = arith.subf %9, %10 : vector<2x32x1xf32>
    %12 = vector.broadcast %4 : vector<2x32x1xf32> to vector<2x32x128xf32>
    %13 = arith.subf %0, %12 : vector<2x32x128xf32>
    %cst_5 = arith.constant 9.99999974E-6 : f32
    %14 = vector.broadcast %cst_5 : f32 to vector<2x32x1xf32>
    %15 = arith.addf %11, %14 : vector<2x32x1xf32>
    %16 = math.rsqrt %15 : vector<2x32x1xf32>
    %17 = vector.broadcast %16 : vector<2x32x1xf32> to vector<2x32x128xf32>
    %18 = arith.mulf %13, %17 : vector<2x32x128xf32>
    %c0_6 = arith.constant 0 : index
    %c0_7 = arith.constant 0 : index
    %19 = vector.load %arg5[%c0_6, %c0_7] : memref<1x128xf32, #tpu.memory_space<vmem>>, vector<1x128xf32>
    %20 = vector.shape_cast %19 : vector<1x128xf32> to vector<1x1x128xf32>
    %21 = vector.broadcast %20 : vector<1x1x128xf32> to vector<2x32x128xf32>
    %22 = arith.mulf %18, %21 : vector<2x32x128xf32>
    %c0_8 = arith.constant 0 : index
    %c0_9 = arith.constant 0 : index
    %23 = vector.load %arg6[%c0_8, %c0_9] : memref<1x128xf32, #tpu.memory_space<vmem>>, vector<1x128xf32>
    %24 = vector.shape_cast %23 : vector<1x128xf32> to vector<1x1x128xf32>
    %25 = vector.broadcast %24 : vector<1x1x128xf32> to vector<2x32x128xf32>
    %26 = arith.addf %22, %25 : vector<2x32x128xf32>
    %27 = vector.shape_cast %26 : vector<2x32x128xf32> to vector<64x128xf32>
    %28 = arith.truncf %27 : vector<64x128xf32> to vector<64x128xbf16>
    %c0_10 = arith.constant 0 : index
    %c0_11 = arith.constant 0 : index
    %29 = vector.load %arg7[%c0_10, %c0_11] : memref<128x384xbf16, #tpu.memory_space<vmem>>, vector<128x384xbf16>
    %cst_12 = arith.constant dense<0.000000e+00> : vector<64x384xf32>
    %30 = tpu.matmul %28, %29, %cst_12 {dimension_numbers = #tpu.dot_dimension_numbers<[1], [0], [0], [1], [0, 0, 1, 1], [], []>} : vector<64x128xbf16>, vector<128x384xbf16>, vector<64x384xf32> -> vector<64x384xf32>
    %c0_13 = arith.constant 0 : index
    %c0_14 = arith.constant 0 : index
    %31 = vector.load %arg8[%c0_13, %c0_14] : memref<1x384xf32, #tpu.memory_space<vmem>>, vector<1x384xf32>
    %32 = vector.broadcast %31 : vector<1x384xf32> to vector<64x384xf32>
    %33 = arith.addf %30, %32 : vector<64x384xf32>
    %34 = vector.extract_strided_slice %33 {offsets = [0, 0], sizes = [64, 128], strides = [1, 1]} : vector<64x384xf32> to vector<64x128xf32>
    %cst_15 = arith.constant 0.353553385 : f32
    %35 = vector.broadcast %cst_15 : f32 to vector<64x128xf32>
    %36 = arith.mulf %34, %35 : vector<64x128xf32>
    %37 = vector.shape_cast %36 : vector<64x128xf32> to vector<2x32x128xf32>
    %38 = arith.truncf %37 : vector<2x32x128xf32> to vector<2x32x128xbf16>
    %39 = vector.extract_strided_slice %33 {offsets = [0, 128], sizes = [64, 128], strides = [1, 1]} : vector<64x384xf32> to vector<64x128xf32>
    %40 = vector.shape_cast %39 : vector<64x128xf32> to vector<2x32x128xf32>
    %41 = arith.truncf %40 : vector<2x32x128xf32> to vector<2x32x128xbf16>
    %42 = vector.extract_strided_slice %33 {offsets = [0, 256], sizes = [64, 128], strides = [1, 1]} : vector<64x384xf32> to vector<64x128xf32>
    %43 = vector.shape_cast %42 : vector<64x128xf32> to vector<2x32x128xf32>
    %44 = arith.truncf %43 : vector<2x32x128xf32> to vector<2x32x128xbf16>
    %c0_16 = arith.constant 0 : index
    %c0_17 = arith.constant 0 : index
    %c0_18 = arith.constant 0 : index
    %45 = vector.load %arg4[%c0_16, %c0_17, %c0_18] : memref<4x32x32xf32, #tpu.memory_space<vmem>>, vector<4x32x32xf32>
    %c0_19 = arith.constant 0 : index
    %c0_20 = arith.constant 0 : index
    %c0_21 = arith.constant 0 : index
    %46 = vector.load %arg3[%c0_19, %c0_20, %c0_21] : memref<2x32x32xf32, #tpu.memory_space<vmem>>, vector<2x32x32xf32>
    %47 = vector.extract_strided_slice %38 {offsets = [0, 0, 0], sizes = [2, 32, 32], strides = [1, 1, 1]} : vector<2x32x128xbf16> to vector<2x32x32xbf16>
    %48 = vector.extract_strided_slice %41 {offsets = [0, 0, 0], sizes = [2, 32, 32], strides = [1, 1, 1]} : vector<2x32x128xbf16> to vector<2x32x32xbf16>
    %49 = vector.extract_strided_slice %44 {offsets = [0, 0, 0], sizes = [2, 32, 32], strides = [1, 1, 1]} : vector<2x32x128xbf16> to vector<2x32x32xbf16>
    "tpu.trace_start"() <{level = 10 : i32, message = "wnd,wmd->wnm"}> : () -> ()
    %cst_22 = arith.constant dense<0.000000e+00> : vector<2x32x32xf32>
    %50 = tpu.matmul %47, %48, %cst_22 {dimension_numbers = #tpu.dot_dimension_numbers<[2], [2], [1], [1], [0, 0, 0, 1, 1, 1], [0], [0]>} : vector<2x32x32xbf16>, vector<2x32x32xbf16>, vector<2x32x32xf32> -> vector<2x32x32xf32>
    "tpu.trace_stop"() : () -> ()
    %51 = vector.extract_strided_slice %45 {offsets = [0, 0, 0], sizes = [1, 32, 32], strides = [1, 1, 1]} : vector<4x32x32xf32> to vector<1x32x32xf32>
    %52 = vector.shape_cast %51 : vector<1x32x32xf32> to vector<32x32xf32>
    %53 = vector.shape_cast %52 : vector<32x32xf32> to vector<1x32x32xf32>
    %54 = vector.broadcast %53 : vector<1x32x32xf32> to vector<2x32x32xf32>
    %55 = arith.addf %50, %54 : vector<2x32x32xf32>
    %56 = arith.addf %55, %46 : vector<2x32x32xf32>
    %cst_23 = arith.constant dense<0xFF800000> : vector<2x32xf32>
    %57 = vector.multi_reduction <maximumf>, %56, %cst_23 [2] : vector<2x32x32xf32> to vector<2x32xf32>
    %58 = vector.shape_cast %57 : vector<2x32xf32> to vector<2x32x1xf32>
    %59 = vector.broadcast %58 : vector<2x32x1xf32> to vector<2x32x32xf32>
    %60 = arith.subf %56, %59 : vector<2x32x32xf32>
    %61 = math.exp %60 : vector<2x32x32xf32>
    %cst_24 = arith.constant dense<0.000000e+00> : vector<2x32xf32>
    %62 = vector.multi_reduction <add>, %61, %cst_24 [2] : vector<2x32x32xf32> to vector<2x32xf32>
    %63 = vector.shape_cast %62 : vector<2x32xf32> to vector<2x32x1xf32>
    %64 = tpu.reciprocal %63 {approx = true} : vector<2x32x1xf32> -> vector<2x32x1xf32>
    %65 = vector.broadcast %64 : vector<2x32x1xf32> to vector<2x32x32xf32>
    %66 = arith.mulf %61, %65 : vector<2x32x32xf32>
    %67 = arith.truncf %66 : vector<2x32x32xf32> to vector<2x32x32xbf16>
    "tpu.trace_start"() <{level = 10 : i32, message = "wnm,wmd->wnd"}> : () -> ()
    %cst_25 = arith.constant dense<0.000000e+00> : vector<2x32x32xf32>
    %68 = tpu.matmul %67, %49, %cst_25 {dimension_numbers = #tpu.dot_dimension_numbers<[2], [1], [1], [2], [0, 0, 0, 1, 1, 2], [0], [0]>} : vector<2x32x32xbf16>, vector<2x32x32xbf16>, vector<2x32x32xf32> -> vector<2x32x32xf32>
    "tpu.trace_stop"() : () -> ()
    %c0_26 = arith.constant 0 : index
    %c0_27 = arith.constant 0 : index
    %c0_28 = arith.constant 0 : index
    %69 = vector.load %arg12[%c0_26, %c0_27, %c0_28] : memref<2x32x128xf32, #tpu.memory_space<vmem>>, vector<2x32x32xf32>
    tpu.vector_store %arg12[%c0_26, %c0_27, %c0_28], %68 {strides = array<i32>} : memref<2x32x128xf32, #tpu.memory_space<vmem>>, vector<2x32x32xf32>,
    %70 = vector.extract_strided_slice %38 {offsets = [0, 0, 32], sizes = [2, 32, 32], strides = [1, 1, 1]} : vector<2x32x128xbf16> to vector<2x32x32xbf16>
    %71 = vector.extract_strided_slice %41 {offsets = [0, 0, 32], sizes = [2, 32, 32], strides = [1, 1, 1]} : vector<2x32x128xbf16> to vector<2x32x32xbf16>
    %72 = vector.extract_strided_slice %44 {offsets = [0, 0, 32], sizes = [2, 32, 32], strides = [1, 1, 1]} : vector<2x32x128xbf16> to vector<2x32x32xbf16>
    "tpu.trace_start"() <{level = 10 : i32, message = "wnd,wmd->wnm"}> : () -> ()
    %cst_29 = arith.constant dense<0.000000e+00> : vector<2x32x32xf32>
    %73 = tpu.matmul %70, %71, %cst_29 {dimension_numbers = #tpu.dot_dimension_numbers<[2], [2], [1], [1], [0, 0, 0, 1, 1, 1], [0], [0]>} : vector<2x32x32xbf16>, vector<2x32x32xbf16>, vector<2x32x32xf32> -> vector<2x32x32xf32>
    "tpu.trace_stop"() : () -> ()
    %74 = vector.extract_strided_slice %45 {offsets = [1, 0, 0], sizes = [1, 32, 32], strides = [1, 1, 1]} : vector<4x32x32xf32> to vector<1x32x32xf32>
    %75 = vector.shape_cast %74 : vector<1x32x32xf32> to vector<32x32xf32>
    %76 = vector.shape_cast %75 : vector<32x32xf32> to vector<1x32x32xf32>
    %77 = vector.broadcast %76 : vector<1x32x32xf32> to vector<2x32x32xf32>
    %78 = arith.addf %73, %77 : vector<2x32x32xf32>
    %79 = arith.addf %78, %46 : vector<2x32x32xf32>
    %cst_30 = arith.constant dense<0xFF800000> : vector<2x32xf32>
    %80 = vector.multi_reduction <maximumf>, %79, %cst_30 [2] : vector<2x32x32xf32> to vector<2x32xf32>
    %81 = vector.shape_cast %80 : vector<2x32xf32> to vector<2x32x1xf32>
    %82 = vector.broadcast %81 : vector<2x32x1xf32> to vector<2x32x32xf32>
    %83 = arith.subf %79, %82 : vector<2x32x32xf32>
    %84 = math.exp %83 : vector<2x32x32xf32>
    %cst_31 = arith.constant dense<0.000000e+00> : vector<2x32xf32>
    %85 = vector.multi_reduction <add>, %84, %cst_31 [2] : vector<2x32x32xf32> to vector<2x32xf32>
    %86 = vector.shape_cast %85 : vector<2x32xf32> to vector<2x32x1xf32>
    %87 = tpu.reciprocal %86 {approx = true} : vector<2x32x1xf32> -> vector<2x32x1xf32>
    %88 = vector.broadcast %87 : vector<2x32x1xf32> to vector<2x32x32xf32>
    %89 = arith.mulf %84, %88 : vector<2x32x32xf32>
    %90 = arith.truncf %89 : vector<2x32x32xf32> to vector<2x32x32xbf16>
    "tpu.trace_start"() <{level = 10 : i32, message = "wnm,wmd->wnd"}> : () -> ()
    %cst_32 = arith.constant dense<0.000000e+00> : vector<2x32x32xf32>
    %91 = tpu.matmul %90, %72, %cst_32 {dimension_numbers = #tpu.dot_dimension_numbers<[2], [1], [1], [2], [0, 0, 0, 1, 1, 2], [0], [0]>} : vector<2x32x32xbf16>, vector<2x32x32xbf16>, vector<2x32x32xf32> -> vector<2x32x32xf32>
    "tpu.trace_stop"() : () -> ()
    %c0_33 = arith.constant 0 : index
    %c0_34 = arith.constant 0 : index
    %c32 = arith.constant 32 : index
    %92 = vector.load %arg12[%c0_33, %c0_34, %c32] : memref<2x32x128xf32, #tpu.memory_space<vmem>>, vector<2x32x32xf32>
    tpu.vector_store %arg12[%c0_33, %c0_34, %c32], %91 {strides = array<i32>} : memref<2x32x128xf32, #tpu.memory_space<vmem>>, vector<2x32x32xf32>,
    %93 = vector.extract_strided_slice %38 {offsets = [0, 0, 64], sizes = [2, 32, 32], strides = [1, 1, 1]} : vector<2x32x128xbf16> to vector<2x32x32xbf16>
    %94 = vector.extract_strided_slice %41 {offsets = [0, 0, 64], sizes = [2, 32, 32], strides = [1, 1, 1]} : vector<2x32x128xbf16> to vector<2x32x32xbf16>
    %95 = vector.extract_strided_slice %44 {offsets = [0, 0, 64], sizes = [2, 32, 32], strides = [1, 1, 1]} : vector<2x32x128xbf16> to vector<2x32x32xbf16>
    "tpu.trace_start"() <{level = 10 : i32, message = "wnd,wmd->wnm"}> : () -> ()
    %cst_35 = arith.constant dense<0.000000e+00> : vector<2x32x32xf32>
    %96 = tpu.matmul %93, %94, %cst_35 {dimension_numbers = #tpu.dot_dimension_numbers<[2], [2], [1], [1], [0, 0, 0, 1, 1, 1], [0], [0]>} : vector<2x32x32xbf16>, vector<2x32x32xbf16>, vector<2x32x32xf32> -> vector<2x32x32xf32>
    "tpu.trace_stop"() : () -> ()
    %97 = vector.extract_strided_slice %45 {offsets = [2, 0, 0], sizes = [1, 32, 32], strides = [1, 1, 1]} : vector<4x32x32xf32> to vector<1x32x32xf32>
    %98 = vector.shape_cast %97 : vector<1x32x32xf32> to vector<32x32xf32>
    %99 = vector.shape_cast %98 : vector<32x32xf32> to vector<1x32x32xf32>
    %100 = vector.broadcast %99 : vector<1x32x32xf32> to vector<2x32x32xf32>
    %101 = arith.addf %96, %100 : vector<2x32x32xf32>
    %102 = arith.addf %101, %46 : vector<2x32x32xf32>
    %cst_36 = arith.constant dense<0xFF800000> : vector<2x32xf32>
    %103 = vector.multi_reduction <maximumf>, %102, %cst_36 [2] : vector<2x32x32xf32> to vector<2x32xf32>
    %104 = vector.shape_cast %103 : vector<2x32xf32> to vector<2x32x1xf32>
    %105 = vector.broadcast %104 : vector<2x32x1xf32> to vector<2x32x32xf32>
    %106 = arith.subf %102, %105 : vector<2x32x32xf32>
    %107 = math.exp %106 : vector<2x32x32xf32>
    %cst_37 = arith.constant dense<0.000000e+00> : vector<2x32xf32>
    %108 = vector.multi_reduction <add>, %107, %cst_37 [2] : vector<2x32x32xf32> to vector<2x32xf32>
    %109 = vector.shape_cast %108 : vector<2x32xf32> to vector<2x32x1xf32>
    %110 = tpu.reciprocal %109 {approx = true} : vector<2x32x1xf32> -> vector<2x32x1xf32>
    %111 = vector.broadcast %110 : vector<2x32x1xf32> to vector<2x32x32xf32>
    %112 = arith.mulf %107, %111 : vector<2x32x32xf32>
    %113 = arith.truncf %112 : vector<2x32x32xf32> to vector<2x32x32xbf16>
    "tpu.trace_start"() <{level = 10 : i32, message = "wnm,wmd->wnd"}> : () -> ()
    %cst_38 = arith.constant dense<0.000000e+00> : vector<2x32x32xf32>
    %114 = tpu.matmul %113, %95, %cst_38 {dimension_numbers = #tpu.dot_dimension_numbers<[2], [1], [1], [2], [0, 0, 0, 1, 1, 2], [0], [0]>} : vector<2x32x32xbf16>, vector<2x32x32xbf16>, vector<2x32x32xf32> -> vector<2x32x32xf32>
    "tpu.trace_stop"() : () -> ()
    %c0_39 = arith.constant 0 : index
    %c0_40 = arith.constant 0 : index
    %c64 = arith.constant 64 : index
    %115 = vector.load %arg12[%c0_39, %c0_40, %c64] : memref<2x32x128xf32, #tpu.memory_space<vmem>>, vector<2x32x32xf32>
    tpu.vector_store %arg12[%c0_39, %c0_40, %c64], %114 {strides = array<i32>} : memref<2x32x128xf32, #tpu.memory_space<vmem>>, vector<2x32x32xf32>,
    %116 = vector.extract_strided_slice %38 {offsets = [0, 0, 96], sizes = [2, 32, 32], strides = [1, 1, 1]} : vector<2x32x128xbf16> to vector<2x32x32xbf16>
    %117 = vector.extract_strided_slice %41 {offsets = [0, 0, 96], sizes = [2, 32, 32], strides = [1, 1, 1]} : vector<2x32x128xbf16> to vector<2x32x32xbf16>
    %118 = vector.extract_strided_slice %44 {offsets = [0, 0, 96], sizes = [2, 32, 32], strides = [1, 1, 1]} : vector<2x32x128xbf16> to vector<2x32x32xbf16>
    "tpu.trace_start"() <{level = 10 : i32, message = "wnd,wmd->wnm"}> : () -> ()
    %cst_41 = arith.constant dense<0.000000e+00> : vector<2x32x32xf32>
    %119 = tpu.matmul %116, %117, %cst_41 {dimension_numbers = #tpu.dot_dimension_numbers<[2], [2], [1], [1], [0, 0, 0, 1, 1, 1], [0], [0]>} : vector<2x32x32xbf16>, vector<2x32x32xbf16>, vector<2x32x32xf32> -> vector<2x32x32xf32>
    "tpu.trace_stop"() : () -> ()
    %120 = vector.extract_strided_slice %45 {offsets = [3, 0, 0], sizes = [1, 32, 32], strides = [1, 1, 1]} : vector<4x32x32xf32> to vector<1x32x32xf32>
    %121 = vector.shape_cast %120 : vector<1x32x32xf32> to vector<32x32xf32>
    %122 = vector.shape_cast %121 : vector<32x32xf32> to vector<1x32x32xf32>
    %123 = vector.broadcast %122 : vector<1x32x32xf32> to vector<2x32x32xf32>
    %124 = arith.addf %119, %123 : vector<2x32x32xf32>
    %125 = arith.addf %124, %46 : vector<2x32x32xf32>
    %cst_42 = arith.constant dense<0xFF800000> : vector<2x32xf32>
    %126 = vector.multi_reduction <maximumf>, %125, %cst_42 [2] : vector<2x32x32xf32> to vector<2x32xf32>
    %127 = vector.shape_cast %126 : vector<2x32xf32> to vector<2x32x1xf32>
    %128 = vector.broadcast %127 : vector<2x32x1xf32> to vector<2x32x32xf32>
    %129 = arith.subf %125, %128 : vector<2x32x32xf32>
    %130 = math.exp %129 : vector<2x32x32xf32>
    %cst_43 = arith.constant dense<0.000000e+00> : vector<2x32xf32>
    %131 = vector.multi_reduction <add>, %130, %cst_43 [2] : vector<2x32x32xf32> to vector<2x32xf32>
    %132 = vector.shape_cast %131 : vector<2x32xf32> to vector<2x32x1xf32>
    %133 = tpu.reciprocal %132 {approx = true} : vector<2x32x1xf32> -> vector<2x32x1xf32>
    %134 = vector.broadcast %133 : vector<2x32x1xf32> to vector<2x32x32xf32>
    %135 = arith.mulf %130, %134 : vector<2x32x32xf32>
    %136 = arith.truncf %135 : vector<2x32x32xf32> to vector<2x32x32xbf16>
    "tpu.trace_start"() <{level = 10 : i32, message = "wnm,wmd->wnd"}> : () -> ()
    %cst_44 = arith.constant dense<0.000000e+00> : vector<2x32x32xf32>
    %137 = tpu.matmul %136, %118, %cst_44 {dimension_numbers = #tpu.dot_dimension_numbers<[2], [1], [1], [2], [0, 0, 0, 1, 1, 2], [0], [0]>} : vector<2x32x32xbf16>, vector<2x32x32xbf16>, vector<2x32x32xf32> -> vector<2x32x32xf32>
    "tpu.trace_stop"() : () -> ()
    %c0_45 = arith.constant 0 : index
    %c0_46 = arith.constant 0 : index
    %c96 = arith.constant 96 : index
    %138 = vector.load %arg12[%c0_45, %c0_46, %c96] : memref<2x32x128xf32, #tpu.memory_space<vmem>>, vector<2x32x32xf32>
    tpu.vector_store %arg12[%c0_45, %c0_46, %c96], %137 {strides = array<i32>} : memref<2x32x128xf32, #tpu.memory_space<vmem>>, vector<2x32x32xf32>,
    %c0_47 = arith.constant 0 : index
    %c0_48 = arith.constant 0 : index
    %c0_49 = arith.constant 0 : index
    %139 = vector.load %arg12[%c0_47, %c0_48, %c0_49] : memref<2x32x128xf32, #tpu.memory_space<vmem>>, vector<2x32x128xf32>
    %140 = vector.shape_cast %139 : vector<2x32x128xf32> to vector<64x128xf32>
    %141 = arith.truncf %140 : vector<64x128xf32> to vector<64x128xbf16>
    %c0_50 = arith.constant 0 : index
    %c0_51 = arith.constant 0 : index
    %142 = vector.load %arg9[%c0_50, %c0_51] : memref<128x128xbf16, #tpu.memory_space<vmem>>, vector<128x128xbf16>
    %cst_52 = arith.constant dense<0.000000e+00> : vector<64x128xf32>
    %143 = tpu.matmul %141, %142, %cst_52 {dimension_numbers = #tpu.dot_dimension_numbers<[1], [0], [0], [1], [0, 0, 1, 1], [], []>} : vector<64x128xbf16>, vector<128x128xbf16>, vector<64x128xf32> -> vector<64x128xf32>
    %c0_53 = arith.constant 0 : index
    %c0_54 = arith.constant 0 : index
    %144 = vector.load %arg10[%c0_53, %c0_54] : memref<1x128xf32, #tpu.memory_space<vmem>>, vector<1x128xf32>
    %145 = vector.broadcast %144 : vector<1x128xf32> to vector<64x128xf32>
    %146 = arith.addf %143, %145 : vector<64x128xf32>
    %147 = vector.shape_cast %146 : vector<64x128xf32> to vector<2x32x128xf32>
    %c0_55 = arith.constant 0 : index
    %c0_56 = arith.constant 0 : index
    %c0_57 = arith.constant 0 : index
    %148 = vector.load %arg11[%c0_55, %c0_56, %c0_57] : memref<2x32x128xf32, #tpu.memory_space<vmem>>, vector<2x32x128xf32>
    tpu.vector_store %arg11[%c0_55, %c0_56, %c0_57], %147 {strides = array<i32>} : memref<2x32x128xf32, #tpu.memory_space<vmem>>, vector<2x32x128xf32>,
    return
  }
  func.func @transform_0(%arg0: i32, %arg1: i32) -> (i32, i32, i32) {
    %c4_i32 = arith.constant 4 : i32
    %0 = arith.muli %arg0, %c4_i32 : i32
    %1 = arith.addi %0, %arg1 : i32
    %c0_i32 = arith.constant 0 : i32
    %c0_i32_0 = arith.constant 0 : i32
    %c0_i32_1 = arith.constant 0 : i32
    return %1, %c0_i32, %c0_i32_0 : i32, i32, i32
  }
  func.func @transform_1(%arg0: i32, %arg1: i32) -> (i32, i32, i32) {
    %c0_i32 = arith.constant 0 : i32
    %c0_i32_0 = arith.constant 0 : i32
    %c0_i32_1 = arith.constant 0 : i32
    return %arg1, %c0_i32, %c0_i32_0 : i32, i32, i32
  }
  func.func @transform_2(%arg0: i32, %arg1: i32) -> (i32, i32, i32) {
    %c0_i32 = arith.constant 0 : i32
    %c0_i32_0 = arith.constant 0 : i32
    %c0_i32_1 = arith.constant 0 : i32
    %c0_i32_2 = arith.constant 0 : i32
    return %c0_i32, %c0_i32_0, %c0_i32_1 : i32, i32, i32
  }
  func.func @transform_3(%arg0: i32, %arg1: i32) -> (i32, i32) {
    %c0_i32 = arith.constant 0 : i32
    %c0_i32_0 = arith.constant 0 : i32
    %c0_i32_1 = arith.constant 0 : i32
    return %c0_i32, %c0_i32_0 : i32, i32
  }
  func.func @transform_4(%arg0: i32, %arg1: i32) -> (i32, i32) {
    %c0_i32 = arith.constant 0 : i32
    %c0_i32_0 = arith.constant 0 : i32
    %c0_i32_1 = arith.constant 0 : i32
    return %c0_i32, %c0_i32_0 : i32, i32
  }
  func.func @transform_5(%arg0: i32, %arg1: i32) -> (i32, i32) {
    %c0_i32 = arith.constant 0 : i32
    %c0_i32_0 = arith.constant 0 : i32
    %c0_i32_1 = arith.constant 0 : i32
    return %c0_i32, %c0_i32_0 : i32, i32
  }
  func.func @transform_6(%arg0: i32, %arg1: i32) -> (i32, i32) {
    %c0_i32 = arith.constant 0 : i32
    %c0_i32_0 = arith.constant 0 : i32
    %c0_i32_1 = arith.constant 0 : i32
    return %c0_i32, %c0_i32_0 : i32, i32
  }
  func.func @transform_7(%arg0: i32, %arg1: i32) -> (i32, i32) {
    %c0_i32 = arith.constant 0 : i32
    %c0_i32_0 = arith.constant 0 : i32
    %c0_i32_1 = arith.constant 0 : i32
    return %c0_i32, %c0_i32_0 : i32, i32
  }
  func.func @transform_8(%arg0: i32, %arg1: i32) -> (i32, i32) {
    %c0_i32 = arith.constant 0 : i32
    %c0_i32_0 = arith.constant 0 : i32
    %c0_i32_1 = arith.constant 0 : i32
    return %c0_i32, %c0_i32_0 : i32, i32
  }
  func.func @transform_9(%arg0: i32, %arg1: i32) -> (i32, i32, i32) {
    %c4_i32 = arith.constant 4 : i32
    %0 = arith.muli %arg0, %c4_i32 : i32
    %1 = arith.addi %0, %arg1 : i32
    %c0_i32 = arith.constant 0 : i32
    %c0_i32_0 = arith.constant 0 : i32
    %c0_i32_1 = arith.constant 0 : i32
    return %1, %c0_i32, %c0_i32_0 : i32, i32, i32
  }
}

module attributes {stable_mosaic.version = 11 : i64} {
  func.func @fused_mlp_block_kernel(%arg0: i32, %arg1: memref<128x128xf32, #tpu.memory_space<vmem>>, %arg2: memref<128x128xf32, #tpu.memory_space<vmem>>, %arg3: memref<1x128xf32, #tpu.memory_space<vmem>>, %arg4: memref<1x128xf32, #tpu.memory_space<vmem>>, %arg5: memref<128x128xbf16, #tpu.memory_space<vmem>>, %arg6: memref<1x128xf32, #tpu.memory_space<vmem>>, %arg7: memref<128x128xbf16, #tpu.memory_space<vmem>>, %arg8: memref<1x128xf32, #tpu.memory_space<vmem>>, %arg9: memref<128x128xf32, #tpu.memory_space<vmem>>) attributes {dimension_semantics = [#tpu.dimension_semantics<parallel>], iteration_bounds = array<i64: 4>, scalar_prefetch = 0 : i64, scratch_operands = 0 : i64, tpu.core_type = #tpu.core_type<tc>, window_params = [{transform_indices = @transform_0, window_bounds = array<i64: 128, 128>}, {transform_indices = @transform_1, window_bounds = array<i64: 128, 128>}, {pipeline_mode = #tpu.pipeline_mode<synchronous>, transform_indices = @transform_2, window_bounds = array<i64: 1, 128>}, {pipeline_mode = #tpu.pipeline_mode<synchronous>, transform_indices = @transform_3, window_bounds = array<i64: 1, 128>}, {pipeline_mode = #tpu.pipeline_mode<synchronous>, transform_indices = @transform_4, window_bounds = array<i64: 128, 128>}, {pipeline_mode = #tpu.pipeline_mode<synchronous>, transform_indices = @transform_5, window_bounds = array<i64: 1, 128>}, {pipeline_mode = #tpu.pipeline_mode<synchronous>, transform_indices = @transform_6, window_bounds = array<i64: 128, 128>}, {pipeline_mode = #tpu.pipeline_mode<synchronous>, transform_indices = @transform_7, window_bounds = array<i64: 1, 128>}, {transform_indices = @transform_8, window_bounds = array<i64: 128, 128>}]} {
    %c0 = arith.constant 0 : index
    %c0_0 = arith.constant 0 : index
    %0 = vector.load %arg1[%c0, %c0_0] : memref<128x128xf32, #tpu.memory_space<vmem>>, vector<128x128xf32>
    %c0_1 = arith.constant 0 : index
    %c0_2 = arith.constant 0 : index
    %1 = vector.load %arg2[%c0_1, %c0_2] : memref<128x128xf32, #tpu.memory_space<vmem>>, vector<128x128xf32>
    %2 = arith.addf %0, %1 : vector<128x128xf32>
    %cst = arith.constant dense<0.000000e+00> : vector<128xf32>
    %3 = vector.multi_reduction <add>, %2, %cst [1] : vector<128x128xf32> to vector<128xf32>
    %4 = vector.shape_cast %3 : vector<128xf32> to vector<128x1xf32>
    %cst_3 = arith.constant 3.125000e-02 : f32
    %5 = vector.broadcast %cst_3 : f32 to vector<128x1xf32>
    %6 = arith.mulf %4, %5 : vector<128x1xf32>
    %7 = arith.mulf %2, %2 : vector<128x128xf32>
    %cst_4 = arith.constant dense<0.000000e+00> : vector<128xf32>
    %8 = vector.multi_reduction <add>, %7, %cst_4 [1] : vector<128x128xf32> to vector<128xf32>
    %9 = vector.shape_cast %8 : vector<128xf32> to vector<128x1xf32>
    %cst_5 = arith.constant 3.125000e-02 : f32
    %10 = vector.broadcast %cst_5 : f32 to vector<128x1xf32>
    %11 = arith.mulf %9, %10 : vector<128x1xf32>
    %12 = arith.mulf %6, %6 : vector<128x1xf32>
    %13 = arith.subf %11, %12 : vector<128x1xf32>
    %14 = vector.broadcast %6 : vector<128x1xf32> to vector<128x128xf32>
    %15 = arith.subf %2, %14 : vector<128x128xf32>
    %cst_6 = arith.constant 9.99999974E-6 : f32
    %16 = vector.broadcast %cst_6 : f32 to vector<128x1xf32>
    %17 = arith.addf %13, %16 : vector<128x1xf32>
    %18 = math.rsqrt %17 : vector<128x1xf32>
    %19 = vector.broadcast %18 : vector<128x1xf32> to vector<128x128xf32>
    %20 = arith.mulf %15, %19 : vector<128x128xf32>
    %c0_7 = arith.constant 0 : index
    %c0_8 = arith.constant 0 : index
    %21 = vector.load %arg3[%c0_7, %c0_8] : memref<1x128xf32, #tpu.memory_space<vmem>>, vector<1x128xf32>
    %22 = vector.broadcast %21 : vector<1x128xf32> to vector<128x128xf32>
    %23 = arith.mulf %20, %22 : vector<128x128xf32>
    %c0_9 = arith.constant 0 : index
    %c0_10 = arith.constant 0 : index
    %24 = vector.load %arg4[%c0_9, %c0_10] : memref<1x128xf32, #tpu.memory_space<vmem>>, vector<1x128xf32>
    %25 = vector.broadcast %24 : vector<1x128xf32> to vector<128x128xf32>
    %26 = arith.addf %23, %25 : vector<128x128xf32>
    %27 = arith.truncf %26 : vector<128x128xf32> to vector<128x128xbf16>
    %c0_11 = arith.constant 0 : index
    %c0_12 = arith.constant 0 : index
    %28 = vector.load %arg5[%c0_11, %c0_12] : memref<128x128xbf16, #tpu.memory_space<vmem>>, vector<128x128xbf16>
    %cst_13 = arith.constant dense<0.000000e+00> : vector<128x128xf32>
    %29 = tpu.matmul %27, %28, %cst_13 {dimension_numbers = #tpu.dot_dimension_numbers<[1], [0], [0], [1], [0, 0, 1, 1], [], []>} : vector<128x128xbf16>, vector<128x128xbf16>, vector<128x128xf32> -> vector<128x128xf32>
    %c0_14 = arith.constant 0 : index
    %c0_15 = arith.constant 0 : index
    %30 = vector.load %arg6[%c0_14, %c0_15] : memref<1x128xf32, #tpu.memory_space<vmem>>, vector<1x128xf32>
    %31 = vector.broadcast %30 : vector<1x128xf32> to vector<128x128xf32>
    %32 = arith.addf %29, %31 : vector<128x128xf32>
    %cst_16 = arith.constant 5.000000e-01 : f32
    %33 = vector.broadcast %cst_16 : f32 to vector<128x128xf32>
    %34 = arith.mulf %33, %32 : vector<128x128xf32>
    %cst_17 = arith.constant 0.707106769 : f32
    %35 = vector.broadcast %cst_17 : f32 to vector<128x128xf32>
    %36 = arith.mulf %32, %35 : vector<128x128xf32>
    %37 = math.erf %36 : vector<128x128xf32>
    %cst_18 = arith.constant 1.000000e+00 : f32
    %38 = vector.broadcast %cst_18 : f32 to vector<128x128xf32>
    %39 = arith.addf %38, %37 : vector<128x128xf32>
    %40 = arith.mulf %34, %39 : vector<128x128xf32>
    %41 = arith.truncf %40 : vector<128x128xf32> to vector<128x128xbf16>
    %c0_19 = arith.constant 0 : index
    %c0_20 = arith.constant 0 : index
    %42 = vector.load %arg7[%c0_19, %c0_20] : memref<128x128xbf16, #tpu.memory_space<vmem>>, vector<128x128xbf16>
    %cst_21 = arith.constant dense<0.000000e+00> : vector<128x128xf32>
    %43 = tpu.matmul %41, %42, %cst_21 {dimension_numbers = #tpu.dot_dimension_numbers<[1], [0], [0], [1], [0, 0, 1, 1], [], []>} : vector<128x128xbf16>, vector<128x128xbf16>, vector<128x128xf32> -> vector<128x128xf32>
    %c0_22 = arith.constant 0 : index
    %c0_23 = arith.constant 0 : index
    %44 = vector.load %arg8[%c0_22, %c0_23] : memref<1x128xf32, #tpu.memory_space<vmem>>, vector<1x128xf32>
    %45 = vector.broadcast %44 : vector<1x128xf32> to vector<128x128xf32>
    %46 = arith.addf %43, %45 : vector<128x128xf32>
    %47 = arith.addf %2, %46 : vector<128x128xf32>
    %c0_24 = arith.constant 0 : index
    %c0_25 = arith.constant 0 : index
    %48 = vector.load %arg9[%c0_24, %c0_25] : memref<128x128xf32, #tpu.memory_space<vmem>>, vector<128x128xf32>
    tpu.vector_store %arg9[%c0_24, %c0_25], %47 {strides = array<i32>} : memref<128x128xf32, #tpu.memory_space<vmem>>, vector<128x128xf32>,
    return
  }
  func.func @transform_0(%arg0: i32) -> (i32, i32) {
    %c0_i32 = arith.constant 0 : i32
    %c0_i32_0 = arith.constant 0 : i32
    return %arg0, %c0_i32 : i32, i32
  }
  func.func @transform_1(%arg0: i32) -> (i32, i32) {
    %c0_i32 = arith.constant 0 : i32
    %c0_i32_0 = arith.constant 0 : i32
    return %arg0, %c0_i32 : i32, i32
  }
  func.func @transform_2(%arg0: i32) -> (i32, i32) {
    %c0_i32 = arith.constant 0 : i32
    %c0_i32_0 = arith.constant 0 : i32
    %c0_i32_1 = arith.constant 0 : i32
    return %c0_i32, %c0_i32_0 : i32, i32
  }
  func.func @transform_3(%arg0: i32) -> (i32, i32) {
    %c0_i32 = arith.constant 0 : i32
    %c0_i32_0 = arith.constant 0 : i32
    %c0_i32_1 = arith.constant 0 : i32
    return %c0_i32, %c0_i32_0 : i32, i32
  }
  func.func @transform_4(%arg0: i32) -> (i32, i32) {
    %c0_i32 = arith.constant 0 : i32
    %c0_i32_0 = arith.constant 0 : i32
    %c0_i32_1 = arith.constant 0 : i32
    return %c0_i32, %c0_i32_0 : i32, i32
  }
  func.func @transform_5(%arg0: i32) -> (i32, i32) {
    %c0_i32 = arith.constant 0 : i32
    %c0_i32_0 = arith.constant 0 : i32
    %c0_i32_1 = arith.constant 0 : i32
    return %c0_i32, %c0_i32_0 : i32, i32
  }
  func.func @transform_6(%arg0: i32) -> (i32, i32) {
    %c0_i32 = arith.constant 0 : i32
    %c0_i32_0 = arith.constant 0 : i32
    %c0_i32_1 = arith.constant 0 : i32
    return %c0_i32, %c0_i32_0 : i32, i32
  }
  func.func @transform_7(%arg0: i32) -> (i32, i32) {
    %c0_i32 = arith.constant 0 : i32
    %c0_i32_0 = arith.constant 0 : i32
    %c0_i32_1 = arith.constant 0 : i32
    return %c0_i32, %c0_i32_0 : i32, i32
  }
  func.func @transform_8(%arg0: i32) -> (i32, i32) {
    %c0_i32 = arith.constant 0 : i32
    %c0_i32_0 = arith.constant 0 : i32
    return %arg0, %c0_i32 : i32, i32
  }
}

</mosaic_0001>

<llo_original>
// kernel: swin_block_forward.3
$region0: #{swin_block_forward.3}
  #allocation0 [shape = 'u32[]', space=smem, size = 0x4, offset = 0x4, fixed_abs, tag = 'smem constant byte address 0x4 - core index']
  #allocation1 [shape = 'u32[144,128]{1,0:T(1,128)}', space=vmem, size = 0x12000, scoped, tag = 'internal scratch']
  %s0 = inlined_call_operand.vmem [shape: f32[512,128], index: 0, kind: input, shape index: {}]
  %s1 = inlined_call_operand.vmem [shape: f32[512,128], index: 1, kind: input, shape index: {}]
  %s2 = inlined_call_operand.vmem [shape: f32[1,128], index: 2, kind: input, shape index: {}]
  %s3 = inlined_call_operand.vmem [shape: f32[1,128], index: 3, kind: input, shape index: {}]
  %s4 = inlined_call_operand.vmem [shape: bf16[128,128], index: 4, kind: input, shape index: {}]
  %s5 = inlined_call_operand.vmem [shape: f32[1,128], index: 5, kind: input, shape index: {}]
  %s6 = inlined_call_operand.vmem [shape: bf16[128,128], index: 6, kind: input, shape index: {}]
  %s7 = inlined_call_operand.vmem [shape: f32[1,128], index: 7, kind: input, shape index: {}]
  %s8 = inlined_call_operand.hbm [shape: f32[512,128], index: 8, kind: output, shape index: {}]
  %s9 = sld [smem:[#allocation0]]
  $region65: #{swin_block_forward.3} parent=0
    _
  %s11 = ssub.s32 1, %s9
  %s12 = scalar_select 0, %s11, %s9
  $region1: #{swin_block_forward.3} parent=0
    #allocation2 [shape = 'u8[131072]{0}', space=vmem, size = 0x20000, scoped, tag = 'output window, operand 0']
    #allocation3 [shape = 's32[2]{0}', space=sflag, size = 0x8, scoped, tag = 'scoped memory for swin_block_forward.3']
    %13 = vsyncpa [#allocation3], 0
    %s14 = scalar_lea.sflag [#allocation3], 1
    %15 = vsyncpa %s14, 0
    loop: start=0, step=1, limit=6
    $region2: #{swin_block_forward.3} parent=1 // loop_pre_header
      _
    $region3: #{swin_block_forward.3} parent=1 // loop_header
      %s17 = sphi 0, %s21
      %p18 = scmp.ge.s32.totalorder %s17, 6
      %s27 = sphi 0, %s29
      %s30 = sphi 0, %s27
      %s31 = sphi 0, %s30
      %s47 = sphi 0, %s31
      %s53 = sphi 0, %s55
      %s56 = sphi 0, %s53
      %s57 = sphi 0, %s56
      %s73 = sphi 0, %s57
      %s77 = sphi 0, %s77
      %s79 = sphi 0, %s77
      %s80 = sphi 0, %s79
      %s94 = sphi 0, %s80
      %s98 = sphi 0, %s98
      %s100 = sphi 0, %s98
      %s101 = sphi 0, %s100
      %s115 = sphi 0, %s101
      %s119 = sphi 0, %s119
      %s121 = sphi 0, %s119
      %s122 = sphi 0, %s121
      %s136 = sphi 0, %s122
      %s140 = sphi 0, %s140
      %s142 = sphi 0, %s140
      %s143 = sphi 0, %s142
      %s157 = sphi 0, %s143
      %s161 = sphi 0, %s161
      %s163 = sphi 0, %s161
      %s164 = sphi 0, %s163
      %s178 = sphi 0, %s164
      %s182 = sphi 0, %s182
      %s184 = sphi 0, %s182
      %s185 = sphi 0, %s184
      %s199 = sphi 0, %s185
      %s205 = sphi 0, %s207
      %s208 = sphi 0, %s205
      %s209 = sphi 0, %s208
      %s225 = sphi 0, %s209
    $region4: #{swin_block_forward.3} parent=1 // loop_header_branch
      %20 = sbr.rel (%p18) target = $region8
    $region5: #{swin_block_forward.3} parent=1 // loop_body
      %s22 = ssub.s32 %s17, 1
      %s23 = ssub.s32 %s17, 2
      %s24 = sadd.s32 %s17, 1
      %s25 = ssub.s32 %s17, %s24
      %p26 = scmp.eq.s32.totalorder %s25, 0
      %s28 = sadd.s32 %s27, 1
      %s29 = scalar_select %p26, %s27, %s28
      %p32 = pneg %p26
      %p33 = scmp.eq.s32.totalorder %s17, 3
      %p34 = por %p32, %p33
      %p35 = scmp.ne.s32.totalorder %s27, %s30
      %p36 = scmp.eq.s32.totalorder %s17, 0
      %p37 = por %p35, %p36
      %p38 = scmp.ne.s32.totalorder %s27, %s30
      %p39 = scmp.eq.s32.totalorder %s22, 3
      %p40 = por %p38, %p39
      %p41 = scmp.ne.s32.totalorder %s30, %s31
      %p42 = scmp.eq.s32.totalorder %s22, 0
      %p43 = por %p41, %p42
      %p44 = scmp.ne.s32.totalorder %s30, %s31
      %p45 = scmp.eq.s32.totalorder %s23, 3
      %p46 = por %p44, %p45
      %p48 = scmp.ne.s32.totalorder %s31, %s47
      %p49 = scmp.eq.s32.totalorder %s23, 0
      %p50 = por %p48, %p49
      %s51 = ssub.s32 %s17, %s24
      %p52 = scmp.eq.s32.totalorder %s51, 0
      %s54 = sadd.s32 %s53, 1
      %s55 = scalar_select %p52, %s53, %s54
      %p58 = pneg %p52
      %p59 = scmp.eq.s32.totalorder %s17, 3
      %p60 = por %p58, %p59
      %p61 = scmp.ne.s32.totalorder %s53, %s56
      %p62 = scmp.eq.s32.totalorder %s17, 0
      %p63 = por %p61, %p62
      %p64 = scmp.ne.s32.totalorder %s53, %s56
      %p65 = scmp.eq.s32.totalorder %s22, 3
      %p66 = por %p64, %p65
      %p67 = scmp.ne.s32.totalorder %s56, %s57
      %p68 = scmp.eq.s32.totalorder %s22, 0
      %p69 = por %p67, %p68
      %p70 = scmp.ne.s32.totalorder %s56, %s57
      %p71 = scmp.eq.s32.totalorder %s23, 3
      %p72 = por %p70, %p71
      %p74 = scmp.ne.s32.totalorder %s57, %s73
      %p75 = scmp.eq.s32.totalorder %s23, 0
      %p76 = por %p74, %p75
      %s78 = sadd.s32 %s77, 1
      %p81 = scmp.eq.s32.totalorder %s17, 3
      %p82 = scmp.ne.s32.totalorder %s77, %s79
      %p83 = scmp.eq.s32.totalorder %s17, 0
      %p84 = por %p82, %p83
      %p85 = scmp.ne.s32.totalorder %s77, %s79
      %p86 = scmp.eq.s32.totalorder %s22, 3
      %p87 = por %p85, %p86
      %p88 = scmp.ne.s32.totalorder %s79, %s80
      %p89 = scmp.eq.s32.totalorder %s22, 0
      %p90 = por %p88, %p89
      %p91 = scmp.ne.s32.totalorder %s79, %s80
      %p92 = scmp.eq.s32.totalorder %s23, 3
      %p93 = por %p91, %p92
      %p95 = scmp.ne.s32.totalorder %s80, %s94
      %p96 = scmp.eq.s32.totalorder %s23, 0
      %p97 = por %p95, %p96
      %s99 = sadd.s32 %s98, 1
      %p102 = scmp.eq.s32.totalorder %s17, 3
      %p103 = scmp.ne.s32.totalorder %s98, %s100
      %p104 = scmp.eq.s32.totalorder %s17, 0
      %p105 = por %p103, %p104
      %p106 = scmp.ne.s32.totalorder %s98, %s100
      %p107 = scmp.eq.s32.totalorder %s22, 3
      %p108 = por %p106, %p107
      %p109 = scmp.ne.s32.totalorder %s100, %s101
      %p110 = scmp.eq.s32.totalorder %s22, 0
      %p111 = por %p109, %p110
      %p112 = scmp.ne.s32.totalorder %s100, %s101
      %p113 = scmp.eq.s32.totalorder %s23, 3
      %p114 = por %p112, %p113
      %p116 = scmp.ne.s32.totalorder %s101, %s115
      %p117 = scmp.eq.s32.totalorder %s23, 0
      %p118 = por %p116, %p117
      %s120 = sadd.s32 %s119, 1
      %p123 = scmp.eq.s32.totalorder %s17, 3
      %p124 = scmp.ne.s32.totalorder %s119, %s121
      %p125 = scmp.eq.s32.totalorder %s17, 0
      %p126 = por %p124, %p125
      %p127 = scmp.ne.s32.totalorder %s119, %s121
      %p128 = scmp.eq.s32.totalorder %s22, 3
      %p129 = por %p127, %p128
      %p130 = scmp.ne.s32.totalorder %s121, %s122
      %p131 = scmp.eq.s32.totalorder %s22, 0
      %p132 = por %p130, %p131
      %p133 = scmp.ne.s32.totalorder %s121, %s122
      %p134 = scmp.eq.s32.totalorder %s23, 3
      %p135 = por %p133, %p134
      %p137 = scmp.ne.s32.totalorder %s122, %s136
      %p138 = scmp.eq.s32.totalorder %s23, 0
      %p139 = por %p137, %p138
      %s141 = sadd.s32 %s140, 1
      %p144 = scmp.eq.s32.totalorder %s17, 3
      %p145 = scmp.ne.s32.totalorder %s140, %s142
      %p146 = scmp.eq.s32.totalorder %s17, 0
      %p147 = por %p145, %p146
      %p148 = scmp.ne.s32.totalorder %s140, %s142
      %p149 = scmp.eq.s32.totalorder %s22, 3
      %p150 = por %p148, %p149
      %p151 = scmp.ne.s32.totalorder %s142, %s143
      %p152 = scmp.eq.s32.totalorder %s22, 0
      %p153 = por %p151, %p152
      %p154 = scmp.ne.s32.totalorder %s142, %s143
      %p155 = scmp.eq.s32.totalorder %s23, 3
      %p156 = por %p154, %p155
      %p158 = scmp.ne.s32.totalorder %s143, %s157
      %p159 = scmp.eq.s32.totalorder %s23, 0
      %p160 = por %p158, %p159
      %s162 = sadd.s32 %s161, 1
      %p165 = scmp.eq.s32.totalorder %s17, 3
      %p166 = scmp.ne.s32.totalorder %s161, %s163
      %p167 = scmp.eq.s32.totalorder %s17, 0
      %p168 = por %p166, %p167
      %p169 = scmp.ne.s32.totalorder %s161, %s163
      %p170 = scmp.eq.s32.totalorder %s22, 3
      %p171 = por %p169, %p170
      %p172 = scmp.ne.s32.totalorder %s163, %s164
      %p173 = scmp.eq.s32.totalorder %s22, 0
      %p174 = por %p172, %p173
      %p175 = scmp.ne.s32.totalorder %s163, %s164
      %p176 = scmp.eq.s32.totalorder %s23, 3
      %p177 = por %p175, %p176
      %p179 = scmp.ne.s32.totalorder %s164, %s178
      %p180 = scmp.eq.s32.totalorder %s23, 0
      %p181 = por %p179, %p180
      %s183 = sadd.s32 %s182, 1
      %p186 = scmp.eq.s32.totalorder %s17, 3
      %p187 = scmp.ne.s32.totalorder %s182, %s184
      %p188 = scmp.eq.s32.totalorder %s17, 0
      %p189 = por %p187, %p188
      %p190 = scmp.ne.s32.totalorder %s182, %s184
      %p191 = scmp.eq.s32.totalorder %s22, 3
      %p192 = por %p190, %p191
      %p193 = scmp.ne.s32.totalorder %s184, %s185
      %p194 = scmp.eq.s32.totalorder %s22, 0
      %p195 = por %p193, %p194
      %p196 = scmp.ne.s32.totalorder %s184, %s185
      %p197 = scmp.eq.s32.totalorder %s23, 3
      %p198 = por %p196, %p197
      %p200 = scmp.ne.s32.totalorder %s185, %s199
      %p201 = scmp.eq.s32.totalorder %s23, 0
      %p202 = por %p200, %p201
      %s203 = ssub.s32 %s17, %s24
      %p204 = scmp.eq.s32.totalorder %s203, 0
      %s206 = sadd.s32 %s205, 1
      %s207 = scalar_select %p204, %s205, %s206
      %p210 = pneg %p204
      %p211 = scmp.eq.s32.totalorder %s17, 3
      %p212 = por %p210, %p211
      %p213 = scmp.ne.s32.totalorder %s205, %s208
      %p214 = scmp.eq.s32.totalorder %s17, 0
      %p215 = por %p213, %p214
      %p216 = scmp.ne.s32.totalorder %s205, %s208
      %p217 = scmp.eq.s32.totalorder %s22, 3
      %p218 = por %p216, %p217
      %p219 = scmp.ne.s32.totalorder %s208, %s209
      %p220 = scmp.eq.s32.totalorder %s22, 0
      %p221 = por %p219, %p220
      %p222 = scmp.ne.s32.totalorder %s208, %s209
      %p223 = scmp.eq.s32.totalorder %s23, 3
      %p224 = por %p222, %p223
      %p226 = scmp.ne.s32.totalorder %s209, %s225
      %p227 = scmp.eq.s32.totalorder %s23, 0
      %p228 = por %p226, %p227
      %p229 = scmp.le.s32.totalorder 1, %s17
      %p230 = scmp.lt.s32.totalorder %s17, 5
      %p231 = pnand %p229, %p230
      %p232 = pneg %p231
      // Predicated region
      $region9: #{swin_block_forward.3} parent=5 // pred_check
        _
      $region10: #{swin_block_forward.3} parent=5 // pred_check_branch
        %234 = sbr.rel (%p231) target = $region12
      $region11: #{swin_block_forward.3} parent=5 // pred_region
        %s235 = ssub.s32 %s17, 1
        // Predicated region
        $region13: #{swin_block_forward.3} parent=11 // pred_check
          %p236 = pneg %p90
        $region14: #{swin_block_forward.3} parent=11 // pred_check_branch
          %238 = sbr.rel (%p236) target = $region16
        $region15: #{swin_block_forward.3} parent=11 // pred_region
          _
        $region16: #{swin_block_forward.3} parent=11 // pred_fallthru
          _
        // Predicated region
        $region17: #{swin_block_forward.3} parent=11 // pred_check
          %p239 = pneg %p111
        $region18: #{swin_block_forward.3} parent=11 // pred_check_branch
          %241 = sbr.rel (%p239) target = $region20
        $region19: #{swin_block_forward.3} parent=11 // pred_region
          _
        $region20: #{swin_block_forward.3} parent=11 // pred_fallthru
          _
        // Predicated region
        $region21: #{swin_block_forward.3} parent=11 // pred_check
          %p242 = pneg %p132
        $region22: #{swin_block_forward.3} parent=11 // pred_check_branch
          %244 = sbr.rel (%p242) target = $region24
        $region23: #{swin_block_forward.3} parent=11 // pred_region
          _
        $region24: #{swin_block_forward.3} parent=11 // pred_fallthru
          _
        // Predicated region
        $region25: #{swin_block_forward.3} parent=11 // pred_check
          %p245 = pneg %p153
        $region26: #{swin_block_forward.3} parent=11 // pred_check_branch
          %247 = sbr.rel (%p245) target = $region28
        $region27: #{swin_block_forward.3} parent=11 // pred_region
          _
        $region28: #{swin_block_forward.3} parent=11 // pred_fallthru
          _
        // Predicated region
        $region29: #{swin_block_forward.3} parent=11 // pred_check
          %p248 = pneg %p174
        $region30: #{swin_block_forward.3} parent=11 // pred_check_branch
          %250 = sbr.rel (%p248) target = $region32
        $region31: #{swin_block_forward.3} parent=11 // pred_region
          _
        $region32: #{swin_block_forward.3} parent=11 // pred_fallthru
          _
        // Predicated region
        $region33: #{swin_block_forward.3} parent=11 // pred_check
          %p251 = pneg %p195
        $region34: #{swin_block_forward.3} parent=11 // pred_check_branch
          %253 = sbr.rel (%p251) target = $region36
        $region35: #{swin_block_forward.3} parent=11 // pred_region
          _
        $region36: #{swin_block_forward.3} parent=11 // pred_fallthru
          _
      $region12: #{swin_block_forward.3} parent=5 // pred_fallthru
        _
      %p254 = scmp.lt.s32.totalorder %s17, 4
      // Predicated region
      $region37: #{swin_block_forward.3} parent=5 // pred_check
        %p255 = pneg %p254
      $region38: #{swin_block_forward.3} parent=5 // pred_check_branch
        %257 = sbr.rel (%p255) target = $region40
      $region39: #{swin_block_forward.3} parent=5 // pred_region
        // Predicated region
        $region41: #{swin_block_forward.3} parent=39 // pred_check
          %p258 = pneg %p37
        $region42: #{swin_block_forward.3} parent=39 // pred_check_branch
          %260 = sbr.rel (%p258) target = $region44
        $region43: #{swin_block_forward.3} parent=39 // pred_region
          %s261 = smul.u32 16, %s17
          %p262 = scmp.lt.s32.totalorder %s261, 63
          %s263 = scalar_select %p262, %s261, 63
          %s264 = smul.addr %s263, 8
          %s265 = scalar_lea.vmem %s0, %s264
          %s266 = smul.u32 16, %s17
        $region44: #{swin_block_forward.3} parent=39 // pred_fallthru
          _
        // Predicated region
        $region45: #{swin_block_forward.3} parent=39 // pred_check
          %p267 = pneg %p63
        $region46: #{swin_block_forward.3} parent=39 // pred_check_branch
          %269 = sbr.rel (%p267) target = $region48
        $region47: #{swin_block_forward.3} parent=39 // pred_region
          %s270 = smul.u32 16, %s17
          %p271 = scmp.lt.s32.totalorder %s270, 63
          %s272 = scalar_select %p271, %s270, 63
          %s273 = smul.addr %s272, 8
          %s274 = scalar_lea.vmem %s1, %s273
          %s275 = smul.u32 16, %s17
        $region48: #{swin_block_forward.3} parent=39 // pred_fallthru
          _
      $region40: #{swin_block_forward.3} parent=5 // pred_fallthru
        _
      %p276 = scmp.le.s32.totalorder 1, %s17
      %p277 = scmp.lt.s32.totalorder %s17, 5
      %p278 = pnand %p276, %p277
      %p279 = pneg %p278
      // Predicated region
      $region49: #{swin_block_forward.3} parent=5 // pred_check
        _
      $region50: #{swin_block_forward.3} parent=5 // pred_check_branch
        %281 = sbr.rel (%p278) target = $region52
      $region51: #{swin_block_forward.3} parent=5 // pred_region
        %s282 = ssub.s32 %s17, 1
        %s283 = smul.u32 16, %s22
        %p284 = scmp.lt.s32.totalorder %s283, 63
        %s285 = scalar_select %p284, %s283, 63
        %s286 = smul.addr %s285, 8
        %s287 = scalar_lea.vmem %s0, %s286
        %p288 = pneg %p43
        %p289 = pneg %p40
        %s290 = smul.u32 16, %s22
        %p291 = scmp.lt.s32.totalorder %s290, 63
        %s292 = scalar_select %p291, %s290, 63
        %s293 = smul.addr %s292, 8
        %s294 = scalar_lea.vmem %s1, %s293
        %p295 = pneg %p69
        %p296 = pneg %p66
        %p297 = pneg %p90
        %p298 = pneg %p87
        %p299 = pneg %p111
        %p300 = pneg %p108
        %p301 = pneg %p132
        %p302 = pneg %p129
        %p303 = pneg %p153
        %p304 = pneg %p150
        %p305 = pneg %p174
        %p306 = pneg %p171
        %p307 = pneg %p195
        %p308 = pneg %p192
        %p309 = pneg %p221
        %p310 = pneg %p218
        %s311 = sand.u32 %s208, 1
        %s312 = scalar_lea.sflag [#allocation3], %s311
        %s313 = sand.u32 %s208, 1
        %s314 = smul.addr %s313, 128
        %s315 = scalar_lea.vmem [#allocation2], %s314
        %s316 = smul.u32 16, %s22
        %p317 = scmp.lt.s32.totalorder %s316, 63
        %s318 = scalar_select %p317, %s316, 63
        %s319 = smul.addr %s318, 8
        %s320 = scalar_lea.vmem %s0, %s319
        %s321 = smul.u32 16, %s22
        %s322 = smul.u32 16, %s22
        %p323 = scmp.lt.s32.totalorder %s322, 63
        %s324 = scalar_select %p323, %s322, 63
        %s325 = smul.addr %s324, 8
        %s326 = scalar_lea.vmem %s1, %s325
        %s327 = smul.u32 16, %s22
        %s328 = smul.u32 16, %s22
        %v330 = vld [vmem:[%s320] sm:$0xff]
        %v331 = vld [vmem:[%s320 + $0x8] sm:$0xff]
        %v332 = vld [vmem:[%s320 + $0x10] sm:$0xff]
        %v333 = vld [vmem:[%s320 + $0x18] sm:$0xff]
        %v334 = vld [vmem:[%s320 + $0x20] sm:$0xff]
        %v335 = vld [vmem:[%s320 + $0x28] sm:$0xff]
        %v336 = vld [vmem:[%s320 + $0x30] sm:$0xff]
        %v337 = vld [vmem:[%s320 + $0x38] sm:$0xff]
        %v338 = vld [vmem:[%s320 + $0x40] sm:$0xff]
        %v339 = vld [vmem:[%s320 + $0x48] sm:$0xff]
        %v340 = vld [vmem:[%s320 + $0x50] sm:$0xff]
        %v341 = vld [vmem:[%s320 + $0x58] sm:$0xff]
        %v342 = vld [vmem:[%s320 + $0x60] sm:$0xff]
        %v343 = vld [vmem:[%s320 + $0x68] sm:$0xff]
        %v344 = vld [vmem:[%s320 + $0x70] sm:$0xff]
        %v345 = vld [vmem:[%s320 + $0x78] sm:$0xff]
        %v346 = vld [vmem:[%s326] sm:$0xff]
        %v347 = vld [vmem:[%s326 + $0x8] sm:$0xff]
        %v348 = vld [vmem:[%s326 + $0x10] sm:$0xff]
        %v349 = vld [vmem:[%s326 + $0x18] sm:$0xff]
        %v350 = vld [vmem:[%s326 + $0x20] sm:$0xff]
        %v351 = vld [vmem:[%s326 + $0x28] sm:$0xff]
        %v352 = vld [vmem:[%s326 + $0x30] sm:$0xff]
        %v353 = vld [vmem:[%s326 + $0x38] sm:$0xff]
        %v354 = vld [vmem:[%s326 + $0x40] sm:$0xff]
        %v355 = vld [vmem:[%s326 + $0x48] sm:$0xff]
        %v356 = vld [vmem:[%s326 + $0x50] sm:$0xff]
        %v357 = vld [vmem:[%s326 + $0x58] sm:$0xff]
        %v358 = vld [vmem:[%s326 + $0x60] sm:$0xff]
        %v359 = vld [vmem:[%s326 + $0x68] sm:$0xff]
        %v360 = vld [vmem:[%s326 + $0x70] sm:$0xff]
        %v361 = vld [vmem:[%s326 + $0x78] sm:$0xff]
        %v362 = vadd.f32 %v330, %v346
        %v363 = vadd.f32 %v331, %v347
        %v364 = vadd.f32 %v332, %v348
        %v365 = vadd.f32 %v333, %v349
        %v366 = vadd.f32 %v334, %v350
        %v367 = vadd.f32 %v335, %v351
        %v368 = vadd.f32 %v336, %v352
        %v369 = vadd.f32 %v337, %v353
        %v370 = vadd.f32 %v338, %v354
        %v371 = vadd.f32 %v339, %v355
        %v372 = vadd.f32 %v340, %v356
        %v373 = vadd.f32 %v341, %v357
        %v374 = vadd.f32 %v342, %v358
        %v375 = vadd.f32 %v343, %v359
        %v376 = vadd.f32 %v344, %v360
        %v377 = vadd.f32 %v345, %v361
        %378 = vadd.xlane.f32.xlu0 %v362
        %v379 = vpop.xlane.xlu0 %378
        %380 = vadd.xlane.f32.xlu0 %v363
        %v381 = vpop.xlane.xlu0 %380
        %382 = vadd.xlane.f32.xlu0 %v364
        %v383 = vpop.xlane.xlu0 %382
        %384 = vadd.xlane.f32.xlu0 %v365
        %v385 = vpop.xlane.xlu0 %384
        %386 = vadd.xlane.f32.xlu0 %v366
        %v387 = vpop.xlane.xlu0 %386
        %388 = vadd.xlane.f32.xlu0 %v367
        %v389 = vpop.xlane.xlu0 %388
        %390 = vadd.xlane.f32.xlu0 %v368
        %v391 = vpop.xlane.xlu0 %390
        %392 = vadd.xlane.f32.xlu0 %v369
        %v393 = vpop.xlane.xlu0 %392
        %394 = vadd.xlane.f32.xlu0 %v370
        %v395 = vpop.xlane.xlu0 %394
        %396 = vadd.xlane.f32.xlu0 %v371
        %v397 = vpop.xlane.xlu0 %396
        %398 = vadd.xlane.f32.xlu0 %v372
        %v399 = vpop.xlane.xlu0 %398
        %400 = vadd.xlane.f32.xlu0 %v373
        %v401 = vpop.xlane.xlu0 %400
        %402 = vadd.xlane.f32.xlu0 %v374
        %v403 = vpop.xlane.xlu0 %402
        %404 = vadd.xlane.f32.xlu0 %v375
        %v405 = vpop.xlane.xlu0 %404
        %406 = vadd.xlane.f32.xlu0 %v376
        %v407 = vpop.xlane.xlu0 %406
        %408 = vadd.xlane.f32.xlu0 %v377
        %v409 = vpop.xlane.xlu0 %408
        %v410 = vmul.f32 %v379, 0.03125
        %v411 = vmul.f32 %v381, 0.03125
        %v412 = vmul.f32 %v383, 0.03125
        %v413 = vmul.f32 %v385, 0.03125
        %v414 = vmul.f32 %v387, 0.03125
        %v415 = vmul.f32 %v389, 0.03125
        %v416 = vmul.f32 %v391, 0.03125
        %v417 = vmul.f32 %v393, 0.03125
        %v418 = vmul.f32 %v395, 0.03125
        %v419 = vmul.f32 %v397, 0.03125
        %v420 = vmul.f32 %v399, 0.03125
        %v421 = vmul.f32 %v401, 0.03125
        %v422 = vmul.f32 %v403, 0.03125
        %v423 = vmul.f32 %v405, 0.03125
        %v424 = vmul.f32 %v407, 0.03125
        %v425 = vmul.f32 %v409, 0.03125
        %v426 = vmul.f32 %v362, %v362
        %v427 = vmul.f32 %v363, %v363
        %v428 = vmul.f32 %v364, %v364
        %v429 = vmul.f32 %v365, %v365
        %v430 = vmul.f32 %v366, %v366
        %v431 = vmul.f32 %v367, %v367
        %v432 = vmul.f32 %v368, %v368
        %v433 = vmul.f32 %v369, %v369
        %v434 = vmul.f32 %v370, %v370
        %v435 = vmul.f32 %v371, %v371
        %v436 = vmul.f32 %v372, %v372
        %v437 = vmul.f32 %v373, %v373
        %v438 = vmul.f32 %v374, %v374
        %v439 = vmul.f32 %v375, %v375
        %v440 = vmul.f32 %v376, %v376
        %v441 = vmul.f32 %v377, %v377
        %442 = vadd.xlane.f32.xlu0 %v426
        %v443 = vpop.xlane.xlu0 %442
        %444 = vadd.xlane.f32.xlu0 %v427
        %v445 = vpop.xlane.xlu0 %444
        %446 = vadd.xlane.f32.xlu0 %v428
        %v447 = vpop.xlane.xlu0 %446
        %448 = vadd.xlane.f32.xlu0 %v429
        %v449 = vpop.xlane.xlu0 %448
        %450 = vadd.xlane.f32.xlu0 %v430
        %v451 = vpop.xlane.xlu0 %450
        %452 = vadd.xlane.f32.xlu0 %v431
        %v453 = vpop.xlane.xlu0 %452
        %454 = vadd.xlane.f32.xlu0 %v432
        %v455 = vpop.xlane.xlu0 %454
        %456 = vadd.xlane.f32.xlu0 %v433
        %v457 = vpop.xlane.xlu0 %456
        %458 = vadd.xlane.f32.xlu0 %v434
        %v459 = vpop.xlane.xlu0 %458
        %460 = vadd.xlane.f32.xlu0 %v435
        %v461 = vpop.xlane.xlu0 %460
        %462 = vadd.xlane.f32.xlu0 %v436
        %v463 = vpop.xlane.xlu0 %462
        %464 = vadd.xlane.f32.xlu0 %v437
        %v465 = vpop.xlane.xlu0 %464
        %466 = vadd.xlane.f32.xlu0 %v438
        %v467 = vpop.xlane.xlu0 %466
        %468 = vadd.xlane.f32.xlu0 %v439
        %v469 = vpop.xlane.xlu0 %468
        %470 = vadd.xlane.f32.xlu0 %v440
        %v471 = vpop.xlane.xlu0 %470
        %472 = vadd.xlane.f32.xlu0 %v441
        %v473 = vpop.xlane.xlu0 %472
        %v474 = vmul.f32 %v443, 0.03125
        %v475 = vmul.f32 %v445, 0.03125
        %v476 = vmul.f32 %v447, 0.03125
        %v477 = vmul.f32 %v449, 0.03125
        %v478 = vmul.f32 %v451, 0.03125
        %v479 = vmul.f32 %v453, 0.03125
        %v480 = vmul.f32 %v455, 0.03125
        %v481 = vmul.f32 %v457, 0.03125
        %v482 = vmul.f32 %v459, 0.03125
        %v483 = vmul.f32 %v461, 0.03125
        %v484 = vmul.f32 %v463, 0.03125
        %v485 = vmul.f32 %v465, 0.03125
        %v486 = vmul.f32 %v467, 0.03125
        %v487 = vmul.f32 %v469, 0.03125
        %v488 = vmul.f32 %v471, 0.03125
        %v489 = vmul.f32 %v473, 0.03125
        %v490 = vmul.f32 %v410, %v410
        %v491 = vmul.f32 %v411, %v411
        %v492 = vmul.f32 %v412, %v412
        %v493 = vmul.f32 %v413, %v413
        %v494 = vmul.f32 %v414, %v414
        %v495 = vmul.f32 %v415, %v415
        %v496 = vmul.f32 %v416, %v416
        %v497 = vmul.f32 %v417, %v417
        %v498 = vmul.f32 %v418, %v418
        %v499 = vmul.f32 %v419, %v419
        %v500 = vmul.f32 %v420, %v420
        %v501 = vmul.f32 %v421, %v421
        %v502 = vmul.f32 %v422, %v422
        %v503 = vmul.f32 %v423, %v423
        %v504 = vmul.f32 %v424, %v424
        %v505 = vmul.f32 %v425, %v425
        %v506 = vsub.f32 %v474, %v490
        %v507 = vsub.f32 %v475, %v491
        %v508 = vsub.f32 %v476, %v492
        %v509 = vsub.f32 %v477, %v493
        %v510 = vsub.f32 %v478, %v494
        %v511 = vsub.f32 %v479, %v495
        %v512 = vsub.f32 %v480, %v496
        %v513 = vsub.f32 %v481, %v497
        %v514 = vsub.f32 %v482, %v498
        %v515 = vsub.f32 %v483, %v499
        %v516 = vsub.f32 %v484, %v500
        %v517 = vsub.f32 %v485, %v501
        %v518 = vsub.f32 %v486, %v502
        %v519 = vsub.f32 %v487, %v503
        %v520 = vsub.f32 %v488, %v504
        %v521 = vsub.f32 %v489, %v505
        %v522 = vsub.f32 %v362, %v410
        %v523 = vsub.f32 %v363, %v411
        %v524 = vsub.f32 %v364, %v412
        %v525 = vsub.f32 %v365, %v413
        %v526 = vsub.f32 %v366, %v414
        %v527 = vsub.f32 %v367, %v415
        %v528 = vsub.f32 %v368, %v416
        %v529 = vsub.f32 %v369, %v417
        %v530 = vsub.f32 %v370, %v418
        %v531 = vsub.f32 %v371, %v419
        %v532 = vsub.f32 %v372, %v420
        %v533 = vsub.f32 %v373, %v421
        %v534 = vsub.f32 %v374, %v422
        %v535 = vsub.f32 %v375, %v423
        %v536 = vsub.f32 %v376, %v424
        %v537 = vsub.f32 %v377, %v425
        %v538 = vadd.f32 %v506, 1e-05
        %v539 = vadd.f32 %v507, 1e-05
        %v540 = vadd.f32 %v508, 1e-05
        %v541 = vadd.f32 %v509, 1e-05
        %v542 = vadd.f32 %v510, 1e-05
        %v543 = vadd.f32 %v511, 1e-05
        %v544 = vadd.f32 %v512, 1e-05
        %v545 = vadd.f32 %v513, 1e-05
        %v546 = vadd.f32 %v514, 1e-05
        %v547 = vadd.f32 %v515, 1e-05
        %v548 = vadd.f32 %v516, 1e-05
        %v549 = vadd.f32 %v517, 1e-05
        %v550 = vadd.f32 %v518, 1e-05
        %v551 = vadd.f32 %v519, 1e-05
        %v552 = vadd.f32 %v520, 1e-05
        %v553 = vadd.f32 %v521, 1e-05
        %v554 = vrsqrt.pop %v538
        %v555 = vrsqrt.pop %v539
        %v556 = vrsqrt.pop %v540
        %v557 = vrsqrt.pop %v541
        %v558 = vrsqrt.pop %v542
        %v559 = vrsqrt.pop %v543
        %v560 = vrsqrt.pop %v544
        %v561 = vrsqrt.pop %v545
        %v562 = vrsqrt.pop %v546
        %v563 = vrsqrt.pop %v547
        %v564 = vrsqrt.pop %v548
        %v565 = vrsqrt.pop %v549
        %v566 = vrsqrt.pop %v550
        %v567 = vrsqrt.pop %v551
        %v568 = vrsqrt.pop %v552
        %v569 = vrsqrt.pop %v553
        %v570 = vmul.f32 %v522, %v554
        %v571 = vmul.f32 %v523, %v555
        %v572 = vmul.f32 %v524, %v556
        %v573 = vmul.f32 %v525, %v557
        %v574 = vmul.f32 %v526, %v558
        %v575 = vmul.f32 %v527, %v559
        %v576 = vmul.f32 %v528, %v560
        %v577 = vmul.f32 %v529, %v561
        %v578 = vmul.f32 %v530, %v562
        %v579 = vmul.f32 %v531, %v563
        %v580 = vmul.f32 %v532, %v564
        %v581 = vmul.f32 %v533, %v565
        %v582 = vmul.f32 %v534, %v566
        %v583 = vmul.f32 %v535, %v567
        %v584 = vmul.f32 %v536, %v568
        %v585 = vmul.f32 %v537, %v569
        %v586 = vld [vmem:[%s2] sm:$0x1]
        %v588 = vlaneseq
        %v589 = vshrl.u32 %v588, 7
        %v590 = vsub.s32 0, %v589
        %v591 = vrot.slane %v586, %v590
        %v593 = vmul.f32 %v570, %v591
        %v594 = vmul.f32 %v571, %v591
        %v595 = vmul.f32 %v572, %v591
        %v596 = vmul.f32 %v573, %v591
        %v597 = vmul.f32 %v574, %v591
        %v598 = vmul.f32 %v575, %v591
        %v599 = vmul.f32 %v576, %v591
        %v600 = vmul.f32 %v577, %v591
        %v601 = vmul.f32 %v578, %v591
        %v602 = vmul.f32 %v579, %v591
        %v603 = vmul.f32 %v580, %v591
        %v604 = vmul.f32 %v581, %v591
        %v605 = vmul.f32 %v582, %v591
        %v606 = vmul.f32 %v583, %v591
        %v607 = vmul.f32 %v584, %v591
        %v608 = vmul.f32 %v585, %v591
        %v609 = vld [vmem:[%s3] sm:$0x1]
        %v611 = vlaneseq
        %v612 = vshrl.u32 %v611, 7
        %v613 = vsub.s32 0, %v612
        %v614 = vrot.slane %v609, %v613
        %v616 = vadd.f32 %v593, %v614
        %v617 = vadd.f32 %v594, %v614
        %v618 = vadd.f32 %v595, %v614
        %v619 = vadd.f32 %v596, %v614
        %v620 = vadd.f32 %v597, %v614
        %v621 = vadd.f32 %v598, %v614
        %v622 = vadd.f32 %v599, %v614
        %v623 = vadd.f32 %v600, %v614
        %v624 = vadd.f32 %v601, %v614
        %v625 = vadd.f32 %v602, %v614
        %v626 = vadd.f32 %v603, %v614
        %v627 = vadd.f32 %v604, %v614
        %v628 = vadd.f32 %v605, %v614
        %v629 = vadd.f32 %v606, %v614
        %v630 = vadd.f32 %v607, %v614
        %v631 = vadd.f32 %v608, %v614
        %v632 = vpack.c.bf16 %v617, %v616
        %v633 = vpack.c.bf16 %v619, %v618
        %v634 = vpack.c.bf16 %v621, %v620
        %v635 = vpack.c.bf16 %v623, %v622
        %v636 = vpack.c.bf16 %v625, %v624
        %v637 = vpack.c.bf16 %v627, %v626
        %v638 = vpack.c.bf16 %v629, %v628
        %v639 = vpack.c.bf16 %v631, %v630
        %v640 = vld [vmem:[%s4] sm:$0xf]
        %v641 = vld [vmem:[%s4 + $0x4] sm:$0xf]
        %v642 = vld [vmem:[%s4 + $0x8] sm:$0xf]
        %v643 = vld [vmem:[%s4 + $0xc] sm:$0xf]
        %v644 = vld [vmem:[%s4 + $0x10] sm:$0xf]
        %v645 = vld [vmem:[%s4 + $0x14] sm:$0xf]
        %v646 = vld [vmem:[%s4 + $0x18] sm:$0xf]
        %v647 = vld [vmem:[%s4 + $0x1c] sm:$0xf]
        %v648 = vld [vmem:[%s4 + $0x20] sm:$0xf]
        %v649 = vld [vmem:[%s4 + $0x24] sm:$0xf]
        %v650 = vld [vmem:[%s4 + $0x28] sm:$0xf]
        %v651 = vld [vmem:[%s4 + $0x2c] sm:$0xf]
        %v652 = vld [vmem:[%s4 + $0x30] sm:$0xf]
        %v653 = vld [vmem:[%s4 + $0x34] sm:$0xf]
        %v654 = vld [vmem:[%s4 + $0x38] sm:$0xf]
        %v655 = vld [vmem:[%s4 + $0x3c] sm:$0xf]
        %v656 = vld [vmem:[%s5] sm:$0x1]
        %v658 = vlaneseq
        %v659 = vshrl.u32 %v658, 7
        %v660 = vsub.s32 0, %v659
        %v661 = vrot.slane %v656, %v660
        %v679 = vunpack.c.l.b16 %v640
        %v680 = vunpack.c.l.b16 %v641
        %v681 = vunpack.c.l.b16 %v642
        %v682 = vunpack.c.l.b16 %v643
        %v683 = vunpack.c.l.b16 %v644
        %v684 = vunpack.c.l.b16 %v645
        %v685 = vunpack.c.l.b16 %v646
        %v686 = vunpack.c.l.b16 %v647
        %v687 = vunpack.c.l.b16 %v648
        %v688 = vunpack.c.l.b16 %v649
        %v689 = vunpack.c.l.b16 %v650
        %v690 = vunpack.c.l.b16 %v651
        %v691 = vunpack.c.l.b16 %v652
        %v692 = vunpack.c.l.b16 %v653
        %v693 = vunpack.c.l.b16 %v654
        %v694 = vunpack.c.l.b16 %v655
        %v695 = vpack.c.b16 %v680, %v679
        %v696 = vpack.c.b16 %v682, %v681
        %v697 = vpack.c.b16 %v684, %v683
        %v698 = vpack.c.b16 %v686, %v685
        %v699 = vpack.c.b16 %v688, %v687
        %v700 = vpack.c.b16 %v690, %v689
        %v701 = vpack.c.b16 %v692, %v691
        %v702 = vpack.c.b16 %v694, %v693
        %711 = vmatprep.subr.bf16.mxu0 0
        %712 = vmatpush1.bf16.msra.mxu0 %v702
        %713 = vmatprep.subr.bf16.mxu0 0
        %714 = vmatpush1.bf16.msra.mxu0 %v701
        %715 = vmatprep.subr.bf16.mxu0 0
        %716 = vmatpush1.bf16.msra.mxu0 %v700
        %717 = vmatprep.subr.bf16.mxu0 0
        %718 = vmatpush1.bf16.msra.mxu0 %v699
        %719 = vmatprep.subr.bf16.mxu0 0
        %720 = vmatpush1.bf16.msra.mxu0 %v698
        %721 = vmatprep.subr.bf16.mxu0 0
        %722 = vmatpush1.bf16.msra.mxu0 %v697
        %723 = vmatprep.subr.bf16.mxu0 0
        %724 = vmatpush1.bf16.msra.mxu0 %v696
        %725 = vmatprep.subr.bf16.mxu0 0
        %726 = vmatpush1.bf16.msra.mxu0 %v695
        %727 = vmatprep.subr.bf16.mxu0 0
        %728 = vmatpush2.bf16.msra.mxu0 0
        %729 = vmatprep.subr.bf16.mxu0 0
        %730 = vmatpush2.bf16.msra.mxu0 0
        %731 = vmatprep.subr.bf16.mxu0 0
        %732 = vmatpush2.bf16.msra.mxu0 0
        %733 = vmatprep.subr.bf16.mxu0 0
        %734 = vmatpush2.bf16.msra.mxu0 0
        %735 = vmatprep.subr.bf16.mxu0 0
        %736 = vmatpush2.bf16.msra.mxu0 0
        %737 = vmatprep.subr.bf16.mxu0 0
        %738 = vmatpush2.bf16.msra.mxu0 0
        %739 = vmatprep.subr.bf16.mxu0 0
        %740 = vmatpush2.bf16.msra.mxu0 0
        %741 = vmatprep.subr.bf16.mxu0 0
        %742 = vmatpush2.bf16.msra.mxu0 0
        %743 = vmatprep.mubr.bf16.mxu0 0
        %744 = vmatmul.mubr.bf16.gmra.mxu0 %v632
        %v745 = vpop.f32.mrf.mxu0
        %v746 = vadd.f32 %v661, %v745
        %v747 = vpop.f32.mrf.mxu0
        %v748 = vpop.f32.mrf.mxu0
        %v749 = vadd.f32 %v661, %v748
        %v750 = vpop.f32.mrf.mxu0
        %751 = vmatprep.mubr.bf16.mxu0 0
        %752 = vmatmul.mubr.bf16.gmra.mxu0 %v633
        %v753 = vpop.f32.mrf.mxu0
        %v754 = vadd.f32 %v661, %v753
        %v755 = vpop.f32.mrf.mxu0
        %v756 = vpop.f32.mrf.mxu0
        %v757 = vadd.f32 %v661, %v756
        %v758 = vpop.f32.mrf.mxu0
        %759 = vmatprep.mubr.bf16.mxu0 0
        %760 = vmatmul.mubr.bf16.gmra.mxu0 %v634
        %v761 = vpop.f32.mrf.mxu0
        %v762 = vadd.f32 %v661, %v761
        %v763 = vpop.f32.mrf.mxu0
        %v764 = vpop.f32.mrf.mxu0
        %v765 = vadd.f32 %v661, %v764
        %v766 = vpop.f32.mrf.mxu0
        %767 = vmatprep.mubr.bf16.mxu0 0
        %768 = vmatmul.mubr.bf16.gmra.mxu0 %v635
        %v769 = vpop.f32.mrf.mxu0
        %v770 = vadd.f32 %v661, %v769
        %v771 = vpop.f32.mrf.mxu0
        %v772 = vpop.f32.mrf.mxu0
        %v773 = vadd.f32 %v661, %v772
        %v774 = vpop.f32.mrf.mxu0
        %775 = vmatprep.mubr.bf16.mxu0 0
        %776 = vmatmul.mubr.bf16.gmra.mxu0 %v636
        %v777 = vpop.f32.mrf.mxu0
        %v778 = vadd.f32 %v661, %v777
        %v779 = vpop.f32.mrf.mxu0
        %v780 = vpop.f32.mrf.mxu0
        %v781 = vadd.f32 %v661, %v780
        %v782 = vpop.f32.mrf.mxu0
        %783 = vmatprep.mubr.bf16.mxu0 0
        %784 = vmatmul.mubr.bf16.gmra.mxu0 %v637
        %v785 = vpop.f32.mrf.mxu0
        %v786 = vadd.f32 %v661, %v785
        %v787 = vpop.f32.mrf.mxu0
        %v788 = vpop.f32.mrf.mxu0
        %v789 = vadd.f32 %v661, %v788
        %v790 = vpop.f32.mrf.mxu0
        %791 = vmatprep.mubr.bf16.mxu0 0
        %792 = vmatmul.mubr.bf16.gmra.mxu0 %v638
        %v793 = vpop.f32.mrf.mxu0
        %v794 = vadd.f32 %v661, %v793
        %v795 = vpop.f32.mrf.mxu0
        %v796 = vpop.f32.mrf.mxu0
        %v797 = vadd.f32 %v661, %v796
        %v798 = vpop.f32.mrf.mxu0
        %799 = vmatprep.mubr.bf16.mxu0 0
        %800 = vmatmul.mubr.bf16.gmra.mxu0 %v639
        %v801 = vpop.f32.mrf.mxu0
        %v802 = vadd.f32 %v661, %v801
        %v803 = vpop.f32.mrf.mxu0
        %v804 = vpop.f32.mrf.mxu0
        %v805 = vadd.f32 %v661, %v804
        %v806 = vpop.f32.mrf.mxu0
        %807 = vdwg.mxu0
        %v808 = vmul.f32 %v746, 0.5
        %v809 = vmul.f32 %v749, 0.5
        %v810 = vmul.f32 %v754, 0.5
        %v811 = vmul.f32 %v757, 0.5
        %v812 = vmul.f32 %v762, 0.5
        %v813 = vmul.f32 %v765, 0.5
        %v814 = vmul.f32 %v770, 0.5
        %v815 = vmul.f32 %v773, 0.5
        %v816 = vmul.f32 %v778, 0.5
        %v817 = vmul.f32 %v781, 0.5
        %v818 = vmul.f32 %v786, 0.5
        %v819 = vmul.f32 %v789, 0.5
        %v820 = vmul.f32 %v794, 0.5
        %v821 = vmul.f32 %v797, 0.5
        %v822 = vmul.f32 %v802, 0.5
        %v823 = vmul.f32 %v805, 0.5
        %v824 = vmul.f32 %v746, 0.70710677
        %v825 = vmul.f32 %v749, 0.70710677
        %v826 = vmul.f32 %v754, 0.70710677
        %v827 = vmul.f32 %v757, 0.70710677
        %v828 = vmul.f32 %v762, 0.70710677
        %v829 = vmul.f32 %v765, 0.70710677
        %v830 = vmul.f32 %v770, 0.70710677
        %v831 = vmul.f32 %v773, 0.70710677
        %v832 = vmul.f32 %v778, 0.70710677
        %v833 = vmul.f32 %v781, 0.70710677
        %v834 = vmul.f32 %v786, 0.70710677
        %v835 = vmul.f32 %v789, 0.70710677
        %v836 = vmul.f32 %v794, 0.70710677
        %v837 = vmul.f32 %v797, 0.70710677
        %v838 = vmul.f32 %v802, 0.70710677
        %v839 = vmul.f32 %v805, 0.70710677
        %v840 = verf.f32.pop %v824
        %v841 = verf.f32.pop %v825
        %v842 = verf.f32.pop %v826
        %v843 = verf.f32.pop %v827
        %v844 = verf.f32.pop %v828
        %v845 = verf.f32.pop %v829
        %v846 = verf.f32.pop %v830
        %v847 = verf.f32.pop %v831
        %v848 = verf.f32.pop %v832
        %v849 = verf.f32.pop %v833
        %v850 = verf.f32.pop %v834
        %v851 = verf.f32.pop %v835
        %v852 = verf.f32.pop %v836
        %v853 = verf.f32.pop %v837
        %v854 = verf.f32.pop %v838
        %v855 = verf.f32.pop %v839
        %v856 = vadd.f32 %v840, 1.0
        %v857 = vadd.f32 %v841, 1.0
        %v858 = vadd.f32 %v842, 1.0
        %v859 = vadd.f32 %v843, 1.0
        %v860 = vadd.f32 %v844, 1.0
        %v861 = vadd.f32 %v845, 1.0
        %v862 = vadd.f32 %v846, 1.0
        %v863 = vadd.f32 %v847, 1.0
        %v864 = vadd.f32 %v848, 1.0
        %v865 = vadd.f32 %v849, 1.0
        %v866 = vadd.f32 %v850, 1.0
        %v867 = vadd.f32 %v851, 1.0
        %v868 = vadd.f32 %v852, 1.0
        %v869 = vadd.f32 %v853, 1.0
        %v870 = vadd.f32 %v854, 1.0
        %v871 = vadd.f32 %v855, 1.0
        %v872 = vmul.f32 %v808, %v856
        %v873 = vmul.f32 %v809, %v857
        %v874 = vmul.f32 %v810, %v858
        %v875 = vmul.f32 %v811, %v859
        %v876 = vmul.f32 %v812, %v860
        %v877 = vmul.f32 %v813, %v861
        %v878 = vmul.f32 %v814, %v862
        %v879 = vmul.f32 %v815, %v863
        %v880 = vmul.f32 %v816, %v864
        %v881 = vmul.f32 %v817, %v865
        %v882 = vmul.f32 %v818, %v866
        %v883 = vmul.f32 %v819, %v867
        %v884 = vmul.f32 %v820, %v868
        %v885 = vmul.f32 %v821, %v869
        %v886 = vmul.f32 %v822, %v870
        %v887 = vmul.f32 %v823, %v871
        %v888 = vpack.c.bf16 %v873, %v872
        %v889 = vpack.c.bf16 %v875, %v874
        %v890 = vpack.c.bf16 %v877, %v876
        %v891 = vpack.c.bf16 %v879, %v878
        %v892 = vpack.c.bf16 %v881, %v880
        %v893 = vpack.c.bf16 %v883, %v882
        %v894 = vpack.c.bf16 %v885, %v884
        %v895 = vpack.c.bf16 %v887, %v886
        %v896 = vld [vmem:[%s6] sm:$0xf]
        %v897 = vld [vmem:[%s6 + $0x4] sm:$0xf]
        %v898 = vld [vmem:[%s6 + $0x8] sm:$0xf]
        %v899 = vld [vmem:[%s6 + $0xc] sm:$0xf]
        %v900 = vld [vmem:[%s6 + $0x10] sm:$0xf]
        %v901 = vld [vmem:[%s6 + $0x14] sm:$0xf]
        %v902 = vld [vmem:[%s6 + $0x18] sm:$0xf]
        %v903 = vld [vmem:[%s6 + $0x1c] sm:$0xf]
        %v904 = vld [vmem:[%s6 + $0x20] sm:$0xf]
        %v905 = vld [vmem:[%s6 + $0x24] sm:$0xf]
        %v906 = vld [vmem:[%s6 + $0x28] sm:$0xf]
        %v907 = vld [vmem:[%s6 + $0x2c] sm:$0xf]
        %v908 = vld [vmem:[%s6 + $0x30] sm:$0xf]
        %v909 = vld [vmem:[%s6 + $0x34] sm:$0xf]
        %v910 = vld [vmem:[%s6 + $0x38] sm:$0xf]
        %v911 = vld [vmem:[%s6 + $0x3c] sm:$0xf]
        %v912 = vld [vmem:[%s7] sm:$0x1]
        %v914 = vlaneseq
        %v915 = vshrl.u32 %v914, 7
        %v916 = vsub.s32 0, %v915
        %v917 = vrot.slane %v912, %v916
        %v935 = vunpack.c.l.b16 %v896
        %v936 = vunpack.c.l.b16 %v897
        %v937 = vunpack.c.l.b16 %v898
        %v938 = vunpack.c.l.b16 %v899
        %v939 = vunpack.c.l.b16 %v900
        %v940 = vunpack.c.l.b16 %v901
        %v941 = vunpack.c.l.b16 %v902
        %v942 = vunpack.c.l.b16 %v903
        %v943 = vunpack.c.l.b16 %v904
        %v944 = vunpack.c.l.b16 %v905
        %v945 = vunpack.c.l.b16 %v906
        %v946 = vunpack.c.l.b16 %v907
        %v947 = vunpack.c.l.b16 %v908
        %v948 = vunpack.c.l.b16 %v909
        %v949 = vunpack.c.l.b16 %v910
        %v950 = vunpack.c.l.b16 %v911
        %v951 = vpack.c.b16 %v936, %v935
        %v952 = vpack.c.b16 %v938, %v937
        %v953 = vpack.c.b16 %v940, %v939
        %v954 = vpack.c.b16 %v942, %v941
        %v955 = vpack.c.b16 %v944, %v943
        %v956 = vpack.c.b16 %v946, %v945
        %v957 = vpack.c.b16 %v948, %v947
        %v958 = vpack.c.b16 %v950, %v949
        %967 = vmatprep.subr.bf16.mxu0 0
        %968 = vmatpush1.bf16.msra.mxu0 %v958
        %969 = vmatprep.subr.bf16.mxu0 0
        %970 = vmatpush1.bf16.msra.mxu0 %v957
        %971 = vmatprep.subr.bf16.mxu0 0
        %972 = vmatpush1.bf16.msra.mxu0 %v956
        %973 = vmatprep.subr.bf16.mxu0 0
        %974 = vmatpush1.bf16.msra.mxu0 %v955
        %975 = vmatprep.subr.bf16.mxu0 0
        %976 = vmatpush1.bf16.msra.mxu0 %v954
        %977 = vmatprep.subr.bf16.mxu0 0
        %978 = vmatpush1.bf16.msra.mxu0 %v953
        %979 = vmatprep.subr.bf16.mxu0 0
        %980 = vmatpush1.bf16.msra.mxu0 %v952
        %981 = vmatprep.subr.bf16.mxu0 0
        %982 = vmatpush1.bf16.msra.mxu0 %v951
        %983 = vmatprep.subr.bf16.mxu0 0
        %984 = vmatpush2.bf16.msra.mxu0 0
        %985 = vmatprep.subr.bf16.mxu0 0
        %986 = vmatpush2.bf16.msra.mxu0 0
        %987 = vmatprep.subr.bf16.mxu0 0
        %988 = vmatpush2.bf16.msra.mxu0 0
        %989 = vmatprep.subr.bf16.mxu0 0
        %990 = vmatpush2.bf16.msra.mxu0 0
        %991 = vmatprep.subr.bf16.mxu0 0
        %992 = vmatpush2.bf16.msra.mxu0 0
        %993 = vmatprep.subr.bf16.mxu0 0
        %994 = vmatpush2.bf16.msra.mxu0 0
        %995 = vmatprep.subr.bf16.mxu0 0
        %996 = vmatpush2.bf16.msra.mxu0 0
        %997 = vmatprep.subr.bf16.mxu0 0
        %998 = vmatpush2.bf16.msra.mxu0 0
        %999 = vmatprep.mubr.bf16.mxu0 0
        %1000 = vmatmul.mubr.bf16.gmra.mxu0 %v888
        %v1001 = vpop.f32.mrf.mxu0
        %v1002 = vadd.f32 %v917, %v1001
        %v1003 = vpop.f32.mrf.mxu0
        %v1004 = vpop.f32.mrf.mxu0
        %v1005 = vadd.f32 %v917, %v1004
        %v1006 = vpop.f32.mrf.mxu0
        %1007 = vmatprep.mubr.bf16.mxu0 0
        %1008 = vmatmul.mubr.bf16.gmra.mxu0 %v889
        %v1009 = vpop.f32.mrf.mxu0
        %v1010 = vadd.f32 %v917, %v1009
        %v1011 = vpop.f32.mrf.mxu0
        %v1012 = vpop.f32.mrf.mxu0
        %v1013 = vadd.f32 %v917, %v1012
        %v1014 = vpop.f32.mrf.mxu0
        %1015 = vmatprep.mubr.bf16.mxu0 0
        %1016 = vmatmul.mubr.bf16.gmra.mxu0 %v890
        %v1017 = vpop.f32.mrf.mxu0
        %v1018 = vadd.f32 %v917, %v1017
        %v1019 = vpop.f32.mrf.mxu0
        %v1020 = vpop.f32.mrf.mxu0
        %v1021 = vadd.f32 %v917, %v1020
        %v1022 = vpop.f32.mrf.mxu0
        %1023 = vmatprep.mubr.bf16.mxu0 0
        %1024 = vmatmul.mubr.bf16.gmra.mxu0 %v891
        %v1025 = vpop.f32.mrf.mxu0
        %v1026 = vadd.f32 %v917, %v1025
        %v1027 = vpop.f32.mrf.mxu0
        %v1028 = vpop.f32.mrf.mxu0
        %v1029 = vadd.f32 %v917, %v1028
        %v1030 = vpop.f32.mrf.mxu0
        %1031 = vmatprep.mubr.bf16.mxu0 0
        %1032 = vmatmul.mubr.bf16.gmra.mxu0 %v892
        %v1033 = vpop.f32.mrf.mxu0
        %v1034 = vadd.f32 %v917, %v1033
        %v1035 = vpop.f32.mrf.mxu0
        %v1036 = vpop.f32.mrf.mxu0
        %v1037 = vadd.f32 %v917, %v1036
        %v1038 = vpop.f32.mrf.mxu0
        %1039 = vmatprep.mubr.bf16.mxu0 0
        %1040 = vmatmul.mubr.bf16.gmra.mxu0 %v893
        %v1041 = vpop.f32.mrf.mxu0
        %v1042 = vadd.f32 %v917, %v1041
        %v1043 = vpop.f32.mrf.mxu0
        %v1044 = vpop.f32.mrf.mxu0
        %v1045 = vadd.f32 %v917, %v1044
        %v1046 = vpop.f32.mrf.mxu0
        %1047 = vmatprep.mubr.bf16.mxu0 0
        %1048 = vmatmul.mubr.bf16.gmra.mxu0 %v894
        %v1049 = vpop.f32.mrf.mxu0
        %v1050 = vadd.f32 %v917, %v1049
        %v1051 = vpop.f32.mrf.mxu0
        %v1052 = vpop.f32.mrf.mxu0
        %v1053 = vadd.f32 %v917, %v1052
        %v1054 = vpop.f32.mrf.mxu0
        %1055 = vmatprep.mubr.bf16.mxu0 0
        %1056 = vmatmul.mubr.bf16.gmra.mxu0 %v895
        %v1057 = vpop.f32.mrf.mxu0
        %v1058 = vadd.f32 %v917, %v1057
        %v1059 = vpop.f32.mrf.mxu0
        %v1060 = vpop.f32.mrf.mxu0
        %v1061 = vadd.f32 %v917, %v1060
        %v1062 = vpop.f32.mrf.mxu0
        %1063 = vdwg.mxu0
        %v1064 = vadd.f32 %v362, %v1002
        %v1065 = vadd.f32 %v363, %v1005
        %v1066 = vadd.f32 %v364, %v1010
        %v1067 = vadd.f32 %v365, %v1013
        %v1068 = vadd.f32 %v366, %v1018
        %v1069 = vadd.f32 %v367, %v1021
        %v1070 = vadd.f32 %v368, %v1026
        %v1071 = vadd.f32 %v369, %v1029
        %v1072 = vadd.f32 %v370, %v1034
        %v1073 = vadd.f32 %v371, %v1037
        %v1074 = vadd.f32 %v372, %v1042
        %v1075 = vadd.f32 %v373, %v1045
        %v1076 = vadd.f32 %v374, %v1050
        %v1077 = vadd.f32 %v375, %v1053
        %v1078 = vadd.f32 %v376, %v1058
        %v1079 = vadd.f32 %v377, %v1061
        %1080 = vst [vmem:[%s315] sm:$0xff] %v1064
        %1081 = vst [vmem:[%s315 + $0x8] sm:$0xff] %v1065
        %1082 = vst [vmem:[%s315 + $0x10] sm:$0xff] %v1066
        %1083 = vst [vmem:[%s315 + $0x18] sm:$0xff] %v1067
        %1084 = vst [vmem:[%s315 + $0x20] sm:$0xff] %v1068
        %1085 = vst [vmem:[%s315 + $0x28] sm:$0xff] %v1069
        %1086 = vst [vmem:[%s315 + $0x30] sm:$0xff] %v1070
        %1087 = vst [vmem:[%s315 + $0x38] sm:$0xff] %v1071
        %1088 = vst [vmem:[%s315 + $0x40] sm:$0xff] %v1072
        %1089 = vst [vmem:[%s315 + $0x48] sm:$0xff] %v1073
        %1090 = vst [vmem:[%s315 + $0x50] sm:$0xff] %v1074
        %1091 = vst [vmem:[%s315 + $0x58] sm:$0xff] %v1075
        %1092 = vst [vmem:[%s315 + $0x60] sm:$0xff] %v1076
        %1093 = vst [vmem:[%s315 + $0x68] sm:$0xff] %v1077
        %1094 = vst [vmem:[%s315 + $0x70] sm:$0xff] %v1078
        %1095 = vst [vmem:[%s315 + $0x78] sm:$0xff] %v1079
        %s1096 = sand.u32 %s208, 1
        %s1097 = scalar_lea.sflag [#allocation3], %s1096
        %s1098 = sand.u32 %s208, 1
        %s1099 = smul.addr %s1098, 128
        %s1100 = scalar_lea.vmem [#allocation2], %s1099
        // Predicated region
        $region53: #{swin_block_forward.3} parent=51 // pred_check
          %p1101 = pneg %p218
        $region54: #{swin_block_forward.3} parent=51 // pred_check_branch
          %1103 = sbr.rel (%p1101) target = $region56
        $region55: #{swin_block_forward.3} parent=51 // pred_region
          %s1104 = smul.u32 16, %s22
          %s1106 = ssub.s32 2048, 2048
          %1107 = vsyncadd %s1097, %s1106
          %s1108 = smul.addr %s1104, 128
          %s1109 = scalar_lea.hbm %s8, %s1108
          %s1110 = sshll.u32 %s1100, 4
          %s1111 = int_to_ptr.vmem [resolvable:$true] %s1110
          %1116 = dma.vmem_to_hbm [thread:$0]  %s1111, 2048, %s1109, %s1097, 128, 128, 8
        $region56: #{swin_block_forward.3} parent=51 // pred_fallthru
          _
      $region52: #{swin_block_forward.3} parent=5 // pred_fallthru
        _
      %p1117 = scmp.le.s32.totalorder 2, %s17
      // Predicated region
      $region57: #{swin_block_forward.3} parent=5 // pred_check
        %p1118 = pneg %p1117
      $region58: #{swin_block_forward.3} parent=5 // pred_check_branch
        %1120 = sbr.rel (%p1118) target = $region60
      $region59: #{swin_block_forward.3} parent=5 // pred_region
        %s1121 = ssub.s32 %s17, 2
        // Predicated region
        $region61: #{swin_block_forward.3} parent=59 // pred_check
          %p1122 = pneg %p224
        $region62: #{swin_block_forward.3} parent=59 // pred_check_branch
          %1124 = sbr.rel (%p1122) target = $region64
        $region63: #{swin_block_forward.3} parent=59 // pred_region
          %s1125 = sand.u32 %s209, 1
          %s1126 = scalar_lea.sflag [#allocation3], %s1125
          %s1127 = sand.u32 %s209, 1
          %s1128 = smul.addr %s1127, 128
          %s1129 = scalar_lea.vmem [#allocation2], %s1128
          %1130 = dma.done %s1126, 2048
        $region64: #{swin_block_forward.3} parent=59 // pred_fallthru
          _
      $region60: #{swin_block_forward.3} parent=5 // pred_fallthru
        _
    $region6: #{swin_block_forward.3} parent=1 // loop_footer
      %s21 = sadd.s32 1, %s17
    $region7: #{swin_block_forward.3} parent=1 // loop_footer_branch
      %16 = sbr.rel target = $region3
    $region8: #{swin_block_forward.3} parent=1 // loop_exit
      _
    %1131 = vsyncpa [#allocation3], 1
    %s1132 = scalar_lea.sflag [#allocation3], 1
    %1133 = vsyncpa %s1132, 1

// kernel: swin_block_forward.2
$region0: #{swin_block_forward.2}
  #allocation0 [shape = 'u32[]', space=smem, size = 0x4, offset = 0x4, fixed_abs, tag = 'smem constant byte address 0x4 - core index']
  #allocation1 [shape = 'u32[144,128]{1,0:T(1,128)}', space=vmem, size = 0x12000, scoped, tag = 'internal scratch']
  #allocation2 [shape = 'f32[2,32,128]{2,1,0:T(8,128)}', space=vmem, size = 0x8000, scoped, tag = 'scratch operand']
  %s0 = inlined_call_operand.vmem [shape: f32[16,32,128], index: 0, kind: input, shape index: {}]
  %s1 = inlined_call_operand.vmem [shape: f32[8,32,32], index: 1, kind: input, shape index: {}]
  %s2 = inlined_call_operand.vmem [shape: f32[4,32,32], index: 2, kind: input, shape index: {}]
  %s3 = inlined_call_operand.vmem [shape: f32[1,128], index: 3, kind: input, shape index: {}]
  %s4 = inlined_call_operand.vmem [shape: f32[1,128], index: 4, kind: input, shape index: {}]
  %s5 = inlined_call_operand.vmem [shape: bf16[128,384], index: 5, kind: input, shape index: {}]
  %s6 = inlined_call_operand.vmem [shape: f32[1,384], index: 6, kind: input, shape index: {}]
  %s7 = inlined_call_operand.vmem [shape: bf16[128,128], index: 7, kind: input, shape index: {}]
  %s8 = inlined_call_operand.vmem [shape: f32[1,128], index: 8, kind: input, shape index: {}]
  %s9 = inlined_call_operand.vmem [shape: f32[16,32,128], index: 9, kind: output, shape index: {}]
  %s10 = sld [smem:[#allocation0]]
  $region69: #{swin_block_forward.2} parent=0
    _
  %s12 = ssub.s32 1, %s10
  %s13 = scalar_select 0, %s12, %s10
  loop: start=0, step=1, limit=10
  $region2: #{swin_block_forward.2} parent=0 // loop_pre_header
    _
  $region3: #{swin_block_forward.2} parent=0 // loop_header
    %s15 = sphi 0, %s19
    %p16 = scmp.ge.s32.totalorder %s15, 10
    %s22 = sphi 0, %s34
    %s23 = sphi 0, %s30
    %s24 = sphi 0, %s22
    %s25 = sphi 0, %s23
    %s26 = sphi 0, %s24
    %s27 = sphi 0, %s25
    %s41 = sphi 0, %s43
    %s44 = sphi 0, %s41
    %s45 = sphi 0, %s44
    %s61 = sphi 0, %s45
    %s67 = sphi 0, %s69
    %s70 = sphi 0, %s67
    %s71 = sphi 0, %s70
    %s87 = sphi 0, %s71
    %s91 = sphi 0, %s91
    %s93 = sphi 0, %s91
    %s94 = sphi 0, %s93
    %s108 = sphi 0, %s94
    %s112 = sphi 0, %s112
    %s114 = sphi 0, %s112
    %s115 = sphi 0, %s114
    %s129 = sphi 0, %s115
    %s133 = sphi 0, %s133
    %s135 = sphi 0, %s133
    %s136 = sphi 0, %s135
    %s150 = sphi 0, %s136
    %s154 = sphi 0, %s154
    %s156 = sphi 0, %s154
    %s157 = sphi 0, %s156
    %s171 = sphi 0, %s157
    %s175 = sphi 0, %s175
    %s177 = sphi 0, %s175
    %s178 = sphi 0, %s177
    %s192 = sphi 0, %s178
    %s196 = sphi 0, %s196
    %s198 = sphi 0, %s196
    %s199 = sphi 0, %s198
    %s213 = sphi 0, %s199
    %s217 = sphi 0, %s217
    %s219 = sphi 0, %s217
    %s220 = sphi 0, %s219
    %s234 = sphi 0, %s220
    %s244 = sphi 0, %s246
    %s247 = sphi 0, %s244
    %s248 = sphi 0, %s247
    %s264 = sphi 0, %s248
  $region4: #{swin_block_forward.2} parent=0 // loop_header_branch
    %18 = sbr.rel (%p16) target = $region8
  $region5: #{swin_block_forward.2} parent=0 // loop_body
    %s20 = ssub.s32 %s15, 1
    %s21 = ssub.s32 %s15, 2
    %s28 = sadd.s32 1, %s23
    %p29 = scmp.ge.s32.totalorder %s28, 4
    %s30 = scalar_select %p29, 0, %s28
    %s31 = sadd.s32 1, %s22
    %s32 = scalar_select %p29, %s31, %s22
    %p33 = scmp.ge.s32.totalorder %s32, 2
    %s34 = scalar_select %p33, 0, %s32
    %s35 = smul.u32 %s22, 4
    %s36 = sadd.s32 %s35, %s23
    %s37 = smul.u32 %s34, 4
    %s38 = sadd.s32 %s37, %s30
    %s39 = ssub.s32 %s36, %s38
    %p40 = scmp.eq.s32.totalorder %s39, 0
    %s42 = sadd.s32 %s41, 1
    %s43 = scalar_select %p40, %s41, %s42
    %p46 = pneg %p40
    %p47 = scmp.eq.s32.totalorder %s15, 7
    %p48 = por %p46, %p47
    %p49 = scmp.ne.s32.totalorder %s41, %s44
    %p50 = scmp.eq.s32.totalorder %s15, 0
    %p51 = por %p49, %p50
    %p52 = scmp.ne.s32.totalorder %s41, %s44
    %p53 = scmp.eq.s32.totalorder %s20, 7
    %p54 = por %p52, %p53
    %p55 = scmp.ne.s32.totalorder %s44, %s45
    %p56 = scmp.eq.s32.totalorder %s20, 0
    %p57 = por %p55, %p56
    %p58 = scmp.ne.s32.totalorder %s44, %s45
    %p59 = scmp.eq.s32.totalorder %s21, 7
    %p60 = por %p58, %p59
    %p62 = scmp.ne.s32.totalorder %s45, %s61
    %p63 = scmp.eq.s32.totalorder %s21, 0
    %p64 = por %p62, %p63
    %s65 = ssub.s32 %s23, %s30
    %p66 = scmp.eq.s32.totalorder %s65, 0
    %s68 = sadd.s32 %s67, 1
    %s69 = scalar_select %p66, %s67, %s68
    %p72 = pneg %p66
    %p73 = scmp.eq.s32.totalorder %s15, 7
    %p74 = por %p72, %p73
    %p75 = scmp.ne.s32.totalorder %s67, %s70
    %p76 = scmp.eq.s32.totalorder %s15, 0
    %p77 = por %p75, %p76
    %p78 = scmp.ne.s32.totalorder %s67, %s70
    %p79 = scmp.eq.s32.totalorder %s20, 7
    %p80 = por %p78, %p79
    %p81 = scmp.ne.s32.totalorder %s70, %s71
    %p82 = scmp.eq.s32.totalorder %s20, 0
    %p83 = por %p81, %p82
    %p84 = scmp.ne.s32.totalorder %s70, %s71
    %p85 = scmp.eq.s32.totalorder %s21, 7
    %p86 = por %p84, %p85
    %p88 = scmp.ne.s32.totalorder %s71, %s87
    %p89 = scmp.eq.s32.totalorder %s21, 0
    %p90 = por %p88, %p89
    %s92 = sadd.s32 %s91, 1
    %p95 = scmp.eq.s32.totalorder %s15, 7
    %p96 = scmp.ne.s32.totalorder %s91, %s93
    %p97 = scmp.eq.s32.totalorder %s15, 0
    %p98 = por %p96, %p97
    %p99 = scmp.ne.s32.totalorder %s91, %s93
    %p100 = scmp.eq.s32.totalorder %s20, 7
    %p101 = por %p99, %p100
    %p102 = scmp.ne.s32.totalorder %s93, %s94
    %p103 = scmp.eq.s32.totalorder %s20, 0
    %p104 = por %p102, %p103
    %p105 = scmp.ne.s32.totalorder %s93, %s94
    %p106 = scmp.eq.s32.totalorder %s21, 7
    %p107 = por %p105, %p106
    %p109 = scmp.ne.s32.totalorder %s94, %s108
    %p110 = scmp.eq.s32.totalorder %s21, 0
    %p111 = por %p109, %p110
    %s113 = sadd.s32 %s112, 1
    %p116 = scmp.eq.s32.totalorder %s15, 7
    %p117 = scmp.ne.s32.totalorder %s112, %s114
    %p118 = scmp.eq.s32.totalorder %s15, 0
    %p119 = por %p117, %p118
    %p120 = scmp.ne.s32.totalorder %s112, %s114
    %p121 = scmp.eq.s32.totalorder %s20, 7
    %p122 = por %p120, %p121
    %p123 = scmp.ne.s32.totalorder %s114, %s115
    %p124 = scmp.eq.s32.totalorder %s20, 0
    %p125 = por %p123, %p124
    %p126 = scmp.ne.s32.totalorder %s114, %s115
    %p127 = scmp.eq.s32.totalorder %s21, 7
    %p128 = por %p126, %p127
    %p130 = scmp.ne.s32.totalorder %s115, %s129
    %p131 = scmp.eq.s32.totalorder %s21, 0
    %p132 = por %p130, %p131
    %s134 = sadd.s32 %s133, 1
    %p137 = scmp.eq.s32.totalorder %s15, 7
    %p138 = scmp.ne.s32.totalorder %s133, %s135
    %p139 = scmp.eq.s32.totalorder %s15, 0
    %p140 = por %p138, %p139
    %p141 = scmp.ne.s32.totalorder %s133, %s135
    %p142 = scmp.eq.s32.totalorder %s20, 7
    %p143 = por %p141, %p142
    %p144 = scmp.ne.s32.totalorder %s135, %s136
    %p145 = scmp.eq.s32.totalorder %s20, 0
    %p146 = por %p144, %p145
    %p147 = scmp.ne.s32.totalorder %s135, %s136
    %p148 = scmp.eq.s32.totalorder %s21, 7
    %p149 = por %p147, %p148
    %p151 = scmp.ne.s32.totalorder %s136, %s150
    %p152 = scmp.eq.s32.totalorder %s21, 0
    %p153 = por %p151, %p152
    %s155 = sadd.s32 %s154, 1
    %p158 = scmp.eq.s32.totalorder %s15, 7
    %p159 = scmp.ne.s32.totalorder %s154, %s156
    %p160 = scmp.eq.s32.totalorder %s15, 0
    %p161 = por %p159, %p160
    %p162 = scmp.ne.s32.totalorder %s154, %s156
    %p163 = scmp.eq.s32.totalorder %s20, 7
    %p164 = por %p162, %p163
    %p165 = scmp.ne.s32.totalorder %s156, %s157
    %p166 = scmp.eq.s32.totalorder %s20, 0
    %p167 = por %p165, %p166
    %p168 = scmp.ne.s32.totalorder %s156, %s157
    %p169 = scmp.eq.s32.totalorder %s21, 7
    %p170 = por %p168, %p169
    %p172 = scmp.ne.s32.totalorder %s157, %s171
    %p173 = scmp.eq.s32.totalorder %s21, 0
    %p174 = por %p172, %p173
    %s176 = sadd.s32 %s175, 1
    %p179 = scmp.eq.s32.totalorder %s15, 7
    %p180 = scmp.ne.s32.totalorder %s175, %s177
    %p181 = scmp.eq.s32.totalorder %s15, 0
    %p182 = por %p180, %p181
    %p183 = scmp.ne.s32.totalorder %s175, %s177
    %p184 = scmp.eq.s32.totalorder %s20, 7
    %p185 = por %p183, %p184
    %p186 = scmp.ne.s32.totalorder %s177, %s178
    %p187 = scmp.eq.s32.totalorder %s20, 0
    %p188 = por %p186, %p187
    %p189 = scmp.ne.s32.totalorder %s177, %s178
    %p190 = scmp.eq.s32.totalorder %s21, 7
    %p191 = por %p189, %p190
    %p193 = scmp.ne.s32.totalorder %s178, %s192
    %p194 = scmp.eq.s32.totalorder %s21, 0
    %p195 = por %p193, %p194
    %s197 = sadd.s32 %s196, 1
    %p200 = scmp.eq.s32.totalorder %s15, 7
    %p201 = scmp.ne.s32.totalorder %s196, %s198
    %p202 = scmp.eq.s32.totalorder %s15, 0
    %p203 = por %p201, %p202
    %p204 = scmp.ne.s32.totalorder %s196, %s198
    %p205 = scmp.eq.s32.totalorder %s20, 7
    %p206 = por %p204, %p205
    %p207 = scmp.ne.s32.totalorder %s198, %s199
    %p208 = scmp.eq.s32.totalorder %s20, 0
    %p209 = por %p207, %p208
    %p210 = scmp.ne.s32.totalorder %s198, %s199
    %p211 = scmp.eq.s32.totalorder %s21, 7
    %p212 = por %p210, %p211
    %p214 = scmp.ne.s32.totalorder %s199, %s213
    %p215 = scmp.eq.s32.totalorder %s21, 0
    %p216 = por %p214, %p215
    %s218 = sadd.s32 %s217, 1
    %p221 = scmp.eq.s32.totalorder %s15, 7
    %p222 = scmp.ne.s32.totalorder %s217, %s219
    %p223 = scmp.eq.s32.totalorder %s15, 0
    %p224 = por %p222, %p223
    %p225 = scmp.ne.s32.totalorder %s217, %s219
    %p226 = scmp.eq.s32.totalorder %s20, 7
    %p227 = por %p225, %p226
    %p228 = scmp.ne.s32.totalorder %s219, %s220
    %p229 = scmp.eq.s32.totalorder %s20, 0
    %p230 = por %p228, %p229
    %p231 = scmp.ne.s32.totalorder %s219, %s220
    %p232 = scmp.eq.s32.totalorder %s21, 7
    %p233 = por %p231, %p232
    %p235 = scmp.ne.s32.totalorder %s220, %s234
    %p236 = scmp.eq.s32.totalorder %s21, 0
    %p237 = por %p235, %p236
    %s238 = smul.u32 %s22, 4
    %s239 = sadd.s32 %s238, %s23
    %s240 = smul.u32 %s34, 4
    %s241 = sadd.s32 %s240, %s30
    %s242 = ssub.s32 %s239, %s241
    %p243 = scmp.eq.s32.totalorder %s242, 0
    %s245 = sadd.s32 %s244, 1
    %s246 = scalar_select %p243, %s244, %s245
    %p249 = pneg %p243
    %p250 = scmp.eq.s32.totalorder %s15, 7
    %p251 = por %p249, %p250
    %p252 = scmp.ne.s32.totalorder %s244, %s247
    %p253 = scmp.eq.s32.totalorder %s15, 0
    %p254 = por %p252, %p253
    %p255 = scmp.ne.s32.totalorder %s244, %s247
    %p256 = scmp.eq.s32.totalorder %s20, 7
    %p257 = por %p255, %p256
    %p258 = scmp.ne.s32.totalorder %s247, %s248
    %p259 = scmp.eq.s32.totalorder %s20, 0
    %p260 = por %p258, %p259
    %p261 = scmp.ne.s32.totalorder %s247, %s248
    %p262 = scmp.eq.s32.totalorder %s21, 7
    %p263 = por %p261, %p262
    %p265 = scmp.ne.s32.totalorder %s248, %s264
    %p266 = scmp.eq.s32.totalorder %s21, 0
    %p267 = por %p265, %p266
    %p268 = scmp.le.s32.totalorder 1, %s15
    %p269 = scmp.lt.s32.totalorder %s15, 9
    %p270 = pnand %p268, %p269
    %p271 = pneg %p270
    // Predicated region
    $region9: #{swin_block_forward.2} parent=5 // pred_check
      _
    $region10: #{swin_block_forward.2} parent=5 // pred_check_branch
      %273 = sbr.rel (%p270) target = $region12
    $region11: #{swin_block_forward.2} parent=5 // pred_region
      %s274 = ssub.s32 %s15, 1
      // Predicated region
      $region13: #{swin_block_forward.2} parent=11 // pred_check
        %p275 = pneg %p104
      $region14: #{swin_block_forward.2} parent=11 // pred_check_branch
        %277 = sbr.rel (%p275) target = $region16
      $region15: #{swin_block_forward.2} parent=11 // pred_region
        _
      $region16: #{swin_block_forward.2} parent=11 // pred_fallthru
        _
      // Predicated region
      $region17: #{swin_block_forward.2} parent=11 // pred_check
        %p278 = pneg %p125
      $region18: #{swin_block_forward.2} parent=11 // pred_check_branch
        %280 = sbr.rel (%p278) target = $region20
      $region19: #{swin_block_forward.2} parent=11 // pred_region
        _
      $region20: #{swin_block_forward.2} parent=11 // pred_fallthru
        _
      // Predicated region
      $region21: #{swin_block_forward.2} parent=11 // pred_check
        %p281 = pneg %p146
      $region22: #{swin_block_forward.2} parent=11 // pred_check_branch
        %283 = sbr.rel (%p281) target = $region24
      $region23: #{swin_block_forward.2} parent=11 // pred_region
        _
      $region24: #{swin_block_forward.2} parent=11 // pred_fallthru
        _
      // Predicated region
      $region25: #{swin_block_forward.2} parent=11 // pred_check
        %p284 = pneg %p167
      $region26: #{swin_block_forward.2} parent=11 // pred_check_branch
        %286 = sbr.rel (%p284) target = $region28
      $region27: #{swin_block_forward.2} parent=11 // pred_region
        _
      $region28: #{swin_block_forward.2} parent=11 // pred_fallthru
        _
      // Predicated region
      $region29: #{swin_block_forward.2} parent=11 // pred_check
        %p287 = pneg %p188
      $region30: #{swin_block_forward.2} parent=11 // pred_check_branch
        %289 = sbr.rel (%p287) target = $region32
      $region31: #{swin_block_forward.2} parent=11 // pred_region
        _
      $region32: #{swin_block_forward.2} parent=11 // pred_fallthru
        _
      // Predicated region
      $region33: #{swin_block_forward.2} parent=11 // pred_check
        %p290 = pneg %p209
      $region34: #{swin_block_forward.2} parent=11 // pred_check_branch
        %292 = sbr.rel (%p290) target = $region36
      $region35: #{swin_block_forward.2} parent=11 // pred_region
        _
      $region36: #{swin_block_forward.2} parent=11 // pred_fallthru
        _
      // Predicated region
      $region37: #{swin_block_forward.2} parent=11 // pred_check
        %p293 = pneg %p230
      $region38: #{swin_block_forward.2} parent=11 // pred_check_branch
        %295 = sbr.rel (%p293) target = $region40
      $region39: #{swin_block_forward.2} parent=11 // pred_region
        _
      $region40: #{swin_block_forward.2} parent=11 // pred_fallthru
        _
    $region12: #{swin_block_forward.2} parent=5 // pred_fallthru
      _
    %p296 = scmp.lt.s32.totalorder %s15, 8
    // Predicated region
    $region41: #{swin_block_forward.2} parent=5 // pred_check
      %p297 = pneg %p296
    $region42: #{swin_block_forward.2} parent=5 // pred_check_branch
      %299 = sbr.rel (%p297) target = $region44
    $region43: #{swin_block_forward.2} parent=5 // pred_region
      // Predicated region
      $region45: #{swin_block_forward.2} parent=43 // pred_check
        %p300 = pneg %p51
      $region46: #{swin_block_forward.2} parent=43 // pred_check_branch
        %302 = sbr.rel (%p300) target = $region48
      $region47: #{swin_block_forward.2} parent=43 // pred_region
        %s303 = smul.u32 %s22, 4
        %s304 = sadd.s32 %s303, %s23
        %s305 = smul.u32 2, %s304
        %p306 = scmp.lt.s32.totalorder %s305, 15
        %s307 = scalar_select %p306, %s305, 15
        %s308 = smul.addr %s307, 4
        %s309 = smul.addr %s308, 8
        %s310 = scalar_lea.vmem %s0, %s309
        %s311 = smul.u32 %s22, 4
        %s312 = sadd.s32 %s311, %s23
        %s313 = smul.u32 2, %s312
      $region48: #{swin_block_forward.2} parent=43 // pred_fallthru
        _
      // Predicated region
      $region49: #{swin_block_forward.2} parent=43 // pred_check
        %p314 = pneg %p77
      $region50: #{swin_block_forward.2} parent=43 // pred_check_branch
        %316 = sbr.rel (%p314) target = $region52
      $region51: #{swin_block_forward.2} parent=43 // pred_region
        %s317 = smul.u32 2, %s23
        %p318 = scmp.lt.s32.totalorder %s317, 7
        %s319 = scalar_select %p318, %s317, 7
        %s320 = smul.addr %s319, 4
        %s321 = smul.addr %s320, 8
        %s322 = scalar_lea.vmem %s1, %s321
        %s323 = smul.u32 2, %s23
      $region52: #{swin_block_forward.2} parent=43 // pred_fallthru
        _
    $region44: #{swin_block_forward.2} parent=5 // pred_fallthru
      _
    %p324 = scmp.le.s32.totalorder 1, %s15
    %p325 = scmp.lt.s32.totalorder %s15, 9
    %p326 = pnand %p324, %p325
    %p327 = pneg %p326
    // Predicated region
    $region53: #{swin_block_forward.2} parent=5 // pred_check
      _
    $region54: #{swin_block_forward.2} parent=5 // pred_check_branch
      %329 = sbr.rel (%p326) target = $region56
    $region55: #{swin_block_forward.2} parent=5 // pred_region
      %s330 = ssub.s32 %s15, 1
      %s331 = smul.u32 %s24, 4
      %s332 = sadd.s32 %s331, %s25
      %s333 = smul.u32 2, %s332
      %p334 = scmp.lt.s32.totalorder %s333, 15
      %s335 = scalar_select %p334, %s333, 15
      %s336 = smul.addr %s335, 4
      %s337 = smul.addr %s336, 8
      %s338 = scalar_lea.vmem %s0, %s337
      %p339 = pneg %p57
      %p340 = pneg %p54
      %s341 = smul.u32 2, %s25
      %p342 = scmp.lt.s32.totalorder %s341, 7
      %s343 = scalar_select %p342, %s341, 7
      %s344 = smul.addr %s343, 4
      %s345 = smul.addr %s344, 8
      %s346 = scalar_lea.vmem %s1, %s345
      %p347 = pneg %p83
      %p348 = pneg %p80
      %p349 = pneg %p104
      %p350 = pneg %p101
      %p351 = pneg %p125
      %p352 = pneg %p122
      %p353 = pneg %p146
      %p354 = pneg %p143
      %p355 = pneg %p167
      %p356 = pneg %p164
      %p357 = pneg %p188
      %p358 = pneg %p185
      %p359 = pneg %p209
      %p360 = pneg %p206
      %p361 = pneg %p230
      %p362 = pneg %p227
      %p363 = pneg %p260
      %p364 = pneg %p257
      %s365 = smul.u32 %s24, 4
      %s366 = sadd.s32 %s365, %s25
      %s367 = smul.u32 2, %s366
      %p368 = scmp.lt.s32.totalorder %s367, 15
      %s369 = scalar_select %p368, %s367, 15
      %s370 = smul.addr %s369, 4
      %s371 = smul.addr %s370, 8
      %s372 = scalar_lea.vmem %s9, %s371
      %s373 = smul.u32 %s24, 4
      %s374 = sadd.s32 %s373, %s25
      %s375 = smul.u32 2, %s374
      %p376 = scmp.lt.s32.totalorder %s375, 15
      %s377 = scalar_select %p376, %s375, 15
      %s378 = smul.addr %s377, 4
      %s379 = smul.addr %s378, 8
      %s380 = scalar_lea.vmem %s0, %s379
      %s381 = smul.u32 %s24, 4
      %s382 = sadd.s32 %s381, %s25
      %s383 = smul.u32 2, %s382
      %s384 = smul.u32 2, %s25
      %p385 = scmp.lt.s32.totalorder %s384, 7
      %s386 = scalar_select %p385, %s384, 7
      %s387 = smul.addr %s386, 4
      %s388 = smul.addr %s387, 8
      %s389 = scalar_lea.vmem %s1, %s388
      %s390 = smul.u32 2, %s25
      %s391 = smul.u32 %s24, 4
      %s392 = sadd.s32 %s391, %s25
      %s393 = smul.u32 2, %s392
      %p394 = scmp.lt.s32.totalorder %s393, 15
      %s395 = scalar_select %p394, %s393, 15
      %s396 = smul.addr %s395, 4
      %s397 = smul.addr %s396, 8
      %s398 = scalar_lea.vmem %s9, %s397
      %s399 = smul.u32 %s24, 4
      %s400 = sadd.s32 %s399, %s25
      %s401 = smul.u32 2, %s400
      %v403 = vld [vmem:[%s380] sm:$0xff]
      %v404 = vld [vmem:[%s380 + $0x8] sm:$0xff]
      %v405 = vld [vmem:[%s380 + $0x10] sm:$0xff]
      %v406 = vld [vmem:[%s380 + $0x18] sm:$0xff]
      %v407 = vld [vmem:[%s380 + $0x20] sm:$0xff]
      %v408 = vld [vmem:[%s380 + $0x28] sm:$0xff]
      %v409 = vld [vmem:[%s380 + $0x30] sm:$0xff]
      %v410 = vld [vmem:[%s380 + $0x38] sm:$0xff]
      %411 = vadd.xlane.f32.xlu0 %v403
      %v412 = vpop.xlane.xlu0 %411
      %413 = vadd.xlane.f32.xlu0 %v404
      %v414 = vpop.xlane.xlu0 %413
      %415 = vadd.xlane.f32.xlu0 %v405
      %v416 = vpop.xlane.xlu0 %415
      %417 = vadd.xlane.f32.xlu0 %v406
      %v418 = vpop.xlane.xlu0 %417
      %419 = vadd.xlane.f32.xlu0 %v407
      %v420 = vpop.xlane.xlu0 %419
      %421 = vadd.xlane.f32.xlu0 %v408
      %v422 = vpop.xlane.xlu0 %421
      %423 = vadd.xlane.f32.xlu0 %v409
      %v424 = vpop.xlane.xlu0 %423
      %425 = vadd.xlane.f32.xlu0 %v410
      %v426 = vpop.xlane.xlu0 %425
      %v427 = vmul.f32 %v412, 0.03125
      %v428 = vmul.f32 %v414, 0.03125
      %v429 = vmul.f32 %v416, 0.03125
      %v430 = vmul.f32 %v418, 0.03125
      %v431 = vmul.f32 %v420, 0.03125
      %v432 = vmul.f32 %v422, 0.03125
      %v433 = vmul.f32 %v424, 0.03125
      %v434 = vmul.f32 %v426, 0.03125
      %v435 = vmul.f32 %v403, %v403
      %v436 = vmul.f32 %v404, %v404
      %v437 = vmul.f32 %v405, %v405
      %v438 = vmul.f32 %v406, %v406
      %v439 = vmul.f32 %v407, %v407
      %v440 = vmul.f32 %v408, %v408
      %v441 = vmul.f32 %v409, %v409
      %v442 = vmul.f32 %v410, %v410
      %443 = vadd.xlane.f32.xlu0 %v435
      %v444 = vpop.xlane.xlu0 %443
      %445 = vadd.xlane.f32.xlu0 %v436
      %v446 = vpop.xlane.xlu0 %445
      %447 = vadd.xlane.f32.xlu0 %v437
      %v448 = vpop.xlane.xlu0 %447
      %449 = vadd.xlane.f32.xlu0 %v438
      %v450 = vpop.xlane.xlu0 %449
      %451 = vadd.xlane.f32.xlu0 %v439
      %v452 = vpop.xlane.xlu0 %451
      %453 = vadd.xlane.f32.xlu0 %v440
      %v454 = vpop.xlane.xlu0 %453
      %455 = vadd.xlane.f32.xlu0 %v441
      %v456 = vpop.xlane.xlu0 %455
      %457 = vadd.xlane.f32.xlu0 %v442
      %v458 = vpop.xlane.xlu0 %457
      %v459 = vmul.f32 %v444, 0.03125
      %v460 = vmul.f32 %v446, 0.03125
      %v461 = vmul.f32 %v448, 0.03125
      %v462 = vmul.f32 %v450, 0.03125
      %v463 = vmul.f32 %v452, 0.03125
      %v464 = vmul.f32 %v454, 0.03125
      %v465 = vmul.f32 %v456, 0.03125
      %v466 = vmul.f32 %v458, 0.03125
      %v467 = vmul.f32 %v427, %v427
      %v468 = vmul.f32 %v428, %v428
      %v469 = vmul.f32 %v429, %v429
      %v470 = vmul.f32 %v430, %v430
      %v471 = vmul.f32 %v431, %v431
      %v472 = vmul.f32 %v432, %v432
      %v473 = vmul.f32 %v433, %v433
      %v474 = vmul.f32 %v434, %v434
      %v475 = vsub.f32 %v459, %v467
      %v476 = vsub.f32 %v460, %v468
      %v477 = vsub.f32 %v461, %v469
      %v478 = vsub.f32 %v462, %v470
      %v479 = vsub.f32 %v463, %v471
      %v480 = vsub.f32 %v464, %v472
      %v481 = vsub.f32 %v465, %v473
      %v482 = vsub.f32 %v466, %v474
      %v483 = vsub.f32 %v403, %v427
      %v484 = vsub.f32 %v404, %v428
      %v485 = vsub.f32 %v405, %v429
      %v486 = vsub.f32 %v406, %v430
      %v487 = vsub.f32 %v407, %v431
      %v488 = vsub.f32 %v408, %v432
      %v489 = vsub.f32 %v409, %v433
      %v490 = vsub.f32 %v410, %v434
      %v491 = vadd.f32 %v475, 1e-05
      %v492 = vadd.f32 %v476, 1e-05
      %v493 = vadd.f32 %v477, 1e-05
      %v494 = vadd.f32 %v478, 1e-05
      %v495 = vadd.f32 %v479, 1e-05
      %v496 = vadd.f32 %v480, 1e-05
      %v497 = vadd.f32 %v481, 1e-05
      %v498 = vadd.f32 %v482, 1e-05
      %v499 = vrsqrt.pop %v491
      %v500 = vrsqrt.pop %v492
      %v501 = vrsqrt.pop %v493
      %v502 = vrsqrt.pop %v494
      %v503 = vrsqrt.pop %v495
      %v504 = vrsqrt.pop %v496
      %v505 = vrsqrt.pop %v497
      %v506 = vrsqrt.pop %v498
      %v507 = vmul.f32 %v483, %v499
      %v508 = vmul.f32 %v484, %v500
      %v509 = vmul.f32 %v485, %v501
      %v510 = vmul.f32 %v486, %v502
      %v511 = vmul.f32 %v487, %v503
      %v512 = vmul.f32 %v488, %v504
      %v513 = vmul.f32 %v489, %v505
      %v514 = vmul.f32 %v490, %v506
      %v515 = vld [vmem:[%s3] sm:$0x1]
      %v517 = vlaneseq
      %v518 = vshrl.u32 %v517, 7
      %v519 = vsub.s32 0, %v518
      %v520 = vrot.slane %v515, %v519
      %v522 = vmul.f32 %v507, %v520
      %v523 = vmul.f32 %v508, %v520
      %v524 = vmul.f32 %v509, %v520
      %v525 = vmul.f32 %v510, %v520
      %v526 = vmul.f32 %v511, %v520
      %v527 = vmul.f32 %v512, %v520
      %v528 = vmul.f32 %v513, %v520
      %v529 = vmul.f32 %v514, %v520
      %v530 = vld [vmem:[%s4] sm:$0x1]
      %v532 = vlaneseq
      %v533 = vshrl.u32 %v532, 7
      %v534 = vsub.s32 0, %v533
      %v535 = vrot.slane %v530, %v534
      %v537 = vadd.f32 %v522, %v535
      %v538 = vadd.f32 %v523, %v535
      %v539 = vadd.f32 %v524, %v535
      %v540 = vadd.f32 %v525, %v535
      %v541 = vadd.f32 %v526, %v535
      %v542 = vadd.f32 %v527, %v535
      %v543 = vadd.f32 %v528, %v535
      %v544 = vadd.f32 %v529, %v535
      %v545 = vpack.c.bf16 %v538, %v537
      %v546 = vpack.c.bf16 %v540, %v539
      %v547 = vpack.c.bf16 %v542, %v541
      %v548 = vpack.c.bf16 %v544, %v543
      %v549 = vld [vmem:[%s5] sm:$0xff]
      %v550 = vld [vmem:[%s5 + $0x8] sm:$0xf]
      %v551 = vld [vmem:[%s5 + $0xc] sm:$0xff]
      %v552 = vld [vmem:[%s5 + $0x14] sm:$0xf]
      %v553 = vld [vmem:[%s5 + $0x18] sm:$0xff]
      %v554 = vld [vmem:[%s5 + $0x20] sm:$0xf]
      %v555 = vld [vmem:[%s5 + $0x24] sm:$0xff]
      %v556 = vld [vmem:[%s5 + $0x2c] sm:$0xf]
      %v557 = vld [vmem:[%s5 + $0x30] sm:$0xff]
      %v558 = vld [vmem:[%s5 + $0x38] sm:$0xf]
      %v559 = vld [vmem:[%s5 + $0x3c] sm:$0xff]
      %v560 = vld [vmem:[%s5 + $0x44] sm:$0xf]
      %v561 = vld [vmem:[%s5 + $0x48] sm:$0xff]
      %v562 = vld [vmem:[%s5 + $0x50] sm:$0xf]
      %v563 = vld [vmem:[%s5 + $0x54] sm:$0xff]
      %v564 = vld [vmem:[%s5 + $0x5c] sm:$0xf]
      %v565 = vld [vmem:[%s5 + $0x60] sm:$0xff]
      %v566 = vld [vmem:[%s5 + $0x68] sm:$0xf]
      %v567 = vld [vmem:[%s5 + $0x6c] sm:$0xff]
      %v568 = vld [vmem:[%s5 + $0x74] sm:$0xf]
      %v569 = vld [vmem:[%s5 + $0x78] sm:$0xff]
      %v570 = vld [vmem:[%s5 + $0x80] sm:$0xf]
      %v571 = vld [vmem:[%s5 + $0x84] sm:$0xff]
      %v572 = vld [vmem:[%s5 + $0x8c] sm:$0xf]
      %v573 = vld [vmem:[%s5 + $0x90] sm:$0xff]
      %v574 = vld [vmem:[%s5 + $0x98] sm:$0xf]
      %v575 = vld [vmem:[%s5 + $0x9c] sm:$0xff]
      %v576 = vld [vmem:[%s5 + $0xa4] sm:$0xf]
      %v577 = vld [vmem:[%s5 + $0xa8] sm:$0xff]
      %v578 = vld [vmem:[%s5 + $0xb0] sm:$0xf]
      %v579 = vld [vmem:[%s5 + $0xb4] sm:$0xff]
      %v580 = vld [vmem:[%s5 + $0xbc] sm:$0xf]
      %v581 = vld [vmem:[%s6] sm:$0x7]
      %v583 = vlaneseq
      %v584 = vshrl.u32 %v583, 7
      %v585 = vsub.s32 0, %v584
      %v586 = vrot.slane %v581, %v585
      %v587 = vlaneseq
      %v588 = vshrl.u32 %v587, 7
      %v589 = vsub.s32 1, %v588
      %v590 = vrot.slane %v581, %v589
      %v591 = vlaneseq
      %v592 = vshrl.u32 %v591, 7
      %v593 = vsub.s32 2, %v592
      %v594 = vrot.slane %v581, %v593
      %v630 = vunpack.c.l.b16 %v549
      %v631 = vunpack.c.h.b16 %v549
      %v632 = vunpack.c.l.b16 %v550
      %v633 = vunpack.c.l.b16 %v551
      %v634 = vunpack.c.h.b16 %v551
      %v635 = vunpack.c.l.b16 %v552
      %v636 = vunpack.c.l.b16 %v553
      %v637 = vunpack.c.h.b16 %v553
      %v638 = vunpack.c.l.b16 %v554
      %v639 = vunpack.c.l.b16 %v555
      %v640 = vunpack.c.h.b16 %v555
      %v641 = vunpack.c.l.b16 %v556
      %v642 = vunpack.c.l.b16 %v557
      %v643 = vunpack.c.h.b16 %v557
      %v644 = vunpack.c.l.b16 %v558
      %v645 = vunpack.c.l.b16 %v559
      %v646 = vunpack.c.h.b16 %v559
      %v647 = vunpack.c.l.b16 %v560
      %v648 = vunpack.c.l.b16 %v561
      %v649 = vunpack.c.h.b16 %v561
      %v650 = vunpack.c.l.b16 %v562
      %v651 = vunpack.c.l.b16 %v563
      %v652 = vunpack.c.h.b16 %v563
      %v653 = vunpack.c.l.b16 %v564
      %v654 = vunpack.c.l.b16 %v565
      %v655 = vunpack.c.h.b16 %v565
      %v656 = vunpack.c.l.b16 %v566
      %v657 = vunpack.c.l.b16 %v567
      %v658 = vunpack.c.h.b16 %v567
      %v659 = vunpack.c.l.b16 %v568
      %v660 = vunpack.c.l.b16 %v569
      %v661 = vunpack.c.h.b16 %v569
      %v662 = vunpack.c.l.b16 %v570
      %v663 = vunpack.c.l.b16 %v571
      %v664 = vunpack.c.h.b16 %v571
      %v665 = vunpack.c.l.b16 %v572
      %v666 = vunpack.c.l.b16 %v573
      %v667 = vunpack.c.h.b16 %v573
      %v668 = vunpack.c.l.b16 %v574
      %v669 = vunpack.c.l.b16 %v575
      %v670 = vunpack.c.h.b16 %v575
      %v671 = vunpack.c.l.b16 %v576
      %v672 = vunpack.c.l.b16 %v577
      %v673 = vunpack.c.h.b16 %v577
      %v674 = vunpack.c.l.b16 %v578
      %v675 = vunpack.c.l.b16 %v579
      %v676 = vunpack.c.h.b16 %v579
      %v677 = vunpack.c.l.b16 %v580
      %v678 = vpack.c.b16 %v633, %v630
      %v679 = vpack.c.b16 %v634, %v631
      %v680 = vpack.c.b16 %v635, %v632
      %v681 = vpack.c.b16 %v639, %v636
      %v682 = vpack.c.b16 %v640, %v637
      %v683 = vpack.c.b16 %v641, %v638
      %v684 = vpack.c.b16 %v645, %v642
      %v685 = vpack.c.b16 %v646, %v643
      %v686 = vpack.c.b16 %v647, %v644
      %v687 = vpack.c.b16 %v651, %v648
      %v688 = vpack.c.b16 %v652, %v649
      %v689 = vpack.c.b16 %v653, %v650
      %v690 = vpack.c.b16 %v657, %v654
      %v691 = vpack.c.b16 %v658, %v655
      %v692 = vpack.c.b16 %v659, %v656
      %v693 = vpack.c.b16 %v663, %v660
      %v694 = vpack.c.b16 %v664, %v661
      %v695 = vpack.c.b16 %v665, %v662
      %v696 = vpack.c.b16 %v669, %v666
      %v697 = vpack.c.b16 %v670, %v667
      %v698 = vpack.c.b16 %v671, %v668
      %v699 = vpack.c.b16 %v675, %v672
      %v700 = vpack.c.b16 %v676, %v673
      %v701 = vpack.c.b16 %v677, %v674
      %726 = vmatprep.subr.bf16.mxu0 %v700
      %727 = vmatpush1.bf16.msra.mxu0 %v699
      %728 = vmatprep.subr.bf16.mxu0 %v697
      %729 = vmatpush1.bf16.msra.mxu0 %v696
      %730 = vmatprep.subr.bf16.mxu0 %v694
      %731 = vmatpush1.bf16.msra.mxu0 %v693
      %732 = vmatprep.subr.bf16.mxu0 %v691
      %733 = vmatpush1.bf16.msra.mxu0 %v690
      %734 = vmatprep.subr.bf16.mxu0 %v688
      %735 = vmatpush1.bf16.msra.mxu0 %v687
      %736 = vmatprep.subr.bf16.mxu0 %v685
      %737 = vmatpush1.bf16.msra.mxu0 %v684
      %738 = vmatprep.subr.bf16.mxu0 %v682
      %739 = vmatpush1.bf16.msra.mxu0 %v681
      %740 = vmatprep.subr.bf16.mxu0 %v679
      %741 = vmatpush1.bf16.msra.mxu0 %v678
      %742 = vmatprep.subr.bf16.mxu0 0
      %743 = vmatpush2.bf16.msra.mxu0 0
      %744 = vmatprep.subr.bf16.mxu0 0
      %745 = vmatpush2.bf16.msra.mxu0 0
      %746 = vmatprep.subr.bf16.mxu0 0
      %747 = vmatpush2.bf16.msra.mxu0 0
      %748 = vmatprep.subr.bf16.mxu0 0
      %749 = vmatpush2.bf16.msra.mxu0 0
      %750 = vmatprep.subr.bf16.mxu0 0
      %751 = vmatpush2.bf16.msra.mxu0 0
      %752 = vmatprep.subr.bf16.mxu0 0
      %753 = vmatpush2.bf16.msra.mxu0 0
      %754 = vmatprep.subr.bf16.mxu0 0
      %755 = vmatpush2.bf16.msra.mxu0 0
      %756 = vmatprep.subr.bf16.mxu0 0
      %757 = vmatpush2.bf16.msra.mxu0 0
      %758 = vmatprep.mubr.bf16.mxu0 0
      %759 = vmatmul.mubr.bf16.gmra.mxu0 %v545
      %v760 = vpop.f32.mrf.mxu0
      %v761 = vadd.f32 %v586, %v760
      %v762 = vpop.f32.mrf.mxu0
      %v763 = vadd.f32 %v590, %v762
      %v764 = vpop.f32.mrf.mxu0
      %v765 = vadd.f32 %v586, %v764
      %v766 = vpop.f32.mrf.mxu0
      %v767 = vadd.f32 %v590, %v766
      %768 = vmatprep.mubr.bf16.mxu0 0
      %769 = vmatmul.mubr.bf16.gmra.mxu0 %v546
      %v770 = vpop.f32.mrf.mxu0
      %v771 = vadd.f32 %v586, %v770
      %v772 = vpop.f32.mrf.mxu0
      %v773 = vadd.f32 %v590, %v772
      %v774 = vpop.f32.mrf.mxu0
      %v775 = vadd.f32 %v586, %v774
      %v776 = vpop.f32.mrf.mxu0
      %v777 = vadd.f32 %v590, %v776
      %778 = vmatprep.mubr.bf16.mxu0 0
      %779 = vmatmul.mubr.bf16.gmra.mxu0 %v547
      %v780 = vpop.f32.mrf.mxu0
      %v781 = vadd.f32 %v586, %v780
      %v782 = vpop.f32.mrf.mxu0
      %v783 = vadd.f32 %v590, %v782
      %v784 = vpop.f32.mrf.mxu0
      %v785 = vadd.f32 %v586, %v784
      %v786 = vpop.f32.mrf.mxu0
      %v787 = vadd.f32 %v590, %v786
      %788 = vmatprep.mubr.bf16.mxu0 0
      %789 = vmatmul.mubr.bf16.gmra.mxu0 %v548
      %v790 = vpop.f32.mrf.mxu0
      %v791 = vadd.f32 %v586, %v790
      %v792 = vpop.f32.mrf.mxu0
      %v793 = vadd.f32 %v590, %v792
      %v794 = vpop.f32.mrf.mxu0
      %v795 = vadd.f32 %v586, %v794
      %v796 = vpop.f32.mrf.mxu0
      %v797 = vadd.f32 %v590, %v796
      %798 = vdwg.mxu0
      %799 = vmatprep.subr.bf16.mxu0 0
      %800 = vmatpush1.bf16.msra.mxu0 %v701
      %801 = vmatprep.subr.bf16.mxu0 0
      %802 = vmatpush1.bf16.msra.mxu0 %v698
      %803 = vmatprep.subr.bf16.mxu0 0
      %804 = vmatpush1.bf16.msra.mxu0 %v695
      %805 = vmatprep.subr.bf16.mxu0 0
      %806 = vmatpush1.bf16.msra.mxu0 %v692
      %807 = vmatprep.subr.bf16.mxu0 0
      %808 = vmatpush1.bf16.msra.mxu0 %v689
      %809 = vmatprep.subr.bf16.mxu0 0
      %810 = vmatpush1.bf16.msra.mxu0 %v686
      %811 = vmatprep.subr.bf16.mxu0 0
      %812 = vmatpush1.bf16.msra.mxu0 %v683
      %813 = vmatprep.subr.bf16.mxu0 0
      %814 = vmatpush1.bf16.msra.mxu0 %v680
      %815 = vmatprep.subr.bf16.mxu0 0
      %816 = vmatpush2.bf16.msra.mxu0 0
      %817 = vmatprep.subr.bf16.mxu0 0
      %818 = vmatpush2.bf16.msra.mxu0 0
      %819 = vmatprep.subr.bf16.mxu0 0
      %820 = vmatpush2.bf16.msra.mxu0 0
      %821 = vmatprep.subr.bf16.mxu0 0
      %822 = vmatpush2.bf16.msra.mxu0 0
      %823 = vmatprep.subr.bf16.mxu0 0
      %824 = vmatpush2.bf16.msra.mxu0 0
      %825 = vmatprep.subr.bf16.mxu0 0
      %826 = vmatpush2.bf16.msra.mxu0 0
      %827 = vmatprep.subr.bf16.mxu0 0
      %828 = vmatpush2.bf16.msra.mxu0 0
      %829 = vmatprep.subr.bf16.mxu0 0
      %830 = vmatpush2.bf16.msra.mxu0 0
      %831 = vmatprep.mubr.bf16.mxu0 0
      %832 = vmatmul.mubr.bf16.gmra.mxu0 %v545
      %v833 = vpop.f32.mrf.mxu0
      %v834 = vadd.f32 %v594, %v833
      %v835 = vpop.f32.mrf.mxu0
      %v836 = vpop.f32.mrf.mxu0
      %v837 = vadd.f32 %v594, %v836
      %v838 = vpop.f32.mrf.mxu0
      %839 = vmatprep.mubr.bf16.mxu0 0
      %840 = vmatmul.mubr.bf16.gmra.mxu0 %v546
      %v841 = vpop.f32.mrf.mxu0
      %v842 = vadd.f32 %v594, %v841
      %v843 = vpop.f32.mrf.mxu0
      %v844 = vpop.f32.mrf.mxu0
      %v845 = vadd.f32 %v594, %v844
      %v846 = vpop.f32.mrf.mxu0
      %847 = vmatprep.mubr.bf16.mxu0 0
      %848 = vmatmul.mubr.bf16.gmra.mxu0 %v547
      %v849 = vpop.f32.mrf.mxu0
      %v850 = vadd.f32 %v594, %v849
      %v851 = vpop.f32.mrf.mxu0
      %v852 = vpop.f32.mrf.mxu0
      %v853 = vadd.f32 %v594, %v852
      %v854 = vpop.f32.mrf.mxu0
      %855 = vmatprep.mubr.bf16.mxu0 0
      %856 = vmatmul.mubr.bf16.gmra.mxu0 %v548
      %v857 = vpop.f32.mrf.mxu0
      %v858 = vadd.f32 %v594, %v857
      %v859 = vpop.f32.mrf.mxu0
      %v860 = vpop.f32.mrf.mxu0
      %v861 = vadd.f32 %v594, %v860
      %v862 = vpop.f32.mrf.mxu0
      %863 = vdwg.mxu0
      %v864 = vmul.f32 %v761, 0.35355338
      %v865 = vmul.f32 %v765, 0.35355338
      %v866 = vmul.f32 %v771, 0.35355338
      %v867 = vmul.f32 %v775, 0.35355338
      %v868 = vmul.f32 %v781, 0.35355338
      %v869 = vmul.f32 %v785, 0.35355338
      %v870 = vmul.f32 %v791, 0.35355338
      %v871 = vmul.f32 %v795, 0.35355338
      %v872 = vpack.c.bf16 %v865, %v864
      %v873 = vpack.c.bf16 %v867, %v866
      %v874 = vpack.c.bf16 %v869, %v868
      %v875 = vpack.c.bf16 %v871, %v870
      %v876 = vpack.c.bf16 %v767, %v763
      %v877 = vpack.c.bf16 %v777, %v773
      %v878 = vpack.c.bf16 %v787, %v783
      %v879 = vpack.c.bf16 %v797, %v793
      %v880 = vpack.c.bf16 %v837, %v834
      %v881 = vpack.c.bf16 %v845, %v842
      %v882 = vpack.c.bf16 %v853, %v850
      %v883 = vpack.c.bf16 %v861, %v858
      %v884 = vld [vmem:[%s2] sm:$0xff]
      %v885 = vld [vmem:[%s2 + $0x8] sm:$0xff]
      %v886 = vld [vmem:[%s2 + $0x10] sm:$0xff]
      %v887 = vld [vmem:[%s2 + $0x18] sm:$0xff]
      %v888 = vld [vmem:[%s2 + $0x20] sm:$0xff]
      %v889 = vld [vmem:[%s2 + $0x28] sm:$0xff]
      %v890 = vld [vmem:[%s2 + $0x30] sm:$0xff]
      %v891 = vld [vmem:[%s2 + $0x38] sm:$0xff]
      %v892 = vld [vmem:[%s2 + $0x40] sm:$0xff]
      %v893 = vld [vmem:[%s2 + $0x48] sm:$0xff]
      %v894 = vld [vmem:[%s2 + $0x50] sm:$0xff]
      %v895 = vld [vmem:[%s2 + $0x58] sm:$0xff]
      %v896 = vld [vmem:[%s2 + $0x60] sm:$0xff]
      %v897 = vld [vmem:[%s2 + $0x68] sm:$0xff]
      %v898 = vld [vmem:[%s2 + $0x70] sm:$0xff]
      %v899 = vld [vmem:[%s2 + $0x78] sm:$0xff]
      %v900 = vld [vmem:[%s389] sm:$0xff]
      %v901 = vld [vmem:[%s389 + $0x8] sm:$0xff]
      %v902 = vld [vmem:[%s389 + $0x10] sm:$0xff]
      %v903 = vld [vmem:[%s389 + $0x18] sm:$0xff]
      %v904 = vld [vmem:[%s389 + $0x20] sm:$0xff]
      %v905 = vld [vmem:[%s389 + $0x28] sm:$0xff]
      %v906 = vld [vmem:[%s389 + $0x30] sm:$0xff]
      %v907 = vld [vmem:[%s389 + $0x38] sm:$0xff]
      %vm908 = vcmask 261120
      %v910 = vsel %vm908, %v872, 0
      %v913 = vsel %vm908, %v873, 0
      %v916 = vsel %vm908, %v876, 0
      %v919 = vsel %vm908, %v877, 0
      %921 = vmatprep.subr.bf16.mxu0 0
      %922 = vmatpush1.bf16.xpose.msra.mxu0 0
      %923 = vmatprep.subr.bf16.mxu0 0
      %924 = vmatpush1.bf16.xpose.msra.mxu0 0
      %925 = vmatprep.subr.bf16.mxu0 0
      %926 = vmatpush1.bf16.xpose.msra.mxu0 0
      %927 = vmatprep.subr.bf16.mxu0 0
      %928 = vmatpush1.bf16.xpose.msra.mxu0 0
      %929 = vmatprep.subr.bf16.mxu0 0
      %930 = vmatpush1.bf16.xpose.msra.mxu0 0
      %931 = vmatprep.subr.bf16.mxu0 0
      %932 = vmatpush1.bf16.xpose.msra.mxu0 0
      %933 = vmatprep.subr.bf16.mxu0 0
      %934 = vmatpush1.bf16.xpose.msra.mxu0 %v919
      %935 = vmatprep.subr.bf16.mxu0 0
      %936 = vmatpush1.bf16.xpose.msra.mxu0 %v916
      %937 = vmatprep.subr.bf16.mxu0 0
      %938 = vmatpush2.bf16.xpose.msra.mxu0 0
      %939 = vmatprep.subr.bf16.mxu0 0
      %940 = vmatpush2.bf16.xpose.msra.mxu0 0
      %941 = vmatprep.subr.bf16.mxu0 0
      %942 = vmatpush2.bf16.xpose.msra.mxu0 0
      %943 = vmatprep.subr.bf16.mxu0 0
      %944 = vmatpush2.bf16.xpose.msra.mxu0 0
      %945 = vmatprep.subr.bf16.mxu0 0
      %946 = vmatpush2.bf16.xpose.msra.mxu0 0
      %947 = vmatprep.subr.bf16.mxu0 0
      %948 = vmatpush2.bf16.xpose.msra.mxu0 0
      %949 = vmatprep.subr.bf16.mxu0 0
      %950 = vmatpush2.bf16.xpose.msra.mxu0 0
      %951 = vmatprep.subr.bf16.mxu0 0
      %952 = vmatpush2.bf16.xpose.msra.mxu0 0
      %953 = vmatprep.mubr.bf16.mxu0 0
      %954 = vmatmul.mubr.bf16.gmra.mxu0 %v910
      %v955 = vpop.f32.mrf.mxu0
      %v956 = vadd.f32 %v884, %v955
      %v957 = vpop.f32.mrf.mxu0
      %v958 = vpop.f32.mrf.mxu0
      %v959 = vadd.f32 %v885, %v958
      %v960 = vpop.f32.mrf.mxu0
      %961 = vmatprep.mubr.bf16.mxu0 0
      %962 = vmatmul.mubr.bf16.gmra.mxu0 %v913
      %v963 = vpop.f32.mrf.mxu0
      %v964 = vadd.f32 %v886, %v963
      %v965 = vpop.f32.mrf.mxu0
      %v966 = vpop.f32.mrf.mxu0
      %v967 = vadd.f32 %v887, %v966
      %v968 = vpop.f32.mrf.mxu0
      %969 = vdwg.mxu0
      %v971 = vsel %vm908, %v874, 0
      %v974 = vsel %vm908, %v875, 0
      %v977 = vsel %vm908, %v878, 0
      %v980 = vsel %vm908, %v879, 0
      %982 = vmatprep.subr.bf16.mxu0 0
      %983 = vmatpush1.bf16.xpose.msra.mxu0 0
      %984 = vmatprep.subr.bf16.mxu0 0
      %985 = vmatpush1.bf16.xpose.msra.mxu0 0
      %986 = vmatprep.subr.bf16.mxu0 0
      %987 = vmatpush1.bf16.xpose.msra.mxu0 0
      %988 = vmatprep.subr.bf16.mxu0 0
      %989 = vmatpush1.bf16.xpose.msra.mxu0 0
      %990 = vmatprep.subr.bf16.mxu0 0
      %991 = vmatpush1.bf16.xpose.msra.mxu0 0
      %992 = vmatprep.subr.bf16.mxu0 0
      %993 = vmatpush1.bf16.xpose.msra.mxu0 0
      %994 = vmatprep.subr.bf16.mxu0 0
      %995 = vmatpush1.bf16.xpose.msra.mxu0 %v980
      %996 = vmatprep.subr.bf16.mxu0 0
      %997 = vmatpush1.bf16.xpose.msra.mxu0 %v977
      %998 = vmatprep.subr.bf16.mxu0 0
      %999 = vmatpush2.bf16.xpose.msra.mxu0 0
      %1000 = vmatprep.subr.bf16.mxu0 0
      %1001 = vmatpush2.bf16.xpose.msra.mxu0 0
      %1002 = vmatprep.subr.bf16.mxu0 0
      %1003 = vmatpush2.bf16.xpose.msra.mxu0 0
      %1004 = vmatprep.subr.bf16.mxu0 0
      %1005 = vmatpush2.bf16.xpose.msra.mxu0 0
      %1006 = vmatprep.subr.bf16.mxu0 0
      %1007 = vmatpush2.bf16.xpose.msra.mxu0 0
      %1008 = vmatprep.subr.bf16.mxu0 0
      %1009 = vmatpush2.bf16.xpose.msra.mxu0 0
      %1010 = vmatprep.subr.bf16.mxu0 0
      %1011 = vmatpush2.bf16.xpose.msra.mxu0 0
      %1012 = vmatprep.subr.bf16.mxu0 0
      %1013 = vmatpush2.bf16.xpose.msra.mxu0 0
      %1014 = vmatprep.mubr.bf16.mxu0 0
      %1015 = vmatmul.mubr.bf16.gmra.mxu0 %v971
      %v1016 = vpop.f32.mrf.mxu0
      %v1017 = vadd.f32 %v884, %v1016
      %v1018 = vpop.f32.mrf.mxu0
      %v1019 = vpop.f32.mrf.mxu0
      %v1020 = vadd.f32 %v885, %v1019
      %v1021 = vpop.f32.mrf.mxu0
      %1022 = vmatprep.mubr.bf16.mxu0 0
      %1023 = vmatmul.mubr.bf16.gmra.mxu0 %v974
      %v1024 = vpop.f32.mrf.mxu0
      %v1025 = vadd.f32 %v886, %v1024
      %v1026 = vpop.f32.mrf.mxu0
      %v1027 = vpop.f32.mrf.mxu0
      %v1028 = vadd.f32 %v887, %v1027
      %v1029 = vpop.f32.mrf.mxu0
      %1030 = vdwg.mxu0
      %v1031 = vadd.f32 %v956, %v900
      %v1032 = vadd.f32 %v959, %v901
      %v1033 = vadd.f32 %v964, %v902
      %v1034 = vadd.f32 %v967, %v903
      %v1035 = vadd.f32 %v1017, %v904
      %v1036 = vadd.f32 %v1020, %v905
      %v1037 = vadd.f32 %v1025, %v906
      %v1038 = vadd.f32 %v1028, %v907
      %v1039 = vsel %vm908, %v1031, -inf
      %1040 = vmax.xlane.f32.xlu0 %v1039
      %v1041 = vpop.xlane.xlu0 %1040
      %v1042 = vsel %vm908, %v1032, -inf
      %1043 = vmax.xlane.f32.xlu0 %v1042
      %v1044 = vpop.xlane.xlu0 %1043
      %v1045 = vsel %vm908, %v1033, -inf
      %1046 = vmax.xlane.f32.xlu0 %v1045
      %v1047 = vpop.xlane.xlu0 %1046
      %v1048 = vsel %vm908, %v1034, -inf
      %1049 = vmax.xlane.f32.xlu0 %v1048
      %v1050 = vpop.xlane.xlu0 %1049
      %v1051 = vsel %vm908, %v1035, -inf
      %1052 = vmax.xlane.f32.xlu0 %v1051
      %v1053 = vpop.xlane.xlu0 %1052
      %v1054 = vsel %vm908, %v1036, -inf
      %1055 = vmax.xlane.f32.xlu0 %v1054
      %v1056 = vpop.xlane.xlu0 %1055
      %v1057 = vsel %vm908, %v1037, -inf
      %1058 = vmax.xlane.f32.xlu0 %v1057
      %v1059 = vpop.xlane.xlu0 %1058
      %v1060 = vsel %vm908, %v1038, -inf
      %1061 = vmax.xlane.f32.xlu0 %v1060
      %v1062 = vpop.xlane.xlu0 %1061
      %v1063 = vsub.f32 %v1031, %v1041
      %v1064 = vsub.f32 %v1032, %v1044
      %v1065 = vsub.f32 %v1033, %v1047
      %v1066 = vsub.f32 %v1034, %v1050
      %v1067 = vsub.f32 %v1035, %v1053
      %v1068 = vsub.f32 %v1036, %v1056
      %v1069 = vsub.f32 %v1037, %v1059
      %v1070 = vsub.f32 %v1038, %v1062
      %v1071 = vmul.f32 %v1063, 1.442695
      %v1072 = vpow.pop %v1071
      %v1073 = vmul.f32 %v1064, 1.442695
      %v1074 = vpow.pop %v1073
      %v1075 = vmul.f32 %v1065, 1.442695
      %v1076 = vpow.pop %v1075
      %v1077 = vmul.f32 %v1066, 1.442695
      %v1078 = vpow.pop %v1077
      %v1079 = vmul.f32 %v1067, 1.442695
      %v1080 = vpow.pop %v1079
      %v1081 = vmul.f32 %v1068, 1.442695
      %v1082 = vpow.pop %v1081
      %v1083 = vmul.f32 %v1069, 1.442695
      %v1084 = vpow.pop %v1083
      %v1085 = vmul.f32 %v1070, 1.442695
      %v1086 = vpow.pop %v1085
      %v1087 = vsel %vm908, %v1072, 0.0
      %1088 = vadd.xlane.f32.xlu0 %v1087
      %v1089 = vpop.xlane.xlu0 %1088
      %v1090 = vsel %vm908, %v1074, 0.0
      %1091 = vadd.xlane.f32.xlu0 %v1090
      %v1092 = vpop.xlane.xlu0 %1091
      %v1093 = vsel %vm908, %v1076, 0.0
      %1094 = vadd.xlane.f32.xlu0 %v1093
      %v1095 = vpop.xlane.xlu0 %1094
      %v1096 = vsel %vm908, %v1078, 0.0
      %1097 = vadd.xlane.f32.xlu0 %v1096
      %v1098 = vpop.xlane.xlu0 %1097
      %v1099 = vsel %vm908, %v1080, 0.0
      %1100 = vadd.xlane.f32.xlu0 %v1099
      %v1101 = vpop.xlane.xlu0 %1100
      %v1102 = vsel %vm908, %v1082, 0.0
      %1103 = vadd.xlane.f32.xlu0 %v1102
      %v1104 = vpop.xlane.xlu0 %1103
      %v1105 = vsel %vm908, %v1084, 0.0
      %1106 = vadd.xlane.f32.xlu0 %v1105
      %v1107 = vpop.xlane.xlu0 %1106
      %v1108 = vsel %vm908, %v1086, 0.0
      %1109 = vadd.xlane.f32.xlu0 %v1108
      %v1110 = vpop.xlane.xlu0 %1109
      %v1111 = vrcp.pop %v1089
      %v1112 = vrcp.pop %v1092
      %v1113 = vrcp.pop %v1095
      %v1114 = vrcp.pop %v1098
      %v1115 = vrcp.pop %v1101
      %v1116 = vrcp.pop %v1104
      %v1117 = vrcp.pop %v1107
      %v1118 = vrcp.pop %v1110
      %v1119 = vmul.f32 %v1072, %v1111
      %v1120 = vmul.f32 %v1074, %v1112
      %v1121 = vmul.f32 %v1076, %v1113
      %v1122 = vmul.f32 %v1078, %v1114
      %v1123 = vmul.f32 %v1080, %v1115
      %v1124 = vmul.f32 %v1082, %v1116
      %v1125 = vmul.f32 %v1084, %v1117
      %v1126 = vmul.f32 %v1086, %v1118
      %v1127 = vpack.c.bf16 %v1120, %v1119
      %v1128 = vpack.c.bf16 %v1122, %v1121
      %v1129 = vpack.c.bf16 %v1124, %v1123
      %v1130 = vpack.c.bf16 %v1126, %v1125
      %v1132 = vsel %vm908, %v1127, 0
      %v1135 = vsel %vm908, %v1128, 0
      %1137 = vmatprep.subr.bf16.mxu0 0
      %1138 = vmatpush1.bf16.msra.mxu0 0
      %1139 = vmatprep.subr.bf16.mxu0 0
      %1140 = vmatpush1.bf16.msra.mxu0 0
      %1141 = vmatprep.subr.bf16.mxu0 0
      %1142 = vmatpush1.bf16.msra.mxu0 0
      %1143 = vmatprep.subr.bf16.mxu0 0
      %1144 = vmatpush1.bf16.msra.mxu0 0
      %1145 = vmatprep.subr.bf16.mxu0 0
      %1146 = vmatpush1.bf16.msra.mxu0 0
      %1147 = vmatprep.subr.bf16.mxu0 0
      %1148 = vmatpush1.bf16.msra.mxu0 0
      %1149 = vmatprep.subr.bf16.mxu0 0
      %1150 = vmatpush1.bf16.msra.mxu0 %v881
      %1151 = vmatprep.subr.bf16.mxu0 0
      %1152 = vmatpush1.bf16.msra.mxu0 %v880
      %1153 = vmatprep.subr.bf16.mxu0 0
      %1154 = vmatpush2.bf16.msra.mxu0 0
      %1155 = vmatprep.subr.bf16.mxu0 0
      %1156 = vmatpush2.bf16.msra.mxu0 0
      %1157 = vmatprep.subr.bf16.mxu0 0
      %1158 = vmatpush2.bf16.msra.mxu0 0
      %1159 = vmatprep.subr.bf16.mxu0 0
      %1160 = vmatpush2.bf16.msra.mxu0 0
      %1161 = vmatprep.subr.bf16.mxu0 0
      %1162 = vmatpush2.bf16.msra.mxu0 0
      %1163 = vmatprep.subr.bf16.mxu0 0
      %1164 = vmatpush2.bf16.msra.mxu0 0
      %1165 = vmatprep.subr.bf16.mxu0 0
      %1166 = vmatpush2.bf16.msra.mxu0 0
      %1167 = vmatprep.subr.bf16.mxu0 0
      %1168 = vmatpush2.bf16.msra.mxu0 0
      %1169 = vmatprep.mubr.bf16.mxu0 0
      %1170 = vmatmul.mubr.bf16.gmra.mxu0 %v1132
      %v1171 = vpop.f32.mrf.mxu0
      %v1172 = vadd.f32 0.0, %v1171
      %v1173 = vpop.f32.mrf.mxu0
      %v1174 = vpop.f32.mrf.mxu0
      %v1175 = vadd.f32 0.0, %v1174
      %v1176 = vpop.f32.mrf.mxu0
      %1177 = vmatprep.mubr.bf16.mxu0 0
      %1178 = vmatmul.mubr.bf16.gmra.mxu0 %v1135
      %v1179 = vpop.f32.mrf.mxu0
      %v1180 = vadd.f32 0.0, %v1179
      %v1181 = vpop.f32.mrf.mxu0
      %v1182 = vpop.f32.mrf.mxu0
      %v1183 = vadd.f32 0.0, %v1182
      %v1184 = vpop.f32.mrf.mxu0
      %1185 = vdwg.mxu0
      %v1187 = vsel %vm908, %v1129, 0
      %v1190 = vsel %vm908, %v1130, 0
      %1192 = vmatprep.subr.bf16.mxu0 0
      %1193 = vmatpush1.bf16.msra.mxu0 0
      %1194 = vmatprep.subr.bf16.mxu0 0
      %1195 = vmatpush1.bf16.msra.mxu0 0
      %1196 = vmatprep.subr.bf16.mxu0 0
      %1197 = vmatpush1.bf16.msra.mxu0 0
      %1198 = vmatprep.subr.bf16.mxu0 0
      %1199 = vmatpush1.bf16.msra.mxu0 0
      %1200 = vmatprep.subr.bf16.mxu0 0
      %1201 = vmatpush1.bf16.msra.mxu0 0
      %1202 = vmatprep.subr.bf16.mxu0 0
      %1203 = vmatpush1.bf16.msra.mxu0 0
      %1204 = vmatprep.subr.bf16.mxu0 0
      %1205 = vmatpush1.bf16.msra.mxu0 %v883
      %1206 = vmatprep.subr.bf16.mxu0 0
      %1207 = vmatpush1.bf16.msra.mxu0 %v882
      %1208 = vmatprep.subr.bf16.mxu0 0
      %1209 = vmatpush2.bf16.msra.mxu0 0
      %1210 = vmatprep.subr.bf16.mxu0 0
      %1211 = vmatpush2.bf16.msra.mxu0 0
      %1212 = vmatprep.subr.bf16.mxu0 0
      %1213 = vmatpush2.bf16.msra.mxu0 0
      %1214 = vmatprep.subr.bf16.mxu0 0
      %1215 = vmatpush2.bf16.msra.mxu0 0
      %1216 = vmatprep.subr.bf16.mxu0 0
      %1217 = vmatpush2.bf16.msra.mxu0 0
      %1218 = vmatprep.subr.bf16.mxu0 0
      %1219 = vmatpush2.bf16.msra.mxu0 0
      %1220 = vmatprep.subr.bf16.mxu0 0
      %1221 = vmatpush2.bf16.msra.mxu0 0
      %1222 = vmatprep.subr.bf16.mxu0 0
      %1223 = vmatpush2.bf16.msra.mxu0 0
      %1224 = vmatprep.mubr.bf16.mxu0 0
      %1225 = vmatmul.mubr.bf16.gmra.mxu0 %v1187
      %v1226 = vpop.f32.mrf.mxu0
      %v1227 = vadd.f32 0.0, %v1226
      %v1228 = vpop.f32.mrf.mxu0
      %v1229 = vpop.f32.mrf.mxu0
      %v1230 = vadd.f32 0.0, %v1229
      %v1231 = vpop.f32.mrf.mxu0
      %1232 = vmatprep.mubr.bf16.mxu0 0
      %1233 = vmatmul.mubr.bf16.gmra.mxu0 %v1190
      %v1234 = vpop.f32.mrf.mxu0
      %v1235 = vadd.f32 0.0, %v1234
      %v1236 = vpop.f32.mrf.mxu0
      %v1237 = vpop.f32.mrf.mxu0
      %v1238 = vadd.f32 0.0, %v1237
      %v1239 = vpop.f32.mrf.mxu0
      %1240 = vdwg.mxu0
      %1241 = vst.msk [vmem:[#allocation2] sm:$0xff] %vm908, %v1172
      %1242 = vst.msk [vmem:[#allocation2 + $0x8] sm:$0xff] %vm908, %v1175
      %1243 = vst.msk [vmem:[#allocation2 + $0x10] sm:$0xff] %vm908, %v1180
      %1244 = vst.msk [vmem:[#allocation2 + $0x18] sm:$0xff] %vm908, %v1183
      %1245 = vst.msk [vmem:[#allocation2 + $0x20] sm:$0xff] %vm908, %v1227
      %1246 = vst.msk [vmem:[#allocation2 + $0x28] sm:$0xff] %vm908, %v1230
      %1247 = vst.msk [vmem:[#allocation2 + $0x30] sm:$0xff] %vm908, %v1235
      %1248 = vst.msk [vmem:[#allocation2 + $0x38] sm:$0xff] %vm908, %v1238
      %1251 = vrot.lane.b32.xlu0 %v872, 96
      %v1252 = vpop.permute.xlu0 %1251
      %1253 = vrot.lane.b32.xlu0 %v873, 96
      %v1254 = vpop.permute.xlu0 %1253
      %1257 = vrot.lane.b32.xlu0 %v876, 96
      %v1258 = vpop.permute.xlu0 %1257
      %1259 = vrot.lane.b32.xlu0 %v877, 96
      %v1260 = vpop.permute.xlu0 %1259
      %v1262 = vsel %vm908, %v1252, 0
      %v1265 = vsel %vm908, %v1254, 0
      %v1268 = vsel %vm908, %v1258, 0
      %v1271 = vsel %vm908, %v1260, 0
      %1273 = vmatprep.subr.bf16.mxu0 0
      %1274 = vmatpush1.bf16.xpose.msra.mxu0 0
      %1275 = vmatprep.subr.bf16.mxu0 0
      %1276 = vmatpush1.bf16.xpose.msra.mxu0 0
      %1277 = vmatprep.subr.bf16.mxu0 0
      %1278 = vmatpush1.bf16.xpose.msra.mxu0 0
      %1279 = vmatprep.subr.bf16.mxu0 0
      %1280 = vmatpush1.bf16.xpose.msra.mxu0 0
      %1281 = vmatprep.subr.bf16.mxu0 0
      %1282 = vmatpush1.bf16.xpose.msra.mxu0 0
      %1283 = vmatprep.subr.bf16.mxu0 0
      %1284 = vmatpush1.bf16.xpose.msra.mxu0 0
      %1285 = vmatprep.subr.bf16.mxu0 0
      %1286 = vmatpush1.bf16.xpose.msra.mxu0 %v1271
      %1287 = vmatprep.subr.bf16.mxu0 0
      %1288 = vmatpush1.bf16.xpose.msra.mxu0 %v1268
      %1289 = vmatprep.subr.bf16.mxu0 0
      %1290 = vmatpush2.bf16.xpose.msra.mxu0 0
      %1291 = vmatprep.subr.bf16.mxu0 0
      %1292 = vmatpush2.bf16.xpose.msra.mxu0 0
      %1293 = vmatprep.subr.bf16.mxu0 0
      %1294 = vmatpush2.bf16.xpose.msra.mxu0 0
      %1295 = vmatprep.subr.bf16.mxu0 0
      %1296 = vmatpush2.bf16.xpose.msra.mxu0 0
      %1297 = vmatprep.subr.bf16.mxu0 0
      %1298 = vmatpush2.bf16.xpose.msra.mxu0 0
      %1299 = vmatprep.subr.bf16.mxu0 0
      %1300 = vmatpush2.bf16.xpose.msra.mxu0 0
      %1301 = vmatprep.subr.bf16.mxu0 0
      %1302 = vmatpush2.bf16.xpose.msra.mxu0 0
      %1303 = vmatprep.subr.bf16.mxu0 0
      %1304 = vmatpush2.bf16.xpose.msra.mxu0 0
      %1305 = vmatprep.mubr.bf16.mxu0 0
      %1306 = vmatmul.mubr.bf16.gmra.mxu0 %v1262
      %v1307 = vpop.f32.mrf.mxu0
      %v1308 = vadd.f32 %v888, %v1307
      %v1309 = vpop.f32.mrf.mxu0
      %v1310 = vpop.f32.mrf.mxu0
      %v1311 = vadd.f32 %v889, %v1310
      %v1312 = vpop.f32.mrf.mxu0
      %1313 = vmatprep.mubr.bf16.mxu0 0
      %1314 = vmatmul.mubr.bf16.gmra.mxu0 %v1265
      %v1315 = vpop.f32.mrf.mxu0
      %v1316 = vadd.f32 %v890, %v1315
      %v1317 = vpop.f32.mrf.mxu0
      %v1318 = vpop.f32.mrf.mxu0
      %v1319 = vadd.f32 %v891, %v1318
      %v1320 = vpop.f32.mrf.mxu0
      %1321 = vdwg.mxu0
      %1324 = vrot.lane.b32.xlu0 %v874, 96
      %v1325 = vpop.permute.xlu0 %1324
      %1326 = vrot.lane.b32.xlu0 %v875, 96
      %v1327 = vpop.permute.xlu0 %1326
      %1330 = vrot.lane.b32.xlu0 %v878, 96
      %v1331 = vpop.permute.xlu0 %1330
      %1332 = vrot.lane.b32.xlu0 %v879, 96
      %v1333 = vpop.permute.xlu0 %1332
      %v1335 = vsel %vm908, %v1325, 0
      %v1338 = vsel %vm908, %v1327, 0
      %v1341 = vsel %vm908, %v1331, 0
      %v1344 = vsel %vm908, %v1333, 0
      %1346 = vmatprep.subr.bf16.mxu0 0
      %1347 = vmatpush1.bf16.xpose.msra.mxu0 0
      %1348 = vmatprep.subr.bf16.mxu0 0
      %1349 = vmatpush1.bf16.xpose.msra.mxu0 0
      %1350 = vmatprep.subr.bf16.mxu0 0
      %1351 = vmatpush1.bf16.xpose.msra.mxu0 0
      %1352 = vmatprep.subr.bf16.mxu0 0
      %1353 = vmatpush1.bf16.xpose.msra.mxu0 0
      %1354 = vmatprep.subr.bf16.mxu0 0
      %1355 = vmatpush1.bf16.xpose.msra.mxu0 0
      %1356 = vmatprep.subr.bf16.mxu0 0
      %1357 = vmatpush1.bf16.xpose.msra.mxu0 0
      %1358 = vmatprep.subr.bf16.mxu0 0
      %1359 = vmatpush1.bf16.xpose.msra.mxu0 %v1344
      %1360 = vmatprep.subr.bf16.mxu0 0
      %1361 = vmatpush1.bf16.xpose.msra.mxu0 %v1341
      %1362 = vmatprep.subr.bf16.mxu0 0
      %1363 = vmatpush2.bf16.xpose.msra.mxu0 0
      %1364 = vmatprep.subr.bf16.mxu0 0
      %1365 = vmatpush2.bf16.xpose.msra.mxu0 0
      %1366 = vmatprep.subr.bf16.mxu0 0
      %1367 = vmatpush2.bf16.xpose.msra.mxu0 0
      %1368 = vmatprep.subr.bf16.mxu0 0
      %1369 = vmatpush2.bf16.xpose.msra.mxu0 0
      %1370 = vmatprep.subr.bf16.mxu0 0
      %1371 = vmatpush2.bf16.xpose.msra.mxu0 0
      %1372 = vmatprep.subr.bf16.mxu0 0
      %1373 = vmatpush2.bf16.xpose.msra.mxu0 0
      %1374 = vmatprep.subr.bf16.mxu0 0
      %1375 = vmatpush2.bf16.xpose.msra.mxu0 0
      %1376 = vmatprep.subr.bf16.mxu0 0
      %1377 = vmatpush2.bf16.xpose.msra.mxu0 0
      %1378 = vmatprep.mubr.bf16.mxu0 0
      %1379 = vmatmul.mubr.bf16.gmra.mxu0 %v1335
      %v1380 = vpop.f32.mrf.mxu0
      %v1381 = vadd.f32 %v888, %v1380
      %v1382 = vpop.f32.mrf.mxu0
      %v1383 = vpop.f32.mrf.mxu0
      %v1384 = vadd.f32 %v889, %v1383
      %v1385 = vpop.f32.mrf.mxu0
      %1386 = vmatprep.mubr.bf16.mxu0 0
      %1387 = vmatmul.mubr.bf16.gmra.mxu0 %v1338
      %v1388 = vpop.f32.mrf.mxu0
      %v1389 = vadd.f32 %v890, %v1388
      %v1390 = vpop.f32.mrf.mxu0
      %v1391 = vpop.f32.mrf.mxu0
      %v1392 = vadd.f32 %v891, %v1391
      %v1393 = vpop.f32.mrf.mxu0
      %1394 = vdwg.mxu0
      %v1395 = vadd.f32 %v1308, %v900
      %v1396 = vadd.f32 %v1311, %v901
      %v1397 = vadd.f32 %v1316, %v902
      %v1398 = vadd.f32 %v1319, %v903
      %v1399 = vadd.f32 %v1381, %v904
      %v1400 = vadd.f32 %v1384, %v905
      %v1401 = vadd.f32 %v1389, %v906
      %v1402 = vadd.f32 %v1392, %v907
      %v1403 = vsel %vm908, %v1395, -inf
      %1404 = vmax.xlane.f32.xlu0 %v1403
      %v1405 = vpop.xlane.xlu0 %1404
      %v1406 = vsel %vm908, %v1396, -inf
      %1407 = vmax.xlane.f32.xlu0 %v1406
      %v1408 = vpop.xlane.xlu0 %1407
      %v1409 = vsel %vm908, %v1397, -inf
      %1410 = vmax.xlane.f32.xlu0 %v1409
      %v1411 = vpop.xlane.xlu0 %1410
      %v1412 = vsel %vm908, %v1398, -inf
      %1413 = vmax.xlane.f32.xlu0 %v1412
      %v1414 = vpop.xlane.xlu0 %1413
      %v1415 = vsel %vm908, %v1399, -inf
      %1416 = vmax.xlane.f32.xlu0 %v1415
      %v1417 = vpop.xlane.xlu0 %1416
      %v1418 = vsel %vm908, %v1400, -inf
      %1419 = vmax.xlane.f32.xlu0 %v1418
      %v1420 = vpop.xlane.xlu0 %1419
      %v1421 = vsel %vm908, %v1401, -inf
      %1422 = vmax.xlane.f32.xlu0 %v1421
      %v1423 = vpop.xlane.xlu0 %1422
      %v1424 = vsel %vm908, %v1402, -inf
      %1425 = vmax.xlane.f32.xlu0 %v1424
      %v1426 = vpop.xlane.xlu0 %1425
      %v1427 = vsub.f32 %v1395, %v1405
      %v1428 = vsub.f32 %v1396, %v1408
      %v1429 = vsub.f32 %v1397, %v1411
      %v1430 = vsub.f32 %v1398, %v1414
      %v1431 = vsub.f32 %v1399, %v1417
      %v1432 = vsub.f32 %v1400, %v1420
      %v1433 = vsub.f32 %v1401, %v1423
      %v1434 = vsub.f32 %v1402, %v1426
      %v1435 = vmul.f32 %v1427, 1.442695
      %v1436 = vpow.pop %v1435
      %v1437 = vmul.f32 %v1428, 1.442695
      %v1438 = vpow.pop %v1437
      %v1439 = vmul.f32 %v1429, 1.442695
      %v1440 = vpow.pop %v1439
      %v1441 = vmul.f32 %v1430, 1.442695
      %v1442 = vpow.pop %v1441
      %v1443 = vmul.f32 %v1431, 1.442695
      %v1444 = vpow.pop %v1443
      %v1445 = vmul.f32 %v1432, 1.442695
      %v1446 = vpow.pop %v1445
      %v1447 = vmul.f32 %v1433, 1.442695
      %v1448 = vpow.pop %v1447
      %v1449 = vmul.f32 %v1434, 1.442695
      %v1450 = vpow.pop %v1449
      %v1451 = vsel %vm908, %v1436, 0.0
      %1452 = vadd.xlane.f32.xlu0 %v1451
      %v1453 = vpop.xlane.xlu0 %1452
      %v1454 = vsel %vm908, %v1438, 0.0
      %1455 = vadd.xlane.f32.xlu0 %v1454
      %v1456 = vpop.xlane.xlu0 %1455
      %v1457 = vsel %vm908, %v1440, 0.0
      %1458 = vadd.xlane.f32.xlu0 %v1457
      %v1459 = vpop.xlane.xlu0 %1458
      %v1460 = vsel %vm908, %v1442, 0.0
      %1461 = vadd.xlane.f32.xlu0 %v1460
      %v1462 = vpop.xlane.xlu0 %1461
      %v1463 = vsel %vm908, %v1444, 0.0
      %1464 = vadd.xlane.f32.xlu0 %v1463
      %v1465 = vpop.xlane.xlu0 %1464
      %v1466 = vsel %vm908, %v1446, 0.0
      %1467 = vadd.xlane.f32.xlu0 %v1466
      %v1468 = vpop.xlane.xlu0 %1467
      %v1469 = vsel %vm908, %v1448, 0.0
      %1470 = vadd.xlane.f32.xlu0 %v1469
      %v1471 = vpop.xlane.xlu0 %1470
      %v1472 = vsel %vm908, %v1450, 0.0
      %1473 = vadd.xlane.f32.xlu0 %v1472
      %v1474 = vpop.xlane.xlu0 %1473
      %v1475 = vrcp.pop %v1453
      %v1476 = vrcp.pop %v1456
      %v1477 = vrcp.pop %v1459
      %v1478 = vrcp.pop %v1462
      %v1479 = vrcp.pop %v1465
      %v1480 = vrcp.pop %v1468
      %v1481 = vrcp.pop %v1471
      %v1482 = vrcp.pop %v1474
      %v1483 = vmul.f32 %v1436, %v1475
      %v1484 = vmul.f32 %v1438, %v1476
      %v1485 = vmul.f32 %v1440, %v1477
      %v1486 = vmul.f32 %v1442, %v1478
      %v1487 = vmul.f32 %v1444, %v1479
      %v1488 = vmul.f32 %v1446, %v1480
      %v1489 = vmul.f32 %v1448, %v1481
      %v1490 = vmul.f32 %v1450, %v1482
      %v1491 = vpack.c.bf16 %v1484, %v1483
      %v1492 = vpack.c.bf16 %v1486, %v1485
      %v1493 = vpack.c.bf16 %v1488, %v1487
      %v1494 = vpack.c.bf16 %v1490, %v1489
      %1497 = vrot.lane.b32.xlu0 %v880, 96
      %v1498 = vpop.permute.xlu0 %1497
      %1499 = vrot.lane.b32.xlu0 %v881, 96
      %v1500 = vpop.permute.xlu0 %1499
      %v1504 = vsel %vm908, %v1491, 0
      %v1507 = vsel %vm908, %v1492, 0
      %1509 = vmatprep.subr.bf16.mxu0 0
      %1510 = vmatpush1.bf16.msra.mxu0 0
      %1511 = vmatprep.subr.bf16.mxu0 0
      %1512 = vmatpush1.bf16.msra.mxu0 0
      %1513 = vmatprep.subr.bf16.mxu0 0
      %1514 = vmatpush1.bf16.msra.mxu0 0
      %1515 = vmatprep.subr.bf16.mxu0 0
      %1516 = vmatpush1.bf16.msra.mxu0 0
      %1517 = vmatprep.subr.bf16.mxu0 0
      %1518 = vmatpush1.bf16.msra.mxu0 0
      %1519 = vmatprep.subr.bf16.mxu0 0
      %1520 = vmatpush1.bf16.msra.mxu0 0
      %1521 = vmatprep.subr.bf16.mxu0 0
      %1522 = vmatpush1.bf16.msra.mxu0 %v1500
      %1523 = vmatprep.subr.bf16.mxu0 0
      %1524 = vmatpush1.bf16.msra.mxu0 %v1498
      %1525 = vmatprep.subr.bf16.mxu0 0
      %1526 = vmatpush2.bf16.msra.mxu0 0
      %1527 = vmatprep.subr.bf16.mxu0 0
      %1528 = vmatpush2.bf16.msra.mxu0 0
      %1529 = vmatprep.subr.bf16.mxu0 0
      %1530 = vmatpush2.bf16.msra.mxu0 0
      %1531 = vmatprep.subr.bf16.mxu0 0
      %1532 = vmatpush2.bf16.msra.mxu0 0
      %1533 = vmatprep.subr.bf16.mxu0 0
      %1534 = vmatpush2.bf16.msra.mxu0 0
      %1535 = vmatprep.subr.bf16.mxu0 0
      %1536 = vmatpush2.bf16.msra.mxu0 0
      %1537 = vmatprep.subr.bf16.mxu0 0
      %1538 = vmatpush2.bf16.msra.mxu0 0
      %1539 = vmatprep.subr.bf16.mxu0 0
      %1540 = vmatpush2.bf16.msra.mxu0 0
      %1541 = vmatprep.mubr.bf16.mxu0 0
      %1542 = vmatmul.mubr.bf16.gmra.mxu0 %v1504
      %v1543 = vpop.f32.mrf.mxu0
      %v1544 = vadd.f32 0.0, %v1543
      %v1545 = vpop.f32.mrf.mxu0
      %v1546 = vpop.f32.mrf.mxu0
      %v1547 = vadd.f32 0.0, %v1546
      %v1548 = vpop.f32.mrf.mxu0
      %1549 = vmatprep.mubr.bf16.mxu0 0
      %1550 = vmatmul.mubr.bf16.gmra.mxu0 %v1507
      %v1551 = vpop.f32.mrf.mxu0
      %v1552 = vadd.f32 0.0, %v1551
      %v1553 = vpop.f32.mrf.mxu0
      %v1554 = vpop.f32.mrf.mxu0
      %v1555 = vadd.f32 0.0, %v1554
      %v1556 = vpop.f32.mrf.mxu0
      %1557 = vdwg.mxu0
      %1560 = vrot.lane.b32.xlu0 %v882, 96
      %v1561 = vpop.permute.xlu0 %1560
      %1562 = vrot.lane.b32.xlu0 %v883, 96
      %v1563 = vpop.permute.xlu0 %1562
      %v1567 = vsel %vm908, %v1493, 0
      %v1570 = vsel %vm908, %v1494, 0
      %1572 = vmatprep.subr.bf16.mxu0 0
      %1573 = vmatpush1.bf16.msra.mxu0 0
      %1574 = vmatprep.subr.bf16.mxu0 0
      %1575 = vmatpush1.bf16.msra.mxu0 0
      %1576 = vmatprep.subr.bf16.mxu0 0
      %1577 = vmatpush1.bf16.msra.mxu0 0
      %1578 = vmatprep.subr.bf16.mxu0 0
      %1579 = vmatpush1.bf16.msra.mxu0 0
      %1580 = vmatprep.subr.bf16.mxu0 0
      %1581 = vmatpush1.bf16.msra.mxu0 0
      %1582 = vmatprep.subr.bf16.mxu0 0
      %1583 = vmatpush1.bf16.msra.mxu0 0
      %1584 = vmatprep.subr.bf16.mxu0 0
      %1585 = vmatpush1.bf16.msra.mxu0 %v1563
      %1586 = vmatprep.subr.bf16.mxu0 0
      %1587 = vmatpush1.bf16.msra.mxu0 %v1561
      %1588 = vmatprep.subr.bf16.mxu0 0
      %1589 = vmatpush2.bf16.msra.mxu0 0
      %1590 = vmatprep.subr.bf16.mxu0 0
      %1591 = vmatpush2.bf16.msra.mxu0 0
      %1592 = vmatprep.subr.bf16.mxu0 0
      %1593 = vmatpush2.bf16.msra.mxu0 0
      %1594 = vmatprep.subr.bf16.mxu0 0
      %1595 = vmatpush2.bf16.msra.mxu0 0
      %1596 = vmatprep.subr.bf16.mxu0 0
      %1597 = vmatpush2.bf16.msra.mxu0 0
      %1598 = vmatprep.subr.bf16.mxu0 0
      %1599 = vmatpush2.bf16.msra.mxu0 0
      %1600 = vmatprep.subr.bf16.mxu0 0
      %1601 = vmatpush2.bf16.msra.mxu0 0
      %1602 = vmatprep.subr.bf16.mxu0 0
      %1603 = vmatpush2.bf16.msra.mxu0 0
      %1604 = vmatprep.mubr.bf16.mxu0 0
      %1605 = vmatmul.mubr.bf16.gmra.mxu0 %v1567
      %v1606 = vpop.f32.mrf.mxu0
      %v1607 = vadd.f32 0.0, %v1606
      %v1608 = vpop.f32.mrf.mxu0
      %v1609 = vpop.f32.mrf.mxu0
      %v1610 = vadd.f32 0.0, %v1609
      %v1611 = vpop.f32.mrf.mxu0
      %1612 = vmatprep.mubr.bf16.mxu0 0
      %1613 = vmatmul.mubr.bf16.gmra.mxu0 %v1570
      %v1614 = vpop.f32.mrf.mxu0
      %v1615 = vadd.f32 0.0, %v1614
      %v1616 = vpop.f32.mrf.mxu0
      %v1617 = vpop.f32.mrf.mxu0
      %v1618 = vadd.f32 0.0, %v1617
      %v1619 = vpop.f32.mrf.mxu0
      %1620 = vdwg.mxu0
      %1629 = vrot.lane.b32.xlu0 %v1544, 32
      %v1630 = vpop.permute.xlu0 %1629
      %1631 = vrot.lane.b32.xlu0 %v1547, 32
      %v1632 = vpop.permute.xlu0 %1631
      %1633 = vrot.lane.b32.xlu0 %v1552, 32
      %v1634 = vpop.permute.xlu0 %1633
      %1635 = vrot.lane.b32.xlu0 %v1555, 32
      %v1636 = vpop.permute.xlu0 %1635
      %1637 = vrot.lane.b32.xlu0 %v1607, 32
      %v1638 = vpop.permute.xlu0 %1637
      %1639 = vrot.lane.b32.xlu0 %v1610, 32
      %v1640 = vpop.permute.xlu0 %1639
      %1641 = vrot.lane.b32.xlu0 %v1615, 32
      %v1642 = vpop.permute.xlu0 %1641
      %1643 = vrot.lane.b32.xlu0 %v1618, 32
      %v1644 = vpop.permute.xlu0 %1643
      %vm1653 = vcmask 523520
      %1654 = vst.msk [vmem:[#allocation2] sm:$0xff] %vm1653, %v1630
      %1655 = vst.msk [vmem:[#allocation2 + $0x8] sm:$0xff] %vm1653, %v1632
      %1656 = vst.msk [vmem:[#allocation2 + $0x10] sm:$0xff] %vm1653, %v1634
      %1657 = vst.msk [vmem:[#allocation2 + $0x18] sm:$0xff] %vm1653, %v1636
      %1658 = vst.msk [vmem:[#allocation2 + $0x20] sm:$0xff] %vm1653, %v1638
      %1659 = vst.msk [vmem:[#allocation2 + $0x28] sm:$0xff] %vm1653, %v1640
      %1660 = vst.msk [vmem:[#allocation2 + $0x30] sm:$0xff] %vm1653, %v1642
      %1661 = vst.msk [vmem:[#allocation2 + $0x38] sm:$0xff] %vm1653, %v1644
      %1662 = vrot.lane.b32.xlu0 %v872, 64
      %v1663 = vpop.permute.xlu0 %1662
      %1664 = vrot.lane.b32.xlu0 %v873, 64
      %v1665 = vpop.permute.xlu0 %1664
      %1666 = vrot.lane.b32.xlu0 %v876, 64
      %v1667 = vpop.permute.xlu0 %1666
      %1668 = vrot.lane.b32.xlu0 %v877, 64
      %v1669 = vpop.permute.xlu0 %1668
      %v1671 = vsel %vm908, %v1663, 0
      %v1674 = vsel %vm908, %v1665, 0
      %v1677 = vsel %vm908, %v1667, 0
      %v1680 = vsel %vm908, %v1669, 0
      %1682 = vmatprep.subr.bf16.mxu0 0
      %1683 = vmatpush1.bf16.xpose.msra.mxu0 0
      %1684 = vmatprep.subr.bf16.mxu0 0
      %1685 = vmatpush1.bf16.xpose.msra.mxu0 0
      %1686 = vmatprep.subr.bf16.mxu0 0
      %1687 = vmatpush1.bf16.xpose.msra.mxu0 0
      %1688 = vmatprep.subr.bf16.mxu0 0
      %1689 = vmatpush1.bf16.xpose.msra.mxu0 0
      %1690 = vmatprep.subr.bf16.mxu0 0
      %1691 = vmatpush1.bf16.xpose.msra.mxu0 0
      %1692 = vmatprep.subr.bf16.mxu0 0
      %1693 = vmatpush1.bf16.xpose.msra.mxu0 0
      %1694 = vmatprep.subr.bf16.mxu0 0
      %1695 = vmatpush1.bf16.xpose.msra.mxu0 %v1680
      %1696 = vmatprep.subr.bf16.mxu0 0
      %1697 = vmatpush1.bf16.xpose.msra.mxu0 %v1677
      %1698 = vmatprep.subr.bf16.mxu0 0
      %1699 = vmatpush2.bf16.xpose.msra.mxu0 0
      %1700 = vmatprep.subr.bf16.mxu0 0
      %1701 = vmatpush2.bf16.xpose.msra.mxu0 0
      %1702 = vmatprep.subr.bf16.mxu0 0
      %1703 = vmatpush2.bf16.xpose.msra.mxu0 0
      %1704 = vmatprep.subr.bf16.mxu0 0
      %1705 = vmatpush2.bf16.xpose.msra.mxu0 0
      %1706 = vmatprep.subr.bf16.mxu0 0
      %1707 = vmatpush2.bf16.xpose.msra.mxu0 0
      %1708 = vmatprep.subr.bf16.mxu0 0
      %1709 = vmatpush2.bf16.xpose.msra.mxu0 0
      %1710 = vmatprep.subr.bf16.mxu0 0
      %1711 = vmatpush2.bf16.xpose.msra.mxu0 0
      %1712 = vmatprep.subr.bf16.mxu0 0
      %1713 = vmatpush2.bf16.xpose.msra.mxu0 0
      %1714 = vmatprep.mubr.bf16.mxu0 0
      %1715 = vmatmul.mubr.bf16.gmra.mxu0 %v1671
      %v1716 = vpop.f32.mrf.mxu0
      %v1717 = vadd.f32 %v892, %v1716
      %v1718 = vpop.f32.mrf.mxu0
      %v1719 = vpop.f32.mrf.mxu0
      %v1720 = vadd.f32 %v893, %v1719
      %v1721 = vpop.f32.mrf.mxu0
      %1722 = vmatprep.mubr.bf16.mxu0 0
      %1723 = vmatmul.mubr.bf16.gmra.mxu0 %v1674
      %v1724 = vpop.f32.mrf.mxu0
      %v1725 = vadd.f32 %v894, %v1724
      %v1726 = vpop.f32.mrf.mxu0
      %v1727 = vpop.f32.mrf.mxu0
      %v1728 = vadd.f32 %v895, %v1727
      %v1729 = vpop.f32.mrf.mxu0
      %1730 = vdwg.mxu0
      %1731 = vrot.lane.b32.xlu0 %v874, 64
      %v1732 = vpop.permute.xlu0 %1731
      %1733 = vrot.lane.b32.xlu0 %v875, 64
      %v1734 = vpop.permute.xlu0 %1733
      %1735 = vrot.lane.b32.xlu0 %v878, 64
      %v1736 = vpop.permute.xlu0 %1735
      %1737 = vrot.lane.b32.xlu0 %v879, 64
      %v1738 = vpop.permute.xlu0 %1737
      %v1740 = vsel %vm908, %v1732, 0
      %v1743 = vsel %vm908, %v1734, 0
      %v1746 = vsel %vm908, %v1736, 0
      %v1749 = vsel %vm908, %v1738, 0
      %1751 = vmatprep.subr.bf16.mxu0 0
      %1752 = vmatpush1.bf16.xpose.msra.mxu0 0
      %1753 = vmatprep.subr.bf16.mxu0 0
      %1754 = vmatpush1.bf16.xpose.msra.mxu0 0
      %1755 = vmatprep.subr.bf16.mxu0 0
      %1756 = vmatpush1.bf16.xpose.msra.mxu0 0
      %1757 = vmatprep.subr.bf16.mxu0 0
      %1758 = vmatpush1.bf16.xpose.msra.mxu0 0
      %1759 = vmatprep.subr.bf16.mxu0 0
      %1760 = vmatpush1.bf16.xpose.msra.mxu0 0
      %1761 = vmatprep.subr.bf16.mxu0 0
      %1762 = vmatpush1.bf16.xpose.msra.mxu0 0
      %1763 = vmatprep.subr.bf16.mxu0 0
      %1764 = vmatpush1.bf16.xpose.msra.mxu0 %v1749
      %1765 = vmatprep.subr.bf16.mxu0 0
      %1766 = vmatpush1.bf16.xpose.msra.mxu0 %v1746
      %1767 = vmatprep.subr.bf16.mxu0 0
      %1768 = vmatpush2.bf16.xpose.msra.mxu0 0
      %1769 = vmatprep.subr.bf16.mxu0 0
      %1770 = vmatpush2.bf16.xpose.msra.mxu0 0
      %1771 = vmatprep.subr.bf16.mxu0 0
      %1772 = vmatpush2.bf16.xpose.msra.mxu0 0
      %1773 = vmatprep.subr.bf16.mxu0 0
      %1774 = vmatpush2.bf16.xpose.msra.mxu0 0
      %1775 = vmatprep.subr.bf16.mxu0 0
      %1776 = vmatpush2.bf16.xpose.msra.mxu0 0
      %1777 = vmatprep.subr.bf16.mxu0 0
      %1778 = vmatpush2.bf16.xpose.msra.mxu0 0
      %1779 = vmatprep.subr.bf16.mxu0 0
      %1780 = vmatpush2.bf16.xpose.msra.mxu0 0
      %1781 = vmatprep.subr.bf16.mxu0 0
      %1782 = vmatpush2.bf16.xpose.msra.mxu0 0
      %1783 = vmatprep.mubr.bf16.mxu0 0
      %1784 = vmatmul.mubr.bf16.gmra.mxu0 %v1740
      %v1785 = vpop.f32.mrf.mxu0
      %v1786 = vadd.f32 %v892, %v1785
      %v1787 = vpop.f32.mrf.mxu0
      %v1788 = vpop.f32.mrf.mxu0
      %v1789 = vadd.f32 %v893, %v1788
      %v1790 = vpop.f32.mrf.mxu0
      %1791 = vmatprep.mubr.bf16.mxu0 0
      %1792 = vmatmul.mubr.bf16.gmra.mxu0 %v1743
      %v1793 = vpop.f32.mrf.mxu0
      %v1794 = vadd.f32 %v894, %v1793
      %v1795 = vpop.f32.mrf.mxu0
      %v1796 = vpop.f32.mrf.mxu0
      %v1797 = vadd.f32 %v895, %v1796
      %v1798 = vpop.f32.mrf.mxu0
      %1799 = vdwg.mxu0
      %v1800 = vadd.f32 %v1717, %v900
      %v1801 = vadd.f32 %v1720, %v901
      %v1802 = vadd.f32 %v1725, %v902
      %v1803 = vadd.f32 %v1728, %v903
      %v1804 = vadd.f32 %v1786, %v904
      %v1805 = vadd.f32 %v1789, %v905
      %v1806 = vadd.f32 %v1794, %v906
      %v1807 = vadd.f32 %v1797, %v907
      %v1808 = vsel %vm908, %v1800, -inf
      %1809 = vmax.xlane.f32.xlu0 %v1808
      %v1810 = vpop.xlane.xlu0 %1809
      %v1811 = vsel %vm908, %v1801, -inf
      %1812 = vmax.xlane.f32.xlu0 %v1811
      %v1813 = vpop.xlane.xlu0 %1812
      %v1814 = vsel %vm908, %v1802, -inf
      %1815 = vmax.xlane.f32.xlu0 %v1814
      %v1816 = vpop.xlane.xlu0 %1815
      %v1817 = vsel %vm908, %v1803, -inf
      %1818 = vmax.xlane.f32.xlu0 %v1817
      %v1819 = vpop.xlane.xlu0 %1818
      %v1820 = vsel %vm908, %v1804, -inf
      %1821 = vmax.xlane.f32.xlu0 %v1820
      %v1822 = vpop.xlane.xlu0 %1821
      %v1823 = vsel %vm908, %v1805, -inf
      %1824 = vmax.xlane.f32.xlu0 %v1823
      %v1825 = vpop.xlane.xlu0 %1824
      %v1826 = vsel %vm908, %v1806, -inf
      %1827 = vmax.xlane.f32.xlu0 %v1826
      %v1828 = vpop.xlane.xlu0 %1827
      %v1829 = vsel %vm908, %v1807, -inf
      %1830 = vmax.xlane.f32.xlu0 %v1829
      %v1831 = vpop.xlane.xlu0 %1830
      %v1832 = vsub.f32 %v1800, %v1810
      %v1833 = vsub.f32 %v1801, %v1813
      %v1834 = vsub.f32 %v1802, %v1816
      %v1835 = vsub.f32 %v1803, %v1819
      %v1836 = vsub.f32 %v1804, %v1822
      %v1837 = vsub.f32 %v1805, %v1825
      %v1838 = vsub.f32 %v1806, %v1828
      %v1839 = vsub.f32 %v1807, %v1831
      %v1840 = vmul.f32 %v1832, 1.442695
      %v1841 = vpow.pop %v1840
      %v1842 = vmul.f32 %v1833, 1.442695
      %v1843 = vpow.pop %v1842
      %v1844 = vmul.f32 %v1834, 1.442695
      %v1845 = vpow.pop %v1844
      %v1846 = vmul.f32 %v1835, 1.442695
      %v1847 = vpow.pop %v1846
      %v1848 = vmul.f32 %v1836, 1.442695
      %v1849 = vpow.pop %v1848
      %v1850 = vmul.f32 %v1837, 1.442695
      %v1851 = vpow.pop %v1850
      %v1852 = vmul.f32 %v1838, 1.442695
      %v1853 = vpow.pop %v1852
      %v1854 = vmul.f32 %v1839, 1.442695
      %v1855 = vpow.pop %v1854
      %v1856 = vsel %vm908, %v1841, 0.0
      %1857 = vadd.xlane.f32.xlu0 %v1856
      %v1858 = vpop.xlane.xlu0 %1857
      %v1859 = vsel %vm908, %v1843, 0.0
      %1860 = vadd.xlane.f32.xlu0 %v1859
      %v1861 = vpop.xlane.xlu0 %1860
      %v1862 = vsel %vm908, %v1845, 0.0
      %1863 = vadd.xlane.f32.xlu0 %v1862
      %v1864 = vpop.xlane.xlu0 %1863
      %v1865 = vsel %vm908, %v1847, 0.0
      %1866 = vadd.xlane.f32.xlu0 %v1865
      %v1867 = vpop.xlane.xlu0 %1866
      %v1868 = vsel %vm908, %v1849, 0.0
      %1869 = vadd.xlane.f32.xlu0 %v1868
      %v1870 = vpop.xlane.xlu0 %1869
      %v1871 = vsel %vm908, %v1851, 0.0
      %1872 = vadd.xlane.f32.xlu0 %v1871
      %v1873 = vpop.xlane.xlu0 %1872
      %v1874 = vsel %vm908, %v1853, 0.0
      %1875 = vadd.xlane.f32.xlu0 %v1874
      %v1876 = vpop.xlane.xlu0 %1875
      %v1877 = vsel %vm908, %v1855, 0.0
      %1878 = vadd.xlane.f32.xlu0 %v1877
      %v1879 = vpop.xlane.xlu0 %1878
      %v1880 = vrcp.pop %v1858
      %v1881 = vrcp.pop %v1861
      %v1882 = vrcp.pop %v1864
      %v1883 = vrcp.pop %v1867
      %v1884 = vrcp.pop %v1870
      %v1885 = vrcp.pop %v1873
      %v1886 = vrcp.pop %v1876
      %v1887 = vrcp.pop %v1879
      %v1888 = vmul.f32 %v1841, %v1880
      %v1889 = vmul.f32 %v1843, %v1881
      %v1890 = vmul.f32 %v1845, %v1882
      %v1891 = vmul.f32 %v1847, %v1883
      %v1892 = vmul.f32 %v1849, %v1884
      %v1893 = vmul.f32 %v1851, %v1885
      %v1894 = vmul.f32 %v1853, %v1886
      %v1895 = vmul.f32 %v1855, %v1887
      %v1896 = vpack.c.bf16 %v1889, %v1888
      %v1897 = vpack.c.bf16 %v1891, %v1890
      %v1898 = vpack.c.bf16 %v1893, %v1892
      %v1899 = vpack.c.bf16 %v1895, %v1894
      %1900 = vrot.lane.b32.xlu0 %v880, 64
      %v1901 = vpop.permute.xlu0 %1900
      %1902 = vrot.lane.b32.xlu0 %v881, 64
      %v1903 = vpop.permute.xlu0 %1902
      %v1907 = vsel %vm908, %v1896, 0
      %v1910 = vsel %vm908, %v1897, 0
      %1912 = vmatprep.subr.bf16.mxu0 0
      %1913 = vmatpush1.bf16.msra.mxu0 0
      %1914 = vmatprep.subr.bf16.mxu0 0
      %1915 = vmatpush1.bf16.msra.mxu0 0
      %1916 = vmatprep.subr.bf16.mxu0 0
      %1917 = vmatpush1.bf16.msra.mxu0 0
      %1918 = vmatprep.subr.bf16.mxu0 0
      %1919 = vmatpush1.bf16.msra.mxu0 0
      %1920 = vmatprep.subr.bf16.mxu0 0
      %1921 = vmatpush1.bf16.msra.mxu0 0
      %1922 = vmatprep.subr.bf16.mxu0 0
      %1923 = vmatpush1.bf16.msra.mxu0 0
      %1924 = vmatprep.subr.bf16.mxu0 0
      %1925 = vmatpush1.bf16.msra.mxu0 %v1903
      %1926 = vmatprep.subr.bf16.mxu0 0
      %1927 = vmatpush1.bf16.msra.mxu0 %v1901
      %1928 = vmatprep.subr.bf16.mxu0 0
      %1929 = vmatpush2.bf16.msra.mxu0 0
      %1930 = vmatprep.subr.bf16.mxu0 0
      %1931 = vmatpush2.bf16.msra.mxu0 0
      %1932 = vmatprep.subr.bf16.mxu0 0
      %1933 = vmatpush2.bf16.msra.mxu0 0
      %1934 = vmatprep.subr.bf16.mxu0 0
      %1935 = vmatpush2.bf16.msra.mxu0 0
      %1936 = vmatprep.subr.bf16.mxu0 0
      %1937 = vmatpush2.bf16.msra.mxu0 0
      %1938 = vmatprep.subr.bf16.mxu0 0
      %1939 = vmatpush2.bf16.msra.mxu0 0
      %1940 = vmatprep.subr.bf16.mxu0 0
      %1941 = vmatpush2.bf16.msra.mxu0 0
      %1942 = vmatprep.subr.bf16.mxu0 0
      %1943 = vmatpush2.bf16.msra.mxu0 0
      %1944 = vmatprep.mubr.bf16.mxu0 0
      %1945 = vmatmul.mubr.bf16.gmra.mxu0 %v1907
      %v1946 = vpop.f32.mrf.mxu0
      %v1947 = vadd.f32 0.0, %v1946
      %v1948 = vpop.f32.mrf.mxu0
      %v1949 = vpop.f32.mrf.mxu0
      %v1950 = vadd.f32 0.0, %v1949
      %v1951 = vpop.f32.mrf.mxu0
      %1952 = vmatprep.mubr.bf16.mxu0 0
      %1953 = vmatmul.mubr.bf16.gmra.mxu0 %v1910
      %v1954 = vpop.f32.mrf.mxu0
      %v1955 = vadd.f32 0.0, %v1954
      %v1956 = vpop.f32.mrf.mxu0
      %v1957 = vpop.f32.mrf.mxu0
      %v1958 = vadd.f32 0.0, %v1957
      %v1959 = vpop.f32.mrf.mxu0
      %1960 = vdwg.mxu0
      %1961 = vrot.lane.b32.xlu0 %v882, 64
      %v1962 = vpop.permute.xlu0 %1961
      %1963 = vrot.lane.b32.xlu0 %v883, 64
      %v1964 = vpop.permute.xlu0 %1963
      %v1968 = vsel %vm908, %v1898, 0
      %v1971 = vsel %vm908, %v1899, 0
      %1973 = vmatprep.subr.bf16.mxu0 0
      %1974 = vmatpush1.bf16.msra.mxu0 0
      %1975 = vmatprep.subr.bf16.mxu0 0
      %1976 = vmatpush1.bf16.msra.mxu0 0
      %1977 = vmatprep.subr.bf16.mxu0 0
      %1978 = vmatpush1.bf16.msra.mxu0 0
      %1979 = vmatprep.subr.bf16.mxu0 0
      %1980 = vmatpush1.bf16.msra.mxu0 0
      %1981 = vmatprep.subr.bf16.mxu0 0
      %1982 = vmatpush1.bf16.msra.mxu0 0
      %1983 = vmatprep.subr.bf16.mxu0 0
      %1984 = vmatpush1.bf16.msra.mxu0 0
      %1985 = vmatprep.subr.bf16.mxu0 0
      %1986 = vmatpush1.bf16.msra.mxu0 %v1964
      %1987 = vmatprep.subr.bf16.mxu0 0
      %1988 = vmatpush1.bf16.msra.mxu0 %v1962
      %1989 = vmatprep.subr.bf16.mxu0 0
      %1990 = vmatpush2.bf16.msra.mxu0 0
      %1991 = vmatprep.subr.bf16.mxu0 0
      %1992 = vmatpush2.bf16.msra.mxu0 0
      %1993 = vmatprep.subr.bf16.mxu0 0
      %1994 = vmatpush2.bf16.msra.mxu0 0
      %1995 = vmatprep.subr.bf16.mxu0 0
      %1996 = vmatpush2.bf16.msra.mxu0 0
      %1997 = vmatprep.subr.bf16.mxu0 0
      %1998 = vmatpush2.bf16.msra.mxu0 0
      %1999 = vmatprep.subr.bf16.mxu0 0
      %2000 = vmatpush2.bf16.msra.mxu0 0
      %2001 = vmatprep.subr.bf16.mxu0 0
      %2002 = vmatpush2.bf16.msra.mxu0 0
      %2003 = vmatprep.subr.bf16.mxu0 0
      %2004 = vmatpush2.bf16.msra.mxu0 0
      %2005 = vmatprep.mubr.bf16.mxu0 0
      %2006 = vmatmul.mubr.bf16.gmra.mxu0 %v1968
      %v2007 = vpop.f32.mrf.mxu0
      %v2008 = vadd.f32 0.0, %v2007
      %v2009 = vpop.f32.mrf.mxu0
      %v2010 = vpop.f32.mrf.mxu0
      %v2011 = vadd.f32 0.0, %v2010
      %v2012 = vpop.f32.mrf.mxu0
      %2013 = vmatprep.mubr.bf16.mxu0 0
      %2014 = vmatmul.mubr.bf16.gmra.mxu0 %v1971
      %v2015 = vpop.f32.mrf.mxu0
      %v2016 = vadd.f32 0.0, %v2015
      %v2017 = vpop.f32.mrf.mxu0
      %v2018 = vpop.f32.mrf.mxu0
      %v2019 = vadd.f32 0.0, %v2018
      %v2020 = vpop.f32.mrf.mxu0
      %2021 = vdwg.mxu0
      %2030 = vrot.lane.b32.xlu0 %v1947, 64
      %v2031 = vpop.permute.xlu0 %2030
      %2032 = vrot.lane.b32.xlu0 %v1950, 64
      %v2033 = vpop.permute.xlu0 %2032
      %2034 = vrot.lane.b32.xlu0 %v1955, 64
      %v2035 = vpop.permute.xlu0 %2034
      %2036 = vrot.lane.b32.xlu0 %v1958, 64
      %v2037 = vpop.permute.xlu0 %2036
      %2038 = vrot.lane.b32.xlu0 %v2008, 64
      %v2039 = vpop.permute.xlu0 %2038
      %2040 = vrot.lane.b32.xlu0 %v2011, 64
      %v2041 = vpop.permute.xlu0 %2040
      %2042 = vrot.lane.b32.xlu0 %v2016, 64
      %v2043 = vpop.permute.xlu0 %2042
      %2044 = vrot.lane.b32.xlu0 %v2019, 64
      %v2045 = vpop.permute.xlu0 %2044
      %vm2054 = vcmask 785920
      %2055 = vst.msk [vmem:[#allocation2] sm:$0xff] %vm2054, %v2031
      %2056 = vst.msk [vmem:[#allocation2 + $0x8] sm:$0xff] %vm2054, %v2033
      %2057 = vst.msk [vmem:[#allocation2 + $0x10] sm:$0xff] %vm2054, %v2035
      %2058 = vst.msk [vmem:[#allocation2 + $0x18] sm:$0xff] %vm2054, %v2037
      %2059 = vst.msk [vmem:[#allocation2 + $0x20] sm:$0xff] %vm2054, %v2039
      %2060 = vst.msk [vmem:[#allocation2 + $0x28] sm:$0xff] %vm2054, %v2041
      %2061 = vst.msk [vmem:[#allocation2 + $0x30] sm:$0xff] %vm2054, %v2043
      %2062 = vst.msk [vmem:[#allocation2 + $0x38] sm:$0xff] %vm2054, %v2045
      %2063 = vrot.lane.b32.xlu0 %v872, 32
      %v2064 = vpop.permute.xlu0 %2063
      %2065 = vrot.lane.b32.xlu0 %v873, 32
      %v2066 = vpop.permute.xlu0 %2065
      %2067 = vrot.lane.b32.xlu0 %v876, 32
      %v2068 = vpop.permute.xlu0 %2067
      %2069 = vrot.lane.b32.xlu0 %v877, 32
      %v2070 = vpop.permute.xlu0 %2069
      %v2072 = vsel %vm908, %v2064, 0
      %v2075 = vsel %vm908, %v2066, 0
      %v2078 = vsel %vm908, %v2068, 0
      %v2081 = vsel %vm908, %v2070, 0
      %2083 = vmatprep.subr.bf16.mxu0 0
      %2084 = vmatpush1.bf16.xpose.msra.mxu0 0
      %2085 = vmatprep.subr.bf16.mxu0 0
      %2086 = vmatpush1.bf16.xpose.msra.mxu0 0
      %2087 = vmatprep.subr.bf16.mxu0 0
      %2088 = vmatpush1.bf16.xpose.msra.mxu0 0
      %2089 = vmatprep.subr.bf16.mxu0 0
      %2090 = vmatpush1.bf16.xpose.msra.mxu0 0
      %2091 = vmatprep.subr.bf16.mxu0 0
      %2092 = vmatpush1.bf16.xpose.msra.mxu0 0
      %2093 = vmatprep.subr.bf16.mxu0 0
      %2094 = vmatpush1.bf16.xpose.msra.mxu0 0
      %2095 = vmatprep.subr.bf16.mxu0 0
      %2096 = vmatpush1.bf16.xpose.msra.mxu0 %v2081
      %2097 = vmatprep.subr.bf16.mxu0 0
      %2098 = vmatpush1.bf16.xpose.msra.mxu0 %v2078
      %2099 = vmatprep.subr.bf16.mxu0 0
      %2100 = vmatpush2.bf16.xpose.msra.mxu0 0
      %2101 = vmatprep.subr.bf16.mxu0 0
      %2102 = vmatpush2.bf16.xpose.msra.mxu0 0
      %2103 = vmatprep.subr.bf16.mxu0 0
      %2104 = vmatpush2.bf16.xpose.msra.mxu0 0
      %2105 = vmatprep.subr.bf16.mxu0 0
      %2106 = vmatpush2.bf16.xpose.msra.mxu0 0
      %2107 = vmatprep.subr.bf16.mxu0 0
      %2108 = vmatpush2.bf16.xpose.msra.mxu0 0
      %2109 = vmatprep.subr.bf16.mxu0 0
      %2110 = vmatpush2.bf16.xpose.msra.mxu0 0
      %2111 = vmatprep.subr.bf16.mxu0 0
      %2112 = vmatpush2.bf16.xpose.msra.mxu0 0
      %2113 = vmatprep.subr.bf16.mxu0 0
      %2114 = vmatpush2.bf16.xpose.msra.mxu0 0
      %2115 = vmatprep.mubr.bf16.mxu0 0
      %2116 = vmatmul.mubr.bf16.gmra.mxu0 %v2072
      %v2117 = vpop.f32.mrf.mxu0
      %v2118 = vadd.f32 %v896, %v2117
      %v2119 = vpop.f32.mrf.mxu0
      %v2120 = vpop.f32.mrf.mxu0
      %v2121 = vadd.f32 %v897, %v2120
      %v2122 = vpop.f32.mrf.mxu0
      %2123 = vmatprep.mubr.bf16.mxu0 0
      %2124 = vmatmul.mubr.bf16.gmra.mxu0 %v2075
      %v2125 = vpop.f32.mrf.mxu0
      %v2126 = vadd.f32 %v898, %v2125
      %v2127 = vpop.f32.mrf.mxu0
      %v2128 = vpop.f32.mrf.mxu0
      %v2129 = vadd.f32 %v899, %v2128
      %v2130 = vpop.f32.mrf.mxu0
      %2131 = vdwg.mxu0
      %2132 = vrot.lane.b32.xlu0 %v874, 32
      %v2133 = vpop.permute.xlu0 %2132
      %2134 = vrot.lane.b32.xlu0 %v875, 32
      %v2135 = vpop.permute.xlu0 %2134
      %2136 = vrot.lane.b32.xlu0 %v878, 32
      %v2137 = vpop.permute.xlu0 %2136
      %2138 = vrot.lane.b32.xlu0 %v879, 32
      %v2139 = vpop.permute.xlu0 %2138
      %v2141 = vsel %vm908, %v2133, 0
      %v2144 = vsel %vm908, %v2135, 0
      %v2147 = vsel %vm908, %v2137, 0
      %v2150 = vsel %vm908, %v2139, 0
      %2152 = vmatprep.subr.bf16.mxu0 0
      %2153 = vmatpush1.bf16.xpose.msra.mxu0 0
      %2154 = vmatprep.subr.bf16.mxu0 0
      %2155 = vmatpush1.bf16.xpose.msra.mxu0 0
      %2156 = vmatprep.subr.bf16.mxu0 0
      %2157 = vmatpush1.bf16.xpose.msra.mxu0 0
      %2158 = vmatprep.subr.bf16.mxu0 0
      %2159 = vmatpush1.bf16.xpose.msra.mxu0 0
      %2160 = vmatprep.subr.bf16.mxu0 0
      %2161 = vmatpush1.bf16.xpose.msra.mxu0 0
      %2162 = vmatprep.subr.bf16.mxu0 0
      %2163 = vmatpush1.bf16.xpose.msra.mxu0 0
      %2164 = vmatprep.subr.bf16.mxu0 0
      %2165 = vmatpush1.bf16.xpose.msra.mxu0 %v2150
      %2166 = vmatprep.subr.bf16.mxu0 0
      %2167 = vmatpush1.bf16.xpose.msra.mxu0 %v2147
      %2168 = vmatprep.subr.bf16.mxu0 0
      %2169 = vmatpush2.bf16.xpose.msra.mxu0 0
      %2170 = vmatprep.subr.bf16.mxu0 0
      %2171 = vmatpush2.bf16.xpose.msra.mxu0 0
      %2172 = vmatprep.subr.bf16.mxu0 0
      %2173 = vmatpush2.bf16.xpose.msra.mxu0 0
      %2174 = vmatprep.subr.bf16.mxu0 0
      %2175 = vmatpush2.bf16.xpose.msra.mxu0 0
      %2176 = vmatprep.subr.bf16.mxu0 0
      %2177 = vmatpush2.bf16.xpose.msra.mxu0 0
      %2178 = vmatprep.subr.bf16.mxu0 0
      %2179 = vmatpush2.bf16.xpose.msra.mxu0 0
      %2180 = vmatprep.subr.bf16.mxu0 0
      %2181 = vmatpush2.bf16.xpose.msra.mxu0 0
      %2182 = vmatprep.subr.bf16.mxu0 0
      %2183 = vmatpush2.bf16.xpose.msra.mxu0 0
      %2184 = vmatprep.mubr.bf16.mxu0 0
      %2185 = vmatmul.mubr.bf16.gmra.mxu0 %v2141
      %v2186 = vpop.f32.mrf.mxu0
      %v2187 = vadd.f32 %v896, %v2186
      %v2188 = vpop.f32.mrf.mxu0
      %v2189 = vpop.f32.mrf.mxu0
      %v2190 = vadd.f32 %v897, %v2189
      %v2191 = vpop.f32.mrf.mxu0
      %2192 = vmatprep.mubr.bf16.mxu0 0
      %2193 = vmatmul.mubr.bf16.gmra.mxu0 %v2144
      %v2194 = vpop.f32.mrf.mxu0
      %v2195 = vadd.f32 %v898, %v2194
      %v2196 = vpop.f32.mrf.mxu0
      %v2197 = vpop.f32.mrf.mxu0
      %v2198 = vadd.f32 %v899, %v2197
      %v2199 = vpop.f32.mrf.mxu0
      %2200 = vdwg.mxu0
      %v2201 = vadd.f32 %v2118, %v900
      %v2202 = vadd.f32 %v2121, %v901
      %v2203 = vadd.f32 %v2126, %v902
      %v2204 = vadd.f32 %v2129, %v903
      %v2205 = vadd.f32 %v2187, %v904
      %v2206 = vadd.f32 %v2190, %v905
      %v2207 = vadd.f32 %v2195, %v906
      %v2208 = vadd.f32 %v2198, %v907
      %v2209 = vsel %vm908, %v2201, -inf
      %2210 = vmax.xlane.f32.xlu0 %v2209
      %v2211 = vpop.xlane.xlu0 %2210
      %v2212 = vsel %vm908, %v2202, -inf
      %2213 = vmax.xlane.f32.xlu0 %v2212
      %v2214 = vpop.xlane.xlu0 %2213
      %v2215 = vsel %vm908, %v2203, -inf
      %2216 = vmax.xlane.f32.xlu0 %v2215
      %v2217 = vpop.xlane.xlu0 %2216
      %v2218 = vsel %vm908, %v2204, -inf
      %2219 = vmax.xlane.f32.xlu0 %v2218
      %v2220 = vpop.xlane.xlu0 %2219
      %v2221 = vsel %vm908, %v2205, -inf
      %2222 = vmax.xlane.f32.xlu0 %v2221
      %v2223 = vpop.xlane.xlu0 %2222
      %v2224 = vsel %vm908, %v2206, -inf
      %2225 = vmax.xlane.f32.xlu0 %v2224
      %v2226 = vpop.xlane.xlu0 %2225
      %v2227 = vsel %vm908, %v2207, -inf
      %2228 = vmax.xlane.f32.xlu0 %v2227
      %v2229 = vpop.xlane.xlu0 %2228
      %v2230 = vsel %vm908, %v2208, -inf
      %2231 = vmax.xlane.f32.xlu0 %v2230
      %v2232 = vpop.xlane.xlu0 %2231
      %v2233 = vsub.f32 %v2201, %v2211
      %v2234 = vsub.f32 %v2202, %v2214
      %v2235 = vsub.f32 %v2203, %v2217
      %v2236 = vsub.f32 %v2204, %v2220
      %v2237 = vsub.f32 %v2205, %v2223
      %v2238 = vsub.f32 %v2206, %v2226
      %v2239 = vsub.f32 %v2207, %v2229
      %v2240 = vsub.f32 %v2208, %v2232
      %v2241 = vmul.f32 %v2233, 1.442695
      %v2242 = vpow.pop %v2241
      %v2243 = vmul.f32 %v2234, 1.442695
      %v2244 = vpow.pop %v2243
      %v2245 = vmul.f32 %v2235, 1.442695
      %v2246 = vpow.pop %v2245
      %v2247 = vmul.f32 %v2236, 1.442695
      %v2248 = vpow.pop %v2247
      %v2249 = vmul.f32 %v2237, 1.442695
      %v2250 = vpow.pop %v2249
      %v2251 = vmul.f32 %v2238, 1.442695
      %v2252 = vpow.pop %v2251
      %v2253 = vmul.f32 %v2239, 1.442695
      %v2254 = vpow.pop %v2253
      %v2255 = vmul.f32 %v2240, 1.442695
      %v2256 = vpow.pop %v2255
      %v2257 = vsel %vm908, %v2242, 0.0
      %2258 = vadd.xlane.f32.xlu0 %v2257
      %v2259 = vpop.xlane.xlu0 %2258
      %v2260 = vsel %vm908, %v2244, 0.0
      %2261 = vadd.xlane.f32.xlu0 %v2260
      %v2262 = vpop.xlane.xlu0 %2261
      %v2263 = vsel %vm908, %v2246, 0.0
      %2264 = vadd.xlane.f32.xlu0 %v2263
      %v2265 = vpop.xlane.xlu0 %2264
      %v2266 = vsel %vm908, %v2248, 0.0
      %2267 = vadd.xlane.f32.xlu0 %v2266
      %v2268 = vpop.xlane.xlu0 %2267
      %v2269 = vsel %vm908, %v2250, 0.0
      %2270 = vadd.xlane.f32.xlu0 %v2269
      %v2271 = vpop.xlane.xlu0 %2270
      %v2272 = vsel %vm908, %v2252, 0.0
      %2273 = vadd.xlane.f32.xlu0 %v2272
      %v2274 = vpop.xlane.xlu0 %2273
      %v2275 = vsel %vm908, %v2254, 0.0
      %2276 = vadd.xlane.f32.xlu0 %v2275
      %v2277 = vpop.xlane.xlu0 %2276
      %v2278 = vsel %vm908, %v2256, 0.0
      %2279 = vadd.xlane.f32.xlu0 %v2278
      %v2280 = vpop.xlane.xlu0 %2279
      %v2281 = vrcp.pop %v2259
      %v2282 = vrcp.pop %v2262
      %v2283 = vrcp.pop %v2265
      %v2284 = vrcp.pop %v2268
      %v2285 = vrcp.pop %v2271
      %v2286 = vrcp.pop %v2274
      %v2287 = vrcp.pop %v2277
      %v2288 = vrcp.pop %v2280
      %v2289 = vmul.f32 %v2242, %v2281
      %v2290 = vmul.f32 %v2244, %v2282
      %v2291 = vmul.f32 %v2246, %v2283
      %v2292 = vmul.f32 %v2248, %v2284
      %v2293 = vmul.f32 %v2250, %v2285
      %v2294 = vmul.f32 %v2252, %v2286
      %v2295 = vmul.f32 %v2254, %v2287
      %v2296 = vmul.f32 %v2256, %v2288
      %v2297 = vpack.c.bf16 %v2290, %v2289
      %v2298 = vpack.c.bf16 %v2292, %v2291
      %v2299 = vpack.c.bf16 %v2294, %v2293
      %v2300 = vpack.c.bf16 %v2296, %v2295
      %2301 = vrot.lane.b32.xlu0 %v880, 32
      %v2302 = vpop.permute.xlu0 %2301
      %2303 = vrot.lane.b32.xlu0 %v881, 32
      %v2304 = vpop.permute.xlu0 %2303
      %v2308 = vsel %vm908, %v2297, 0
      %v2311 = vsel %vm908, %v2298, 0
      %2313 = vmatprep.subr.bf16.mxu0 0
      %2314 = vmatpush1.bf16.msra.mxu0 0
      %2315 = vmatprep.subr.bf16.mxu0 0
      %2316 = vmatpush1.bf16.msra.mxu0 0
      %2317 = vmatprep.subr.bf16.mxu0 0
      %2318 = vmatpush1.bf16.msra.mxu0 0
      %2319 = vmatprep.subr.bf16.mxu0 0
      %2320 = vmatpush1.bf16.msra.mxu0 0
      %2321 = vmatprep.subr.bf16.mxu0 0
      %2322 = vmatpush1.bf16.msra.mxu0 0
      %2323 = vmatprep.subr.bf16.mxu0 0
      %2324 = vmatpush1.bf16.msra.mxu0 0
      %2325 = vmatprep.subr.bf16.mxu0 0
      %2326 = vmatpush1.bf16.msra.mxu0 %v2304
      %2327 = vmatprep.subr.bf16.mxu0 0
      %2328 = vmatpush1.bf16.msra.mxu0 %v2302
      %2329 = vmatprep.subr.bf16.mxu0 0
      %2330 = vmatpush2.bf16.msra.mxu0 0
      %2331 = vmatprep.subr.bf16.mxu0 0
      %2332 = vmatpush2.bf16.msra.mxu0 0
      %2333 = vmatprep.subr.bf16.mxu0 0
      %2334 = vmatpush2.bf16.msra.mxu0 0
      %2335 = vmatprep.subr.bf16.mxu0 0
      %2336 = vmatpush2.bf16.msra.mxu0 0
      %2337 = vmatprep.subr.bf16.mxu0 0
      %2338 = vmatpush2.bf16.msra.mxu0 0
      %2339 = vmatprep.subr.bf16.mxu0 0
      %2340 = vmatpush2.bf16.msra.mxu0 0
      %2341 = vmatprep.subr.bf16.mxu0 0
      %2342 = vmatpush2.bf16.msra.mxu0 0
      %2343 = vmatprep.subr.bf16.mxu0 0
      %2344 = vmatpush2.bf16.msra.mxu0 0
      %2345 = vmatprep.mubr.bf16.mxu0 0
      %2346 = vmatmul.mubr.bf16.gmra.mxu0 %v2308
      %v2347 = vpop.f32.mrf.mxu0
      %v2348 = vadd.f32 0.0, %v2347
      %v2349 = vpop.f32.mrf.mxu0
      %v2350 = vpop.f32.mrf.mxu0
      %v2351 = vadd.f32 0.0, %v2350
      %v2352 = vpop.f32.mrf.mxu0
      %2353 = vmatprep.mubr.bf16.mxu0 0
      %2354 = vmatmul.mubr.bf16.gmra.mxu0 %v2311
      %v2355 = vpop.f32.mrf.mxu0
      %v2356 = vadd.f32 0.0, %v2355
      %v2357 = vpop.f32.mrf.mxu0
      %v2358 = vpop.f32.mrf.mxu0
      %v2359 = vadd.f32 0.0, %v2358
      %v2360 = vpop.f32.mrf.mxu0
      %2361 = vdwg.mxu0
      %2362 = vrot.lane.b32.xlu0 %v882, 32
      %v2363 = vpop.permute.xlu0 %2362
      %2364 = vrot.lane.b32.xlu0 %v883, 32
      %v2365 = vpop.permute.xlu0 %2364
      %v2369 = vsel %vm908, %v2299, 0
      %v2372 = vsel %vm908, %v2300, 0
      %2374 = vmatprep.subr.bf16.mxu0 0
      %2375 = vmatpush1.bf16.msra.mxu0 0
      %2376 = vmatprep.subr.bf16.mxu0 0
      %2377 = vmatpush1.bf16.msra.mxu0 0
      %2378 = vmatprep.subr.bf16.mxu0 0
      %2379 = vmatpush1.bf16.msra.mxu0 0
      %2380 = vmatprep.subr.bf16.mxu0 0
      %2381 = vmatpush1.bf16.msra.mxu0 0
      %2382 = vmatprep.subr.bf16.mxu0 0
      %2383 = vmatpush1.bf16.msra.mxu0 0
      %2384 = vmatprep.subr.bf16.mxu0 0
      %2385 = vmatpush1.bf16.msra.mxu0 0
      %2386 = vmatprep.subr.bf16.mxu0 0
      %2387 = vmatpush1.bf16.msra.mxu0 %v2365
      %2388 = vmatprep.subr.bf16.mxu0 0
      %2389 = vmatpush1.bf16.msra.mxu0 %v2363
      %2390 = vmatprep.subr.bf16.mxu0 0
      %2391 = vmatpush2.bf16.msra.mxu0 0
      %2392 = vmatprep.subr.bf16.mxu0 0
      %2393 = vmatpush2.bf16.msra.mxu0 0
      %2394 = vmatprep.subr.bf16.mxu0 0
      %2395 = vmatpush2.bf16.msra.mxu0 0
      %2396 = vmatprep.subr.bf16.mxu0 0
      %2397 = vmatpush2.bf16.msra.mxu0 0
      %2398 = vmatprep.subr.bf16.mxu0 0
      %2399 = vmatpush2.bf16.msra.mxu0 0
      %2400 = vmatprep.subr.bf16.mxu0 0
      %2401 = vmatpush2.bf16.msra.mxu0 0
      %2402 = vmatprep.subr.bf16.mxu0 0
      %2403 = vmatpush2.bf16.msra.mxu0 0
      %2404 = vmatprep.subr.bf16.mxu0 0
      %2405 = vmatpush2.bf16.msra.mxu0 0
      %2406 = vmatprep.mubr.bf16.mxu0 0
      %2407 = vmatmul.mubr.bf16.gmra.mxu0 %v2369
      %v2408 = vpop.f32.mrf.mxu0
      %v2409 = vadd.f32 0.0, %v2408
      %v2410 = vpop.f32.mrf.mxu0
      %v2411 = vpop.f32.mrf.mxu0
      %v2412 = vadd.f32 0.0, %v2411
      %v2413 = vpop.f32.mrf.mxu0
      %2414 = vmatprep.mubr.bf16.mxu0 0
      %2415 = vmatmul.mubr.bf16.gmra.mxu0 %v2372
      %v2416 = vpop.f32.mrf.mxu0
      %v2417 = vadd.f32 0.0, %v2416
      %v2418 = vpop.f32.mrf.mxu0
      %v2419 = vpop.f32.mrf.mxu0
      %v2420 = vadd.f32 0.0, %v2419
      %v2421 = vpop.f32.mrf.mxu0
      %2422 = vdwg.mxu0
      %2431 = vrot.lane.b32.xlu0 %v2348, 96
      %v2432 = vpop.permute.xlu0 %2431
      %2433 = vrot.lane.b32.xlu0 %v2351, 96
      %v2434 = vpop.permute.xlu0 %2433
      %2435 = vrot.lane.b32.xlu0 %v2356, 96
      %v2436 = vpop.permute.xlu0 %2435
      %2437 = vrot.lane.b32.xlu0 %v2359, 96
      %v2438 = vpop.permute.xlu0 %2437
      %2439 = vrot.lane.b32.xlu0 %v2409, 96
      %v2440 = vpop.permute.xlu0 %2439
      %2441 = vrot.lane.b32.xlu0 %v2412, 96
      %v2442 = vpop.permute.xlu0 %2441
      %2443 = vrot.lane.b32.xlu0 %v2417, 96
      %v2444 = vpop.permute.xlu0 %2443
      %2445 = vrot.lane.b32.xlu0 %v2420, 96
      %v2446 = vpop.permute.xlu0 %2445
      %vm2455 = vcmask 1048320
      %2456 = vst.msk [vmem:[#allocation2] sm:$0xff] %vm2455, %v2432
      %2457 = vst.msk [vmem:[#allocation2 + $0x8] sm:$0xff] %vm2455, %v2434
      %2458 = vst.msk [vmem:[#allocation2 + $0x10] sm:$0xff] %vm2455, %v2436
      %2459 = vst.msk [vmem:[#allocation2 + $0x18] sm:$0xff] %vm2455, %v2438
      %2460 = vst.msk [vmem:[#allocation2 + $0x20] sm:$0xff] %vm2455, %v2440
      %2461 = vst.msk [vmem:[#allocation2 + $0x28] sm:$0xff] %vm2455, %v2442
      %2462 = vst.msk [vmem:[#allocation2 + $0x30] sm:$0xff] %vm2455, %v2444
      %2463 = vst.msk [vmem:[#allocation2 + $0x38] sm:$0xff] %vm2455, %v2446
      %v2464 = vld [vmem:[#allocation2] sm:$0xff]
      %v2465 = vld [vmem:[#allocation2 + $0x8] sm:$0xff]
      %v2466 = vld [vmem:[#allocation2 + $0x10] sm:$0xff]
      %v2467 = vld [vmem:[#allocation2 + $0x18] sm:$0xff]
      %v2468 = vld [vmem:[#allocation2 + $0x20] sm:$0xff]
      %v2469 = vld [vmem:[#allocation2 + $0x28] sm:$0xff]
      %v2470 = vld [vmem:[#allocation2 + $0x30] sm:$0xff]
      %v2471 = vld [vmem:[#allocation2 + $0x38] sm:$0xff]
      %v2472 = vpack.c.bf16 %v2465, %v2464
      %v2473 = vpack.c.bf16 %v2467, %v2466
      %v2474 = vpack.c.bf16 %v2469, %v2468
      %v2475 = vpack.c.bf16 %v2471, %v2470
      %v2476 = vld [vmem:[%s7] sm:$0xf]
      %v2477 = vld [vmem:[%s7 + $0x4] sm:$0xf]
      %v2478 = vld [vmem:[%s7 + $0x8] sm:$0xf]
      %v2479 = vld [vmem:[%s7 + $0xc] sm:$0xf]
      %v2480 = vld [vmem:[%s7 + $0x10] sm:$0xf]
      %v2481 = vld [vmem:[%s7 + $0x14] sm:$0xf]
      %v2482 = vld [vmem:[%s7 + $0x18] sm:$0xf]
      %v2483 = vld [vmem:[%s7 + $0x1c] sm:$0xf]
      %v2484 = vld [vmem:[%s7 + $0x20] sm:$0xf]
      %v2485 = vld [vmem:[%s7 + $0x24] sm:$0xf]
      %v2486 = vld [vmem:[%s7 + $0x28] sm:$0xf]
      %v2487 = vld [vmem:[%s7 + $0x2c] sm:$0xf]
      %v2488 = vld [vmem:[%s7 + $0x30] sm:$0xf]
      %v2489 = vld [vmem:[%s7 + $0x34] sm:$0xf]
      %v2490 = vld [vmem:[%s7 + $0x38] sm:$0xf]
      %v2491 = vld [vmem:[%s7 + $0x3c] sm:$0xf]
      %v2492 = vld [vmem:[%s8] sm:$0x1]
      %v2494 = vlaneseq
      %v2495 = vshrl.u32 %v2494, 7
      %v2496 = vsub.s32 0, %v2495
      %v2497 = vrot.slane %v2492, %v2496
      %v2515 = vunpack.c.l.b16 %v2476
      %v2516 = vunpack.c.l.b16 %v2477
      %v2517 = vunpack.c.l.b16 %v2478
      %v2518 = vunpack.c.l.b16 %v2479
      %v2519 = vunpack.c.l.b16 %v2480
      %v2520 = vunpack.c.l.b16 %v2481
      %v2521 = vunpack.c.l.b16 %v2482
      %v2522 = vunpack.c.l.b16 %v2483
      %v2523 = vunpack.c.l.b16 %v2484
      %v2524 = vunpack.c.l.b16 %v2485
      %v2525 = vunpack.c.l.b16 %v2486
      %v2526 = vunpack.c.l.b16 %v2487
      %v2527 = vunpack.c.l.b16 %v2488
      %v2528 = vunpack.c.l.b16 %v2489
      %v2529 = vunpack.c.l.b16 %v2490
      %v2530 = vunpack.c.l.b16 %v2491
      %v2531 = vpack.c.b16 %v2516, %v2515
      %v2532 = vpack.c.b16 %v2518, %v2517
      %v2533 = vpack.c.b16 %v2520, %v2519
      %v2534 = vpack.c.b16 %v2522, %v2521
      %v2535 = vpack.c.b16 %v2524, %v2523
      %v2536 = vpack.c.b16 %v2526, %v2525
      %v2537 = vpack.c.b16 %v2528, %v2527
      %v2538 = vpack.c.b16 %v2530, %v2529
      %2547 = vmatprep.subr.bf16.mxu0 0
      %2548 = vmatpush1.bf16.msra.mxu0 %v2538
      %2549 = vmatprep.subr.bf16.mxu0 0
      %2550 = vmatpush1.bf16.msra.mxu0 %v2537
      %2551 = vmatprep.subr.bf16.mxu0 0
      %2552 = vmatpush1.bf16.msra.mxu0 %v2536
      %2553 = vmatprep.subr.bf16.mxu0 0
      %2554 = vmatpush1.bf16.msra.mxu0 %v2535
      %2555 = vmatprep.subr.bf16.mxu0 0
      %2556 = vmatpush1.bf16.msra.mxu0 %v2534
      %2557 = vmatprep.subr.bf16.mxu0 0
      %2558 = vmatpush1.bf16.msra.mxu0 %v2533
      %2559 = vmatprep.subr.bf16.mxu0 0
      %2560 = vmatpush1.bf16.msra.mxu0 %v2532
      %2561 = vmatprep.subr.bf16.mxu0 0
      %2562 = vmatpush1.bf16.msra.mxu0 %v2531
      %2563 = vmatprep.subr.bf16.mxu0 0
      %2564 = vmatpush2.bf16.msra.mxu0 0
      %2565 = vmatprep.subr.bf16.mxu0 0
      %2566 = vmatpush2.bf16.msra.mxu0 0
      %2567 = vmatprep.subr.bf16.mxu0 0
      %2568 = vmatpush2.bf16.msra.mxu0 0
      %2569 = vmatprep.subr.bf16.mxu0 0
      %2570 = vmatpush2.bf16.msra.mxu0 0
      %2571 = vmatprep.subr.bf16.mxu0 0
      %2572 = vmatpush2.bf16.msra.mxu0 0
      %2573 = vmatprep.subr.bf16.mxu0 0
      %2574 = vmatpush2.bf16.msra.mxu0 0
      %2575 = vmatprep.subr.bf16.mxu0 0
      %2576 = vmatpush2.bf16.msra.mxu0 0
      %2577 = vmatprep.subr.bf16.mxu0 0
      %2578 = vmatpush2.bf16.msra.mxu0 0
      %2579 = vmatprep.mubr.bf16.mxu0 0
      %2580 = vmatmul.mubr.bf16.gmra.mxu0 %v2472
      %v2581 = vpop.f32.mrf.mxu0
      %v2582 = vadd.f32 %v2497, %v2581
      %v2583 = vpop.f32.mrf.mxu0
      %v2584 = vpop.f32.mrf.mxu0
      %v2585 = vadd.f32 %v2497, %v2584
      %v2586 = vpop.f32.mrf.mxu0
      %2587 = vmatprep.mubr.bf16.mxu0 0
      %2588 = vmatmul.mubr.bf16.gmra.mxu0 %v2473
      %v2589 = vpop.f32.mrf.mxu0
      %v2590 = vadd.f32 %v2497, %v2589
      %v2591 = vpop.f32.mrf.mxu0
      %v2592 = vpop.f32.mrf.mxu0
      %v2593 = vadd.f32 %v2497, %v2592
      %v2594 = vpop.f32.mrf.mxu0
      %2595 = vmatprep.mubr.bf16.mxu0 0
      %2596 = vmatmul.mubr.bf16.gmra.mxu0 %v2474
      %v2597 = vpop.f32.mrf.mxu0
      %v2598 = vadd.f32 %v2497, %v2597
      %v2599 = vpop.f32.mrf.mxu0
      %v2600 = vpop.f32.mrf.mxu0
      %v2601 = vadd.f32 %v2497, %v2600
      %v2602 = vpop.f32.mrf.mxu0
      %2603 = vmatprep.mubr.bf16.mxu0 0
      %2604 = vmatmul.mubr.bf16.gmra.mxu0 %v2475
      %v2605 = vpop.f32.mrf.mxu0
      %v2606 = vadd.f32 %v2497, %v2605
      %v2607 = vpop.f32.mrf.mxu0
      %v2608 = vpop.f32.mrf.mxu0
      %v2609 = vadd.f32 %v2497, %v2608
      %v2610 = vpop.f32.mrf.mxu0
      %2611 = vdwg.mxu0
      %2612 = vst [vmem:[%s398] sm:$0xff] %v2582
      %2613 = vst [vmem:[%s398 + $0x8] sm:$0xff] %v2585
      %2614 = vst [vmem:[%s398 + $0x10] sm:$0xff] %v2590
      %2615 = vst [vmem:[%s398 + $0x18] sm:$0xff] %v2593
      %2616 = vst [vmem:[%s398 + $0x20] sm:$0xff] %v2598
      %2617 = vst [vmem:[%s398 + $0x28] sm:$0xff] %v2601
      %2618 = vst [vmem:[%s398 + $0x30] sm:$0xff] %v2606
      %2619 = vst [vmem:[%s398 + $0x38] sm:$0xff] %v2609
      %s2620 = smul.u32 %s24, 4
      %s2621 = sadd.s32 %s2620, %s25
      %s2622 = smul.u32 2, %s2621
      %p2623 = scmp.lt.s32.totalorder %s2622, 15
      %s2624 = scalar_select %p2623, %s2622, 15
      %s2625 = smul.addr %s2624, 4
      %s2626 = smul.addr %s2625, 8
      %s2627 = scalar_lea.vmem %s9, %s2626
      // Predicated region
      $region57: #{swin_block_forward.2} parent=55 // pred_check
        %p2628 = pneg %p257
      $region58: #{swin_block_forward.2} parent=55 // pred_check_branch
        %2630 = sbr.rel (%p2628) target = $region60
      $region59: #{swin_block_forward.2} parent=55 // pred_region
        %s2631 = smul.u32 %s24, 4
        %s2632 = sadd.s32 %s2631, %s25
        %s2633 = smul.u32 2, %s2632
      $region60: #{swin_block_forward.2} parent=55 // pred_fallthru
        _
    $region56: #{swin_block_forward.2} parent=5 // pred_fallthru
      _
    %p2634 = scmp.le.s32.totalorder 2, %s15
    // Predicated region
    $region61: #{swin_block_forward.2} parent=5 // pred_check
      %p2635 = pneg %p2634
    $region62: #{swin_block_forward.2} parent=5 // pred_check_branch
      %2637 = sbr.rel (%p2635) target = $region64
    $region63: #{swin_block_forward.2} parent=5 // pred_region
      %s2638 = ssub.s32 %s15, 2
      // Predicated region
      $region65: #{swin_block_forward.2} parent=63 // pred_check
        %p2639 = pneg %p263
      $region66: #{swin_block_forward.2} parent=63 // pred_check_branch
        %2641 = sbr.rel (%p2639) target = $region68
      $region67: #{swin_block_forward.2} parent=63 // pred_region
        %s2642 = smul.u32 %s26, 4
        %s2643 = sadd.s32 %s2642, %s27
        %s2644 = smul.u32 2, %s2643
        %p2645 = scmp.lt.s32.totalorder %s2644, 15
        %s2646 = scalar_select %p2645, %s2644, 15
        %s2647 = smul.addr %s2646, 4
        %s2648 = smul.addr %s2647, 8
        %s2649 = scalar_lea.vmem %s9, %s2648
      $region68: #{swin_block_forward.2} parent=63 // pred_fallthru
        _
    $region64: #{swin_block_forward.2} parent=5 // pred_fallthru
      _
  $region6: #{swin_block_forward.2} parent=0 // loop_footer
    %s19 = sadd.s32 1, %s15
  $region7: #{swin_block_forward.2} parent=0 // loop_footer_branch
    %14 = sbr.rel target = $region3
  $region8: #{swin_block_forward.2} parent=0 // loop_exit
    _

</llo_original>
